<compile_context>
chip_gen: v7x
topology: tpu7x:2x2x1
jax: 0.10.0
libtpu: 0.0.40
codegen_flags: <defaults>
</compile_context>

<pallas_src>
import functools

import jax
import jax.numpy as jnp
from jax.experimental import pallas as pl
from jax.experimental.pallas import tpu as pltpu

_LANE = 128     # lane width: channel dims padded to a multiple of this
_SUBLANE = 8    # sublane height: time dim padded to a multiple of this


def _round_up(x, m):
    return (x + m - 1) // m * m


def _joint_kernel(x_ref, mask_ref, w_in_ref, b_in_ref, wd_ref, bd_ref,
                  wl_ref, bl_ref, w_out_ref, b_out_ref, o_ref,
                  *, dilations, T, H):
    x = x_ref[0]                                   # (T, C2p)  bf16
    mask = mask_ref[0]                             # (T, 1)    f32

    # Hoisted broadcast / iota (reused every layer; JAX does not CSE these).
    mask_h = jnp.broadcast_to(mask, (T, H))        # (T, H) f32
    row = jax.lax.broadcasted_iota(jnp.int32, (T, H), 0)

    def causal_shift(v, s):
        # y[t] = v[t - s], zeros for t < s (s is a static Python int).
        if s == 0:
            return v
        if s >= T:
            return jnp.zeros_like(v)
        rolled = pltpu.roll(v, shift=s, axis=0)    # sublane rotate (XLU slot)
        return jnp.where(row >= s, rolled, 0.0)    # zero the wrapped rows

    # conv_1x1 over channels == matmul (bf16 MXU, f32 accumulate).
    feat = (jnp.dot(x, w_in_ref[...], preferred_element_type=jnp.float32)
            + b_in_ref[...])                       # (T, H) f32

    # Stack of MemoryDilationResidualLyaer (statically unrolled, static dils).
    for l, d in enumerate(dilations):
        # Fused dilated causal conv: one wide [T,H]@[H,3H] matmul, then shift
        # the three H-wide output slices and sum.
        out3 = jnp.dot(feat.astype(jnp.bfloat16), wd_ref[l],
                       preferred_element_type=jnp.float32)           # (T, 3H)
        out = (causal_shift(out3[:, 0:H], 2 * d)
               + causal_shift(out3[:, H:2 * H], d)
               + out3[:, 2 * H:3 * H]
               + bd_ref[l])
        out = jnp.maximum(out, 0.0)                                   # ReLU
        # 1x1 conv; nn.Dropout() is identity in eval mode.
        out = (jnp.dot(out.astype(jnp.bfloat16), wl_ref[l],
                       preferred_element_type=jnp.float32) + bl_ref[l])
        feat = (feat + out) * mask_h               # residual + mask

    # conv_out + mask multiply.  Class dim is padded to a full 128-lane block
    # so the store is lane-dense (no masked partial vst); padding is sliced
    # off in the wrapper.
    score = (jnp.dot(feat.astype(jnp.bfloat16), w_out_ref[...],
                     preferred_element_type=jnp.float32) + b_out_ref[...])
    o_ref[0] = (score * mask).astype(o_ref.dtype)


def transeger_memory_tcn_joint(img_feature, text_feature, masks, params,
                               *, num_layers=4, sample_rate=4):
    """img_feature, text_feature: [N, C_in, T] (torch NCW); masks: [N, T*sample_rate]."""
    N, Cin, T = img_feature.shape
    C2 = 2 * Cin
    H = params['w_in'].shape[1]
    Ccls = params['w_out'].shape[1]

    C2p = _round_up(C2, _LANE)
    Hp = _round_up(H, _LANE)
    Cp = _round_up(Ccls, _LANE)
    Tp = _round_up(T, _SUBLANE)

    # ---- glue (flip / concat / transpose / mask subsample) in plain JAX ----
    mask_sub = masks[:, ::sample_rate][:, :, None].astype(jnp.float32)        # [N,T,1]
    x = jnp.concatenate([img_feature, jnp.flip(text_feature, axis=-1)], axis=1)
    x = jnp.transpose(x, (0, 2, 1))                                           # [N,T,2Cin]
    # Zero-pad channels to the 128-lane width and time to a sublane multiple;
    # matmul operands go to bf16 (f32 accumulation in-kernel).
    x = jnp.pad(x, ((0, 0), (0, Tp - T), (0, C2p - C2))).astype(jnp.bfloat16)
    mask_sub = jnp.pad(mask_sub, ((0, 0), (0, Tp - T), (0, 0)))

    # ---- params: zero-pad channel dims, fold the 3 dilated-conv taps into a
    #      single wide [H, 3H] weight per layer, cast matmul weights to bf16.
    w_in = jnp.pad(params['w_in'], ((0, C2p - C2), (0, Hp - H))).astype(jnp.bfloat16)
    b_in = jnp.pad(params['b_in'], ((0, 0), (0, Hp - H)))
    wd = jnp.pad(params['wd'], ((0, 0), (0, 0), (0, Hp - H), (0, Hp - H)))
    wd_wide = jnp.concatenate([wd[:, 0], wd[:, 1], wd[:, 2]],
                              axis=-1).astype(jnp.bfloat16)                   # [L,Hp,3Hp]
    bd = jnp.pad(params['bd'], ((0, 0), (0, 0), (0, Hp - H)))
    wl = jnp.pad(params['wl'], ((0, 0), (0, Hp - H), (0, Hp - H))).astype(jnp.bfloat16)
    bl = jnp.pad(params['bl'], ((0, 0), (0, 0), (0, Hp - H)))
    w_out = jnp.pad(params['w_out'], ((0, Hp - H), (0, Cp - Ccls))).astype(jnp.bfloat16)
    b_out = jnp.pad(params['b_out'], ((0, 0), (0, Cp - Ccls)))

    dilations = tuple(2 ** (num_layers - 1 - i) for i in range(num_layers))
    kernel = functools.partial(_joint_kernel, dilations=dilations, T=Tp, H=Hp)

    def const_spec(arr):
        # Constant index map: weights fetched once, VMEM-resident across steps.
        # TODO(synk): on v7x with large H, add pipeline_mode=pl.Buffered(1) to
        # single-buffer these constant blocks inside the 64 MiB VMEM budget.
        nd = arr.ndim
        return pl.BlockSpec(arr.shape, lambda n, _nd=nd: (0,) * _nd)

    out = pl.pallas_call(
        kernel,
        out_shape=jax.ShapeDtypeStruct((N, Tp, Cp), jnp.float32),
        grid=(N,),
        in_specs=[
            pl.BlockSpec((1, Tp, C2p), lambda n: (n, 0, 0)),
            pl.BlockSpec((1, Tp, 1), lambda n: (n, 0, 0)),
            const_spec(w_in), const_spec(b_in),
            const_spec(wd_wide), const_spec(bd),
            const_spec(wl), const_spec(bl),
            const_spec(w_out), const_spec(b_out),
        ],
        out_specs=pl.BlockSpec((1, Tp, Cp), lambda n: (n, 0, 0)),
        compiler_params=pltpu.CompilerParams(
            dimension_semantics=("parallel",),      # batch split across TCs (v7x)
            vmem_limit_bytes=32 * 1024 * 1024),
    )(x, mask_sub, w_in, b_in, wd_wide, bd, wl, bl, w_out, b_out)
    # TODO(synk): for very long sequences, add a second ("arbitrary") grid axis
    # over time tiles with a 2*sum(dilations) causal halo instead of keeping
    # the full [T, H] slab resident.

    # joint_score: [N, num_classes, T]; unsqueeze(0) + nearest x sample_rate upsample.
    joint_score = jnp.transpose(out[:, :T, :Ccls], (0, 2, 1))
    return jnp.repeat(joint_score[None], sample_rate, axis=-1)


def _reference(img, text, masks, params, num_layers, sample_rate):
    """Pure-JAX reference mirroring the kernel math (bf16 matmul operands,
    f32 accumulation) for verification."""
    def bdot(a, w):
        return jnp.einsum('ntc,ch->nth',
                          a.astype(jnp.bfloat16).astype(jnp.float32),
                          w.astype(jnp.bfloat16).astype(jnp.float32))

    mask = masks[:, ::sample_rate][:, :, None].astype(jnp.float32)   # [N,T,1]
    x = jnp.concatenate([img, jnp.flip(text, axis=-1)], axis=1)      # [N,2Cin,T]
    x = jnp.transpose(x, (0, 2, 1))                                  # [N,T,2Cin]
    feat = bdot(x, params['w_in']) + params['b_in'][None]            # [N,T,H]
    N, T, H = feat.shape
    dils = [2 ** (num_layers - 1 - i) for i in range(num_layers)]

    def shift(f, s):
        if s >= T:
            return jnp.zeros_like(f)
        return jnp.concatenate([jnp.zeros((N, s, H), f.dtype), f[:, :T - s]], axis=1)

    for l, d in enumerate(dils):
        out = (bdot(shift(feat, 2 * d), params['wd'][l, 0])
               + bdot(shift(feat, d), params['wd'][l, 1])
               + bdot(feat, params['wd'][l, 2])
               + params['bd'][l][None])
        out = jnp.maximum(out, 0.0)
        out = bdot(out, params['wl'][l]) + params['bl'][l][None]
        feat = (feat + out) * mask
    score = (bdot(feat, params['w_out']) + params['b_out'][None]) * mask
    score = jnp.transpose(score, (0, 2, 1))                          # [N,Ccls,T]
    return jnp.repeat(score[None], sample_rate, axis=-1)


def _init_params(key, in_channels, hidden, num_classes, num_layers):
    ks = jax.random.split(key, 8)
    s = 0.1
    return {
        'w_in': s * jax.random.normal(ks[0], (in_channels * 2, hidden), jnp.float32),
        'b_in': s * jax.random.normal(ks[1], (1, hidden), jnp.float32),
        'wd':   s * jax.random.normal(ks[2], (num_layers, 3, hidden, hidden), jnp.float32),
        'bd':   s * jax.random.normal(ks[3], (num_layers, 1, hidden), jnp.float32),
        'wl':   s * jax.random.normal(ks[4], (num_layers, hidden, hidden), jnp.float32),
        'bl':   s * jax.random.normal(ks[5], (num_layers, 1, hidden), jnp.float32),
        'w_out': s * jax.random.normal(ks[6], (hidden, num_classes), jnp.float32),
        'b_out': s * jax.random.normal(ks[7], (1, num_classes), jnp.float32),
    }


if __name__ == "__main__":
    # hidden_channels=128 is the module default and exactly fills the 128-lane
    # vreg / MXU width; 2*in_channels = 128 as well.
    N, Cin, T = 2, 64, 64
    hidden, num_classes = 128, 11
    num_layers, sample_rate = 4, 4

    key = jax.random.PRNGKey(0)
    k_img, k_txt, k_msk, k_par = jax.random.split(key, 4)

    img_feature = jax.random.normal(k_img, (N, Cin, T), jnp.float32)
    text_feature = jax.random.normal(k_txt, (N, Cin, T), jnp.float32)
    masks = (jax.random.uniform(k_msk, (N, T * sample_rate)) > 0.2).astype(jnp.float32)

    params = _init_params(k_par, Cin, hidden, num_classes, num_layers)

    out = transeger_memory_tcn_joint(img_feature, text_feature, masks, params,
                                     num_layers=num_layers, sample_rate=sample_rate)
    out = jax.block_until_ready(out)

    ref = _reference(img_feature, text_feature, masks, params, num_layers, sample_rate)
    assert out.shape == (1, N, num_classes, T * sample_rate), out.shape
    err = float(jnp.max(jnp.abs(out - ref)))
    assert jnp.allclose(out, ref, rtol=1e-2, atol=1e-2), err

    print("KERNEL_OK")
</pallas_src>

<mosaic_0001>
module attributes {stable_mosaic.version = 11 : i64} {
  func.func @_joint_kernel(%arg0: i32, %arg1: memref<1x64x128xbf16, #tpu.memory_space<vmem>>, %arg2: memref<1x64x1xf32, #tpu.memory_space<vmem>>, %arg3: memref<128x128xbf16, #tpu.memory_space<vmem>>, %arg4: memref<1x128xf32, #tpu.memory_space<vmem>>, %arg5: memref<4x128x384xbf16, #tpu.memory_space<vmem>>, %arg6: memref<4x1x128xf32, #tpu.memory_space<vmem>>, %arg7: memref<4x128x128xbf16, #tpu.memory_space<vmem>>, %arg8: memref<4x1x128xf32, #tpu.memory_space<vmem>>, %arg9: memref<128x128xbf16, #tpu.memory_space<vmem>>, %arg10: memref<1x128xf32, #tpu.memory_space<vmem>>, %arg11: memref<1x64x128xf32, #tpu.memory_space<vmem>>) attributes {dimension_semantics = [#tpu.dimension_semantics<parallel>], iteration_bounds = array<i64: 2>, scalar_prefetch = 0 : i64, scratch_operands = 0 : i64, tpu.core_type = #tpu.core_type<tc>, window_params = [{transform_indices = @transform_0, window_bounds = array<i64: 1, 64, 128>}, {transform_indices = @transform_1, window_bounds = array<i64: 1, 64, 1>}, {pipeline_mode = #tpu.pipeline_mode<synchronous>, transform_indices = @transform_2, window_bounds = array<i64: 128, 128>}, {pipeline_mode = #tpu.pipeline_mode<synchronous>, transform_indices = @transform_3, window_bounds = array<i64: 1, 128>}, {pipeline_mode = #tpu.pipeline_mode<synchronous>, transform_indices = @transform_4, window_bounds = array<i64: 4, 128, 384>}, {pipeline_mode = #tpu.pipeline_mode<synchronous>, transform_indices = @transform_5, window_bounds = array<i64: 4, 1, 128>}, {pipeline_mode = #tpu.pipeline_mode<synchronous>, transform_indices = @transform_6, window_bounds = array<i64: 4, 128, 128>}, {pipeline_mode = #tpu.pipeline_mode<synchronous>, transform_indices = @transform_7, window_bounds = array<i64: 4, 1, 128>}, {pipeline_mode = #tpu.pipeline_mode<synchronous>, transform_indices = @transform_8, window_bounds = array<i64: 128, 128>}, {pipeline_mode = #tpu.pipeline_mode<synchronous>, transform_indices = @transform_9, window_bounds = array<i64: 1, 128>}, {transform_indices = @transform_10, window_bounds = array<i64: 1, 64, 128>}]} {
    %c0 = arith.constant 0 : index
    %c0_0 = arith.constant 0 : index
    %c0_1 = arith.constant 0 : index
    %0 = vector.load %arg1[%c0, %c0_0, %c0_1] : memref<1x64x128xbf16, #tpu.memory_space<vmem>>, vector<1x64x128xbf16>
    %1 = vector.shape_cast %0 : vector<1x64x128xbf16> to vector<64x128xbf16>
    %c0_2 = arith.constant 0 : index
    %c0_3 = arith.constant 0 : index
    %c0_4 = arith.constant 0 : index
    %2 = vector.load %arg2[%c0_2, %c0_3, %c0_4] : memref<1x64x1xf32, #tpu.memory_space<vmem>>, vector<1x64x1xf32>
    %3 = vector.shape_cast %2 : vector<1x64x1xf32> to vector<64x1xf32>
    %4 = vector.shape_cast %3 : vector<64x1xf32> to vector<64x1xf32>
    %5 = vector.broadcast %4 : vector<64x1xf32> to vector<64x128xf32>
    %6 = tpu.iota {dimensions = array<i32: 0>} : vector<64x128xi32>
    %c0_5 = arith.constant 0 : index
    %c0_6 = arith.constant 0 : index
    %7 = vector.load %arg3[%c0_5, %c0_6] : memref<128x128xbf16, #tpu.memory_space<vmem>>, vector<128x128xbf16>
    %cst = arith.constant dense<0.000000e+00> : vector<64x128xf32>
    %8 = tpu.matmul %1, %7, %cst {dimension_numbers = #tpu.dot_dimension_numbers<[1], [0], [0], [1], [0, 0, 1, 1], [], []>} : vector<64x128xbf16>, vector<128x128xbf16>, vector<64x128xf32> -> vector<64x128xf32>
    %c0_7 = arith.constant 0 : index
    %c0_8 = arith.constant 0 : index
    %9 = vector.load %arg4[%c0_7, %c0_8] : memref<1x128xf32, #tpu.memory_space<vmem>>, vector<1x128xf32>
    %10 = vector.broadcast %9 : vector<1x128xf32> to vector<64x128xf32>
    %11 = arith.addf %8, %10 : vector<64x128xf32>
    %12 = arith.truncf %11 : vector<64x128xf32> to vector<64x128xbf16>
    %c0_9 = arith.constant 0 : index
    %c0_10 = arith.constant 0 : index
    %c0_11 = arith.constant 0 : index
    %13 = vector.load %arg5[%c0_9, %c0_10, %c0_11] : memref<4x128x384xbf16, #tpu.memory_space<vmem>>, vector<1x128x384xbf16>
    %14 = vector.shape_cast %13 : vector<1x128x384xbf16> to vector<128x384xbf16>
    %cst_12 = arith.constant dense<0.000000e+00> : vector<64x384xf32>
    %15 = tpu.matmul %12, %14, %cst_12 {dimension_numbers = #tpu.dot_dimension_numbers<[1], [0], [0], [1], [0, 0, 1, 1], [], []>} : vector<64x128xbf16>, vector<128x384xbf16>, vector<64x384xf32> -> vector<64x384xf32>
    %16 = vector.extract_strided_slice %15 {offsets = [0, 0], sizes = [64, 128], strides = [1, 1]} : vector<64x384xf32> to vector<64x128xf32>
    %c16_i32 = arith.constant 16 : i32
    %17 = tpu.dynamic_rotate %16 by %c16_i32 dim 0 : vector<64x128xf32>, i32 -> vector<64x128xf32>
    %c16_i32_13 = arith.constant 16 : i32
    %18 = vector.broadcast %c16_i32_13 : i32 to vector<64x128xi32>
    %19 = arith.cmpi sge, %6, %18 : vector<64x128xi32>
    %cst_14 = arith.constant 0.000000e+00 : f32
    %20 = vector.broadcast %cst_14 : f32 to vector<64x128xf32>
    %21 = arith.select %19, %17, %20 : vector<64x128xi1>, vector<64x128xf32>
    %22 = vector.extract_strided_slice %15 {offsets = [0, 128], sizes = [64, 128], strides = [1, 1]} : vector<64x384xf32> to vector<64x128xf32>
    %c8_i32 = arith.constant 8 : i32
    %23 = tpu.dynamic_rotate %22 by %c8_i32 dim 0 : vector<64x128xf32>, i32 -> vector<64x128xf32>
    %c8_i32_15 = arith.constant 8 : i32
    %24 = vector.broadcast %c8_i32_15 : i32 to vector<64x128xi32>
    %25 = arith.cmpi sge, %6, %24 : vector<64x128xi32>
    %cst_16 = arith.constant 0.000000e+00 : f32
    %26 = vector.broadcast %cst_16 : f32 to vector<64x128xf32>
    %27 = arith.select %25, %23, %26 : vector<64x128xi1>, vector<64x128xf32>
    %28 = arith.addf %21, %27 : vector<64x128xf32>
    %29 = vector.extract_strided_slice %15 {offsets = [0, 256], sizes = [64, 128], strides = [1, 1]} : vector<64x384xf32> to vector<64x128xf32>
    %30 = arith.addf %28, %29 : vector<64x128xf32>
    %c0_17 = arith.constant 0 : index
    %c0_18 = arith.constant 0 : index
    %c0_19 = arith.constant 0 : index
    %31 = vector.load %arg6[%c0_17, %c0_18, %c0_19] : memref<4x1x128xf32, #tpu.memory_space<vmem>>, vector<1x1x128xf32>
    %32 = vector.shape_cast %31 : vector<1x1x128xf32> to vector<1x128xf32>
    %33 = vector.broadcast %32 : vector<1x128xf32> to vector<64x128xf32>
    %34 = arith.addf %30, %33 : vector<64x128xf32>
    %cst_20 = arith.constant 0.000000e+00 : f32
    %35 = vector.broadcast %cst_20 : f32 to vector<64x128xf32>
    %36 = arith.maximumf %34, %35 : vector<64x128xf32>
    %37 = arith.truncf %36 : vector<64x128xf32> to vector<64x128xbf16>
    %c0_21 = arith.constant 0 : index
    %c0_22 = arith.constant 0 : index
    %c0_23 = arith.constant 0 : index
    %38 = vector.load %arg7[%c0_21, %c0_22, %c0_23] : memref<4x128x128xbf16, #tpu.memory_space<vmem>>, vector<1x128x128xbf16>
    %39 = vector.shape_cast %38 : vector<1x128x128xbf16> to vector<128x128xbf16>
    %cst_24 = arith.constant dense<0.000000e+00> : vector<64x128xf32>
    %40 = tpu.matmul %37, %39, %cst_24 {dimension_numbers = #tpu.dot_dimension_numbers<[1], [0], [0], [1], [0, 0, 1, 1], [], []>} : vector<64x128xbf16>, vector<128x128xbf16>, vector<64x128xf32> -> vector<64x128xf32>
    %c0_25 = arith.constant 0 : index
    %c0_26 = arith.constant 0 : index
    %c0_27 = arith.constant 0 : index
    %41 = vector.load %arg8[%c0_25, %c0_26, %c0_27] : memref<4x1x128xf32, #tpu.memory_space<vmem>>, vector<1x1x128xf32>
    %42 = vector.shape_cast %41 : vector<1x1x128xf32> to vector<1x128xf32>
    %43 = vector.broadcast %42 : vector<1x128xf32> to vector<64x128xf32>
    %44 = arith.addf %40, %43 : vector<64x128xf32>
    %45 = arith.addf %11, %44 : vector<64x128xf32>
    %46 = arith.mulf %45, %5 : vector<64x128xf32>
    %47 = arith.truncf %46 : vector<64x128xf32> to vector<64x128xbf16>
    %c1 = arith.constant 1 : index
    %c0_28 = arith.constant 0 : index
    %c0_29 = arith.constant 0 : index
    %48 = vector.load %arg5[%c1, %c0_28, %c0_29] : memref<4x128x384xbf16, #tpu.memory_space<vmem>>, vector<1x128x384xbf16>
    %49 = vector.shape_cast %48 : vector<1x128x384xbf16> to vector<128x384xbf16>
    %cst_30 = arith.constant dense<0.000000e+00> : vector<64x384xf32>
    %50 = tpu.matmul %47, %49, %cst_30 {dimension_numbers = #tpu.dot_dimension_numbers<[1], [0], [0], [1], [0, 0, 1, 1], [], []>} : vector<64x128xbf16>, vector<128x384xbf16>, vector<64x384xf32> -> vector<64x384xf32>
    %51 = vector.extract_strided_slice %50 {offsets = [0, 0], sizes = [64, 128], strides = [1, 1]} : vector<64x384xf32> to vector<64x128xf32>
    %c8_i32_31 = arith.constant 8 : i32
    %52 = tpu.dynamic_rotate %51 by %c8_i32_31 dim 0 : vector<64x128xf32>, i32 -> vector<64x128xf32>
    %c8_i32_32 = arith.constant 8 : i32
    %53 = vector.broadcast %c8_i32_32 : i32 to vector<64x128xi32>
    %54 = arith.cmpi sge, %6, %53 : vector<64x128xi32>
    %cst_33 = arith.constant 0.000000e+00 : f32
    %55 = vector.broadcast %cst_33 : f32 to vector<64x128xf32>
    %56 = arith.select %54, %52, %55 : vector<64x128xi1>, vector<64x128xf32>
    %57 = vector.extract_strided_slice %50 {offsets = [0, 128], sizes = [64, 128], strides = [1, 1]} : vector<64x384xf32> to vector<64x128xf32>
    %c4_i32 = arith.constant 4 : i32
    %58 = tpu.dynamic_rotate %57 by %c4_i32 dim 0 : vector<64x128xf32>, i32 -> vector<64x128xf32>
    %c4_i32_34 = arith.constant 4 : i32
    %59 = vector.broadcast %c4_i32_34 : i32 to vector<64x128xi32>
    %60 = arith.cmpi sge, %6, %59 : vector<64x128xi32>
    %cst_35 = arith.constant 0.000000e+00 : f32
    %61 = vector.broadcast %cst_35 : f32 to vector<64x128xf32>
    %62 = arith.select %60, %58, %61 : vector<64x128xi1>, vector<64x128xf32>
    %63 = arith.addf %56, %62 : vector<64x128xf32>
    %64 = vector.extract_strided_slice %50 {offsets = [0, 256], sizes = [64, 128], strides = [1, 1]} : vector<64x384xf32> to vector<64x128xf32>
    %65 = arith.addf %63, %64 : vector<64x128xf32>
    %c1_36 = arith.constant 1 : index
    %c0_37 = arith.constant 0 : index
    %c0_38 = arith.constant 0 : index
    %66 = vector.load %arg6[%c1_36, %c0_37, %c0_38] : memref<4x1x128xf32, #tpu.memory_space<vmem>>, vector<1x1x128xf32>
    %67 = vector.shape_cast %66 : vector<1x1x128xf32> to vector<1x128xf32>
    %68 = vector.broadcast %67 : vector<1x128xf32> to vector<64x128xf32>
    %69 = arith.addf %65, %68 : vector<64x128xf32>
    %cst_39 = arith.constant 0.000000e+00 : f32
    %70 = vector.broadcast %cst_39 : f32 to vector<64x128xf32>
    %71 = arith.maximumf %69, %70 : vector<64x128xf32>
    %72 = arith.truncf %71 : vector<64x128xf32> to vector<64x128xbf16>
    %c1_40 = arith.constant 1 : index
    %c0_41 = arith.constant 0 : index
    %c0_42 = arith.constant 0 : index
    %73 = vector.load %arg7[%c1_40, %c0_41, %c0_42] : memref<4x128x128xbf16, #tpu.memory_space<vmem>>, vector<1x128x128xbf16>
    %74 = vector.shape_cast %73 : vector<1x128x128xbf16> to vector<128x128xbf16>
    %cst_43 = arith.constant dense<0.000000e+00> : vector<64x128xf32>
    %75 = tpu.matmul %72, %74, %cst_43 {dimension_numbers = #tpu.dot_dimension_numbers<[1], [0], [0], [1], [0, 0, 1, 1], [], []>} : vector<64x128xbf16>, vector<128x128xbf16>, vector<64x128xf32> -> vector<64x128xf32>
    %c1_44 = arith.constant 1 : index
    %c0_45 = arith.constant 0 : index
    %c0_46 = arith.constant 0 : index
    %76 = vector.load %arg8[%c1_44, %c0_45, %c0_46] : memref<4x1x128xf32, #tpu.memory_space<vmem>>, vector<1x1x128xf32>
    %77 = vector.shape_cast %76 : vector<1x1x128xf32> to vector<1x128xf32>
    %78 = vector.broadcast %77 : vector<1x128xf32> to vector<64x128xf32>
    %79 = arith.addf %75, %78 : vector<64x128xf32>
    %80 = arith.addf %46, %79 : vector<64x128xf32>
    %81 = arith.mulf %80, %5 : vector<64x128xf32>
    %82 = arith.truncf %81 : vector<64x128xf32> to vector<64x128xbf16>
    %c2 = arith.constant 2 : index
    %c0_47 = arith.constant 0 : index
    %c0_48 = arith.constant 0 : index
    %83 = vector.load %arg5[%c2, %c0_47, %c0_48] : memref<4x128x384xbf16, #tpu.memory_space<vmem>>, vector<1x128x384xbf16>
    %84 = vector.shape_cast %83 : vector<1x128x384xbf16> to vector<128x384xbf16>
    %cst_49 = arith.constant dense<0.000000e+00> : vector<64x384xf32>
    %85 = tpu.matmul %82, %84, %cst_49 {dimension_numbers = #tpu.dot_dimension_numbers<[1], [0], [0], [1], [0, 0, 1, 1], [], []>} : vector<64x128xbf16>, vector<128x384xbf16>, vector<64x384xf32> -> vector<64x384xf32>
    %86 = vector.extract_strided_slice %85 {offsets = [0, 0], sizes = [64, 128], strides = [1, 1]} : vector<64x384xf32> to vector<64x128xf32>
    %c4_i32_50 = arith.constant 4 : i32
    %87 = tpu.dynamic_rotate %86 by %c4_i32_50 dim 0 : vector<64x128xf32>, i32 -> vector<64x128xf32>
    %c4_i32_51 = arith.constant 4 : i32
    %88 = vector.broadcast %c4_i32_51 : i32 to vector<64x128xi32>
    %89 = arith.cmpi sge, %6, %88 : vector<64x128xi32>
    %cst_52 = arith.constant 0.000000e+00 : f32
    %90 = vector.broadcast %cst_52 : f32 to vector<64x128xf32>
    %91 = arith.select %89, %87, %90 : vector<64x128xi1>, vector<64x128xf32>
    %92 = vector.extract_strided_slice %85 {offsets = [0, 128], sizes = [64, 128], strides = [1, 1]} : vector<64x384xf32> to vector<64x128xf32>
    %c2_i32 = arith.constant 2 : i32
    %93 = tpu.dynamic_rotate %92 by %c2_i32 dim 0 : vector<64x128xf32>, i32 -> vector<64x128xf32>
    %c2_i32_53 = arith.constant 2 : i32
    %94 = vector.broadcast %c2_i32_53 : i32 to vector<64x128xi32>
    %95 = arith.cmpi sge, %6, %94 : vector<64x128xi32>
    %cst_54 = arith.constant 0.000000e+00 : f32
    %96 = vector.broadcast %cst_54 : f32 to vector<64x128xf32>
    %97 = arith.select %95, %93, %96 : vector<64x128xi1>, vector<64x128xf32>
    %98 = arith.addf %91, %97 : vector<64x128xf32>
    %99 = vector.extract_strided_slice %85 {offsets = [0, 256], sizes = [64, 128], strides = [1, 1]} : vector<64x384xf32> to vector<64x128xf32>
    %100 = arith.addf %98, %99 : vector<64x128xf32>
    %c2_55 = arith.constant 2 : index
    %c0_56 = arith.constant 0 : index
    %c0_57 = arith.constant 0 : index
    %101 = vector.load %arg6[%c2_55, %c0_56, %c0_57] : memref<4x1x128xf32, #tpu.memory_space<vmem>>, vector<1x1x128xf32>
    %102 = vector.shape_cast %101 : vector<1x1x128xf32> to vector<1x128xf32>
    %103 = vector.broadcast %102 : vector<1x128xf32> to vector<64x128xf32>
    %104 = arith.addf %100, %103 : vector<64x128xf32>
    %cst_58 = arith.constant 0.000000e+00 : f32
    %105 = vector.broadcast %cst_58 : f32 to vector<64x128xf32>
    %106 = arith.maximumf %104, %105 : vector<64x128xf32>
    %107 = arith.truncf %106 : vector<64x128xf32> to vector<64x128xbf16>
    %c2_59 = arith.constant 2 : index
    %c0_60 = arith.constant 0 : index
    %c0_61 = arith.constant 0 : index
    %108 = vector.load %arg7[%c2_59, %c0_60, %c0_61] : memref<4x128x128xbf16, #tpu.memory_space<vmem>>, vector<1x128x128xbf16>
    %109 = vector.shape_cast %108 : vector<1x128x128xbf16> to vector<128x128xbf16>
    %cst_62 = arith.constant dense<0.000000e+00> : vector<64x128xf32>
    %110 = tpu.matmul %107, %109, %cst_62 {dimension_numbers = #tpu.dot_dimension_numbers<[1], [0], [0], [1], [0, 0, 1, 1], [], []>} : vector<64x128xbf16>, vector<128x128xbf16>, vector<64x128xf32> -> vector<64x128xf32>
    %c2_63 = arith.constant 2 : index
    %c0_64 = arith.constant 0 : index
    %c0_65 = arith.constant 0 : index
    %111 = vector.load %arg8[%c2_63, %c0_64, %c0_65] : memref<4x1x128xf32, #tpu.memory_space<vmem>>, vector<1x1x128xf32>
    %112 = vector.shape_cast %111 : vector<1x1x128xf32> to vector<1x128xf32>
    %113 = vector.broadcast %112 : vector<1x128xf32> to vector<64x128xf32>
    %114 = arith.addf %110, %113 : vector<64x128xf32>
    %115 = arith.addf %81, %114 : vector<64x128xf32>
    %116 = arith.mulf %115, %5 : vector<64x128xf32>
    %117 = arith.truncf %116 : vector<64x128xf32> to vector<64x128xbf16>
    %c3 = arith.constant 3 : index
    %c0_66 = arith.constant 0 : index
    %c0_67 = arith.constant 0 : index
    %118 = vector.load %arg5[%c3, %c0_66, %c0_67] : memref<4x128x384xbf16, #tpu.memory_space<vmem>>, vector<1x128x384xbf16>
    %119 = vector.shape_cast %118 : vector<1x128x384xbf16> to vector<128x384xbf16>
    %cst_68 = arith.constant dense<0.000000e+00> : vector<64x384xf32>
    %120 = tpu.matmul %117, %119, %cst_68 {dimension_numbers = #tpu.dot_dimension_numbers<[1], [0], [0], [1], [0, 0, 1, 1], [], []>} : vector<64x128xbf16>, vector<128x384xbf16>, vector<64x384xf32> -> vector<64x384xf32>
    %121 = vector.extract_strided_slice %120 {offsets = [0, 0], sizes = [64, 128], strides = [1, 1]} : vector<64x384xf32> to vector<64x128xf32>
    %c2_i32_69 = arith.constant 2 : i32
    %122 = tpu.dynamic_rotate %121 by %c2_i32_69 dim 0 : vector<64x128xf32>, i32 -> vector<64x128xf32>
    %c2_i32_70 = arith.constant 2 : i32
    %123 = vector.broadcast %c2_i32_70 : i32 to vector<64x128xi32>
    %124 = arith.cmpi sge, %6, %123 : vector<64x128xi32>
    %cst_71 = arith.constant 0.000000e+00 : f32
    %125 = vector.broadcast %cst_71 : f32 to vector<64x128xf32>
    %126 = arith.select %124, %122, %125 : vector<64x128xi1>, vector<64x128xf32>
    %127 = vector.extract_strided_slice %120 {offsets = [0, 128], sizes = [64, 128], strides = [1, 1]} : vector<64x384xf32> to vector<64x128xf32>
    %c1_i32 = arith.constant 1 : i32
    %128 = tpu.dynamic_rotate %127 by %c1_i32 dim 0 : vector<64x128xf32>, i32 -> vector<64x128xf32>
    %c1_i32_72 = arith.constant 1 : i32
    %129 = vector.broadcast %c1_i32_72 : i32 to vector<64x128xi32>
    %130 = arith.cmpi sge, %6, %129 : vector<64x128xi32>
    %cst_73 = arith.constant 0.000000e+00 : f32
    %131 = vector.broadcast %cst_73 : f32 to vector<64x128xf32>
    %132 = arith.select %130, %128, %131 : vector<64x128xi1>, vector<64x128xf32>
    %133 = arith.addf %126, %132 : vector<64x128xf32>
    %134 = vector.extract_strided_slice %120 {offsets = [0, 256], sizes = [64, 128], strides = [1, 1]} : vector<64x384xf32> to vector<64x128xf32>
    %135 = arith.addf %133, %134 : vector<64x128xf32>
    %c3_74 = arith.constant 3 : index
    %c0_75 = arith.constant 0 : index
    %c0_76 = arith.constant 0 : index
    %136 = vector.load %arg6[%c3_74, %c0_75, %c0_76] : memref<4x1x128xf32, #tpu.memory_space<vmem>>, vector<1x1x128xf32>
    %137 = vector.shape_cast %136 : vector<1x1x128xf32> to vector<1x128xf32>
    %138 = vector.broadcast %137 : vector<1x128xf32> to vector<64x128xf32>
    %139 = arith.addf %135, %138 : vector<64x128xf32>
    %cst_77 = arith.constant 0.000000e+00 : f32
    %140 = vector.broadcast %cst_77 : f32 to vector<64x128xf32>
    %141 = arith.maximumf %139, %140 : vector<64x128xf32>
    %142 = arith.truncf %141 : vector<64x128xf32> to vector<64x128xbf16>
    %c3_78 = arith.constant 3 : index
    %c0_79 = arith.constant 0 : index
    %c0_80 = arith.constant 0 : index
    %143 = vector.load %arg7[%c3_78, %c0_79, %c0_80] : memref<4x128x128xbf16, #tpu.memory_space<vmem>>, vector<1x128x128xbf16>
    %144 = vector.shape_cast %143 : vector<1x128x128xbf16> to vector<128x128xbf16>
    %cst_81 = arith.constant dense<0.000000e+00> : vector<64x128xf32>
    %145 = tpu.matmul %142, %144, %cst_81 {dimension_numbers = #tpu.dot_dimension_numbers<[1], [0], [0], [1], [0, 0, 1, 1], [], []>} : vector<64x128xbf16>, vector<128x128xbf16>, vector<64x128xf32> -> vector<64x128xf32>
    %c3_82 = arith.constant 3 : index
    %c0_83 = arith.constant 0 : index
    %c0_84 = arith.constant 0 : index
    %146 = vector.load %arg8[%c3_82, %c0_83, %c0_84] : memref<4x1x128xf32, #tpu.memory_space<vmem>>, vector<1x1x128xf32>
    %147 = vector.shape_cast %146 : vector<1x1x128xf32> to vector<1x128xf32>
    %148 = vector.broadcast %147 : vector<1x128xf32> to vector<64x128xf32>
    %149 = arith.addf %145, %148 : vector<64x128xf32>
    %150 = arith.addf %116, %149 : vector<64x128xf32>
    %151 = arith.mulf %150, %5 : vector<64x128xf32>
    %152 = arith.truncf %151 : vector<64x128xf32> to vector<64x128xbf16>
    %c0_85 = arith.constant 0 : index
    %c0_86 = arith.constant 0 : index
    %153 = vector.load %arg9[%c0_85, %c0_86] : memref<128x128xbf16, #tpu.memory_space<vmem>>, vector<128x128xbf16>
    %cst_87 = arith.constant dense<0.000000e+00> : vector<64x128xf32>
    %154 = tpu.matmul %152, %153, %cst_87 {dimension_numbers = #tpu.dot_dimension_numbers<[1], [0], [0], [1], [0, 0, 1, 1], [], []>} : vector<64x128xbf16>, vector<128x128xbf16>, vector<64x128xf32> -> vector<64x128xf32>
    %c0_88 = arith.constant 0 : index
    %c0_89 = arith.constant 0 : index
    %155 = vector.load %arg10[%c0_88, %c0_89] : memref<1x128xf32, #tpu.memory_space<vmem>>, vector<1x128xf32>
    %156 = vector.broadcast %155 : vector<1x128xf32> to vector<64x128xf32>
    %157 = arith.addf %154, %156 : vector<64x128xf32>
    %158 = vector.broadcast %3 : vector<64x1xf32> to vector<64x128xf32>
    %159 = arith.mulf %157, %158 : vector<64x128xf32>
    %c0_90 = arith.constant 0 : index
    %c0_91 = arith.constant 0 : index
    %c0_92 = arith.constant 0 : index
    %160 = vector.load %arg11[%c0_90, %c0_91, %c0_92] : memref<1x64x128xf32, #tpu.memory_space<vmem>>, vector<1x64x128xf32>
    %161 = vector.shape_cast %160 : vector<1x64x128xf32> to vector<64x128xf32>
    %162 = vector.shape_cast %159 : vector<64x128xf32> to vector<1x64x128xf32>
    tpu.vector_store %arg11[%c0_90, %c0_91, %c0_92], %162 {strides = array<i32>} : memref<1x64x128xf32, #tpu.memory_space<vmem>>, vector<1x64x128xf32>,
    return
  }
  func.func @transform_0(%arg0: i32) -> (i32, i32, i32) {
    %c0_i32 = arith.constant 0 : i32
    %c0_i32_0 = arith.constant 0 : i32
    %c0_i32_1 = arith.constant 0 : i32
    return %arg0, %c0_i32, %c0_i32_0 : i32, i32, i32
  }
  func.func @transform_1(%arg0: i32) -> (i32, i32, i32) {
    %c0_i32 = arith.constant 0 : i32
    %c0_i32_0 = arith.constant 0 : i32
    %c0_i32_1 = arith.constant 0 : i32
    return %arg0, %c0_i32, %c0_i32_0 : i32, i32, i32
  }
  func.func @transform_2(%arg0: i32) -> (i32, i32) {
    %c0_i32 = arith.constant 0 : i32
    %c0_i32_0 = arith.constant 0 : i32
    %c0_i32_1 = arith.constant 0 : i32
    return %c0_i32, %c0_i32_0 : i32, i32
  }
  func.func @transform_3(%arg0: i32) -> (i32, i32) {
    %c0_i32 = arith.constant 0 : i32
    %c0_i32_0 = arith.constant 0 : i32
    %c0_i32_1 = arith.constant 0 : i32
    return %c0_i32, %c0_i32_0 : i32, i32
  }
  func.func @transform_4(%arg0: i32) -> (i32, i32, i32) {
    %c0_i32 = arith.constant 0 : i32
    %c0_i32_0 = arith.constant 0 : i32
    %c0_i32_1 = arith.constant 0 : i32
    %c0_i32_2 = arith.constant 0 : i32
    return %c0_i32, %c0_i32_0, %c0_i32_1 : i32, i32, i32
  }
  func.func @transform_5(%arg0: i32) -> (i32, i32, i32) {
    %c0_i32 = arith.constant 0 : i32
    %c0_i32_0 = arith.constant 0 : i32
    %c0_i32_1 = arith.constant 0 : i32
    %c0_i32_2 = arith.constant 0 : i32
    return %c0_i32, %c0_i32_0, %c0_i32_1 : i32, i32, i32
  }
  func.func @transform_6(%arg0: i32) -> (i32, i32, i32) {
    %c0_i32 = arith.constant 0 : i32
    %c0_i32_0 = arith.constant 0 : i32
    %c0_i32_1 = arith.constant 0 : i32
    %c0_i32_2 = arith.constant 0 : i32
    return %c0_i32, %c0_i32_0, %c0_i32_1 : i32, i32, i32
  }
  func.func @transform_7(%arg0: i32) -> (i32, i32, i32) {
    %c0_i32 = arith.constant 0 : i32
    %c0_i32_0 = arith.constant 0 : i32
    %c0_i32_1 = arith.constant 0 : i32
    %c0_i32_2 = arith.constant 0 : i32
    return %c0_i32, %c0_i32_0, %c0_i32_1 : i32, i32, i32
  }
  func.func @transform_8(%arg0: i32) -> (i32, i32) {
    %c0_i32 = arith.constant 0 : i32
    %c0_i32_0 = arith.constant 0 : i32
    %c0_i32_1 = arith.constant 0 : i32
    return %c0_i32, %c0_i32_0 : i32, i32
  }
  func.func @transform_9(%arg0: i32) -> (i32, i32) {
    %c0_i32 = arith.constant 0 : i32
    %c0_i32_0 = arith.constant 0 : i32
    %c0_i32_1 = arith.constant 0 : i32
    return %c0_i32, %c0_i32_0 : i32, i32
  }
  func.func @transform_10(%arg0: i32) -> (i32, i32, i32) {
    %c0_i32 = arith.constant 0 : i32
    %c0_i32_0 = arith.constant 0 : i32
    %c0_i32_1 = arith.constant 0 : i32
    return %arg0, %c0_i32, %c0_i32_0 : i32, i32, i32
  }
}

</mosaic_0001>

<llo_original>
// kernel: tpu_custom_call.1
$region0: #{tpu_custom_call.1}
  #allocation0 [shape = 'u32[]', space=smem, size = 0x4, offset = 0x4, fixed_abs, tag = 'smem constant byte address 0x4 - core index']
  #allocation1 [shape = 'u32[144,128]{1,0:T(1,128)}', space=vmem, size = 0x12000, scoped, tag = 'internal scratch']
  %s0 = inlined_call_operand.vmem [shape: bf16[2,64,128], index: 0, kind: input, shape index: {}]
  %s1 = inlined_call_operand.vmem [shape: f32[2,64,1], index: 1, kind: input, shape index: {}]
  %s2 = inlined_call_operand.vmem [shape: bf16[128,128], index: 2, kind: input, shape index: {}]
  %s3 = inlined_call_operand.vmem [shape: f32[1,128], index: 3, kind: input, shape index: {}]
  %s4 = inlined_call_operand.hbm [shape: bf16[4,128,384], index: 4, kind: input, shape index: {}]
  %s5 = inlined_call_operand.vmem [shape: f32[4,1,128], index: 5, kind: input, shape index: {}]
  %s6 = inlined_call_operand.hbm [shape: bf16[4,128,128], index: 6, kind: input, shape index: {}]
  %s7 = inlined_call_operand.vmem [shape: f32[4,1,128], index: 7, kind: input, shape index: {}]
  %s8 = inlined_call_operand.hbm [shape: bf16[128,128], index: 8, kind: input, shape index: {}]
  %s9 = inlined_call_operand.vmem [shape: f32[1,128], index: 9, kind: input, shape index: {}]
  %s10 = inlined_call_operand.hbm [shape: f32[2,64,128], index: 10, kind: output, shape index: {}]
  %s11 = sld [smem:[#allocation0]]
  $region85: #{tpu_custom_call.1} parent=0
    _
  %s13 = ssub.s32 1, %s11
  %s14 = scalar_select 0, %s13, %s11
  $region1: #{tpu_custom_call.1} parent=0
    #allocation2 [shape = 'u8[393216]{0}', space=vmem, size = 0x60000, scoped, tag = 'input window, operand 4, single buffered']
    #allocation3 [shape = 's32[2]{0}', space=sflag, size = 0x8, scoped, tag = 'scoped memory for tpu_custom_call.1']
    #allocation4 [shape = 's32[2]{0}', space=sflag, size = 0x8, scoped, tag = 'scoped memory for tpu_custom_call.1']
    #allocation5 [shape = 'u8[131072]{0}', space=vmem, size = 0x20000, scoped, tag = 'input window, operand 6, single buffered']
    #allocation6 [shape = 's32[1]{0}', space=sflag, size = 0x4, scoped, tag = 'scoped memory for tpu_custom_call.1']
    #allocation7 [shape = 'u8[32768]{0}', space=vmem, size = 0x8000, scoped, tag = 'input window, operand 8, single buffered']
    #allocation8 [shape = 'u8[65536]{0}', space=vmem, size = 0x10000, scoped, tag = 'output window, operand 0']
    %15 = vsyncpa [#allocation3], 0
    %16 = vsyncpa [#allocation6], 0
    %17 = vsyncpa [#allocation4], 0
    %s18 = scalar_lea.sflag [#allocation4], 1
    %19 = vsyncpa %s18, 0
    loop: start=0, step=1, limit=4
    $region2: #{tpu_custom_call.1} parent=1 // loop_pre_header
      _
    $region3: #{tpu_custom_call.1} parent=1 // loop_header
      %s21 = sphi 0, %s25
      %p22 = scmp.ge.s32.totalorder %s21, 4
      %s31 = sphi 0, %s33
      %s34 = sphi 0, %s31
      %s35 = sphi 0, %s34
      %s51 = sphi 0, %s35
      %s57 = sphi 0, %s59
      %s60 = sphi 0, %s57
      %s61 = sphi 0, %s60
      %s77 = sphi 0, %s61
      %s81 = sphi 0, %s81
      %s83 = sphi 0, %s81
      %s84 = sphi 0, %s83
      %s98 = sphi 0, %s84
      %s102 = sphi 0, %s102
      %s104 = sphi 0, %s102
      %s105 = sphi 0, %s104
      %s119 = sphi 0, %s105
      %s123 = sphi 0, %s123
      %s125 = sphi 0, %s123
      %s126 = sphi 0, %s125
      %s140 = sphi 0, %s126
      %s144 = sphi 0, %s144
      %s146 = sphi 0, %s144
      %s147 = sphi 0, %s146
      %s161 = sphi 0, %s147
      %s165 = sphi 0, %s165
      %s167 = sphi 0, %s165
      %s168 = sphi 0, %s167
      %s182 = sphi 0, %s168
      %s186 = sphi 0, %s186
      %s188 = sphi 0, %s186
      %s189 = sphi 0, %s188
      %s203 = sphi 0, %s189
      %s207 = sphi 0, %s207
      %s209 = sphi 0, %s207
      %s210 = sphi 0, %s209
      %s224 = sphi 0, %s210
      %s228 = sphi 0, %s228
      %s230 = sphi 0, %s228
      %s231 = sphi 0, %s230
      %s245 = sphi 0, %s231
      %s251 = sphi 0, %s253
      %s254 = sphi 0, %s251
      %s255 = sphi 0, %s254
      %s271 = sphi 0, %s255
    $region4: #{tpu_custom_call.1} parent=1 // loop_header_branch
      %24 = sbr.rel (%p22) target = $region8
    $region5: #{tpu_custom_call.1} parent=1 // loop_body
      %s26 = ssub.s32 %s21, 1
      %s27 = ssub.s32 %s21, 2
      %s28 = sadd.s32 %s21, 1
      %s29 = ssub.s32 %s21, %s28
      %p30 = scmp.eq.s32.totalorder %s29, 0
      %s32 = sadd.s32 %s31, 1
      %s33 = scalar_select %p30, %s31, %s32
      %p36 = pneg %p30
      %p37 = scmp.eq.s32.totalorder %s21, 1
      %p38 = por %p36, %p37
      %p39 = scmp.ne.s32.totalorder %s31, %s34
      %p40 = scmp.eq.s32.totalorder %s21, 0
      %p41 = por %p39, %p40
      %p42 = scmp.ne.s32.totalorder %s31, %s34
      %p43 = scmp.eq.s32.totalorder %s26, 1
      %p44 = por %p42, %p43
      %p45 = scmp.ne.s32.totalorder %s34, %s35
      %p46 = scmp.eq.s32.totalorder %s26, 0
      %p47 = por %p45, %p46
      %p48 = scmp.ne.s32.totalorder %s34, %s35
      %p49 = scmp.eq.s32.totalorder %s27, 1
      %p50 = por %p48, %p49
      %p52 = scmp.ne.s32.totalorder %s35, %s51
      %p53 = scmp.eq.s32.totalorder %s27, 0
      %p54 = por %p52, %p53
      %s55 = ssub.s32 %s21, %s28
      %p56 = scmp.eq.s32.totalorder %s55, 0
      %s58 = sadd.s32 %s57, 1
      %s59 = scalar_select %p56, %s57, %s58
      %p62 = pneg %p56
      %p63 = scmp.eq.s32.totalorder %s21, 1
      %p64 = por %p62, %p63
      %p65 = scmp.ne.s32.totalorder %s57, %s60
      %p66 = scmp.eq.s32.totalorder %s21, 0
      %p67 = por %p65, %p66
      %p68 = scmp.ne.s32.totalorder %s57, %s60
      %p69 = scmp.eq.s32.totalorder %s26, 1
      %p70 = por %p68, %p69
      %p71 = scmp.ne.s32.totalorder %s60, %s61
      %p72 = scmp.eq.s32.totalorder %s26, 0
      %p73 = por %p71, %p72
      %p74 = scmp.ne.s32.totalorder %s60, %s61
      %p75 = scmp.eq.s32.totalorder %s27, 1
      %p76 = por %p74, %p75
      %p78 = scmp.ne.s32.totalorder %s61, %s77
      %p79 = scmp.eq.s32.totalorder %s27, 0
      %p80 = por %p78, %p79
      %s82 = sadd.s32 %s81, 1
      %p85 = scmp.eq.s32.totalorder %s21, 1
      %p86 = scmp.ne.s32.totalorder %s81, %s83
      %p87 = scmp.eq.s32.totalorder %s21, 0
      %p88 = por %p86, %p87
      %p89 = scmp.ne.s32.totalorder %s81, %s83
      %p90 = scmp.eq.s32.totalorder %s26, 1
      %p91 = por %p89, %p90
      %p92 = scmp.ne.s32.totalorder %s83, %s84
      %p93 = scmp.eq.s32.totalorder %s26, 0
      %p94 = por %p92, %p93
      %p95 = scmp.ne.s32.totalorder %s83, %s84
      %p96 = scmp.eq.s32.totalorder %s27, 1
      %p97 = por %p95, %p96
      %p99 = scmp.ne.s32.totalorder %s84, %s98
      %p100 = scmp.eq.s32.totalorder %s27, 0
      %p101 = por %p99, %p100
      %s103 = sadd.s32 %s102, 1
      %p106 = scmp.eq.s32.totalorder %s21, 1
      %p107 = scmp.ne.s32.totalorder %s102, %s104
      %p108 = scmp.eq.s32.totalorder %s21, 0
      %p109 = por %p107, %p108
      %p110 = scmp.ne.s32.totalorder %s102, %s104
      %p111 = scmp.eq.s32.totalorder %s26, 1
      %p112 = por %p110, %p111
      %p113 = scmp.ne.s32.totalorder %s104, %s105
      %p114 = scmp.eq.s32.totalorder %s26, 0
      %p115 = por %p113, %p114
      %p116 = scmp.ne.s32.totalorder %s104, %s105
      %p117 = scmp.eq.s32.totalorder %s27, 1
      %p118 = por %p116, %p117
      %p120 = scmp.ne.s32.totalorder %s105, %s119
      %p121 = scmp.eq.s32.totalorder %s27, 0
      %p122 = por %p120, %p121
      %s124 = sadd.s32 %s123, 1
      %p127 = scmp.eq.s32.totalorder %s21, 1
      %p128 = scmp.ne.s32.totalorder %s123, %s125
      %p129 = scmp.eq.s32.totalorder %s21, 0
      %p130 = por %p128, %p129
      %p131 = scmp.ne.s32.totalorder %s123, %s125
      %p132 = scmp.eq.s32.totalorder %s26, 1
      %p133 = por %p131, %p132
      %p134 = scmp.ne.s32.totalorder %s125, %s126
      %p135 = scmp.eq.s32.totalorder %s26, 0
      %p136 = por %p134, %p135
      %p137 = scmp.ne.s32.totalorder %s125, %s126
      %p138 = scmp.eq.s32.totalorder %s27, 1
      %p139 = por %p137, %p138
      %p141 = scmp.ne.s32.totalorder %s126, %s140
      %p142 = scmp.eq.s32.totalorder %s27, 0
      %p143 = por %p141, %p142
      %s145 = sadd.s32 %s144, 1
      %p148 = scmp.eq.s32.totalorder %s21, 1
      %p149 = scmp.ne.s32.totalorder %s144, %s146
      %p150 = scmp.eq.s32.totalorder %s21, 0
      %p151 = por %p149, %p150
      %p152 = scmp.ne.s32.totalorder %s144, %s146
      %p153 = scmp.eq.s32.totalorder %s26, 1
      %p154 = por %p152, %p153
      %p155 = scmp.ne.s32.totalorder %s146, %s147
      %p156 = scmp.eq.s32.totalorder %s26, 0
      %p157 = por %p155, %p156
      %p158 = scmp.ne.s32.totalorder %s146, %s147
      %p159 = scmp.eq.s32.totalorder %s27, 1
      %p160 = por %p158, %p159
      %p162 = scmp.ne.s32.totalorder %s147, %s161
      %p163 = scmp.eq.s32.totalorder %s27, 0
      %p164 = por %p162, %p163
      %s166 = sadd.s32 %s165, 1
      %p169 = scmp.eq.s32.totalorder %s21, 1
      %p170 = scmp.ne.s32.totalorder %s165, %s167
      %p171 = scmp.eq.s32.totalorder %s21, 0
      %p172 = por %p170, %p171
      %p173 = scmp.ne.s32.totalorder %s165, %s167
      %p174 = scmp.eq.s32.totalorder %s26, 1
      %p175 = por %p173, %p174
      %p176 = scmp.ne.s32.totalorder %s167, %s168
      %p177 = scmp.eq.s32.totalorder %s26, 0
      %p178 = por %p176, %p177
      %p179 = scmp.ne.s32.totalorder %s167, %s168
      %p180 = scmp.eq.s32.totalorder %s27, 1
      %p181 = por %p179, %p180
      %p183 = scmp.ne.s32.totalorder %s168, %s182
      %p184 = scmp.eq.s32.totalorder %s27, 0
      %p185 = por %p183, %p184
      %s187 = sadd.s32 %s186, 1
      %p190 = scmp.eq.s32.totalorder %s21, 1
      %p191 = scmp.ne.s32.totalorder %s186, %s188
      %p192 = scmp.eq.s32.totalorder %s21, 0
      %p193 = por %p191, %p192
      %p194 = scmp.ne.s32.totalorder %s186, %s188
      %p195 = scmp.eq.s32.totalorder %s26, 1
      %p196 = por %p194, %p195
      %p197 = scmp.ne.s32.totalorder %s188, %s189
      %p198 = scmp.eq.s32.totalorder %s26, 0
      %p199 = por %p197, %p198
      %p200 = scmp.ne.s32.totalorder %s188, %s189
      %p201 = scmp.eq.s32.totalorder %s27, 1
      %p202 = por %p200, %p201
      %p204 = scmp.ne.s32.totalorder %s189, %s203
      %p205 = scmp.eq.s32.totalorder %s27, 0
      %p206 = por %p204, %p205
      %s208 = sadd.s32 %s207, 1
      %p211 = scmp.eq.s32.totalorder %s21, 1
      %p212 = scmp.ne.s32.totalorder %s207, %s209
      %p213 = scmp.eq.s32.totalorder %s21, 0
      %p214 = por %p212, %p213
      %p215 = scmp.ne.s32.totalorder %s207, %s209
      %p216 = scmp.eq.s32.totalorder %s26, 1
      %p217 = por %p215, %p216
      %p218 = scmp.ne.s32.totalorder %s209, %s210
      %p219 = scmp.eq.s32.totalorder %s26, 0
      %p220 = por %p218, %p219
      %p221 = scmp.ne.s32.totalorder %s209, %s210
      %p222 = scmp.eq.s32.totalorder %s27, 1
      %p223 = por %p221, %p222
      %p225 = scmp.ne.s32.totalorder %s210, %s224
      %p226 = scmp.eq.s32.totalorder %s27, 0
      %p227 = por %p225, %p226
      %s229 = sadd.s32 %s228, 1
      %p232 = scmp.eq.s32.totalorder %s21, 1
      %p233 = scmp.ne.s32.totalorder %s228, %s230
      %p234 = scmp.eq.s32.totalorder %s21, 0
      %p235 = por %p233, %p234
      %p236 = scmp.ne.s32.totalorder %s228, %s230
      %p237 = scmp.eq.s32.totalorder %s26, 1
      %p238 = por %p236, %p237
      %p239 = scmp.ne.s32.totalorder %s230, %s231
      %p240 = scmp.eq.s32.totalorder %s26, 0
      %p241 = por %p239, %p240
      %p242 = scmp.ne.s32.totalorder %s230, %s231
      %p243 = scmp.eq.s32.totalorder %s27, 1
      %p244 = por %p242, %p243
      %p246 = scmp.ne.s32.totalorder %s231, %s245
      %p247 = scmp.eq.s32.totalorder %s27, 0
      %p248 = por %p246, %p247
      %s249 = ssub.s32 %s21, %s28
      %p250 = scmp.eq.s32.totalorder %s249, 0
      %s252 = sadd.s32 %s251, 1
      %s253 = scalar_select %p250, %s251, %s252
      %p256 = pneg %p250
      %p257 = scmp.eq.s32.totalorder %s21, 1
      %p258 = por %p256, %p257
      %p259 = scmp.ne.s32.totalorder %s251, %s254
      %p260 = scmp.eq.s32.totalorder %s21, 0
      %p261 = por %p259, %p260
      %p262 = scmp.ne.s32.totalorder %s251, %s254
      %p263 = scmp.eq.s32.totalorder %s26, 1
      %p264 = por %p262, %p263
      %p265 = scmp.ne.s32.totalorder %s254, %s255
      %p266 = scmp.eq.s32.totalorder %s26, 0
      %p267 = por %p265, %p266
      %p268 = scmp.ne.s32.totalorder %s254, %s255
      %p269 = scmp.eq.s32.totalorder %s27, 1
      %p270 = por %p268, %p269
      %p272 = scmp.ne.s32.totalorder %s255, %s271
      %p273 = scmp.eq.s32.totalorder %s27, 0
      %p274 = por %p272, %p273
      %p275 = scmp.le.s32.totalorder 1, %s21
      %p276 = scmp.lt.s32.totalorder %s21, 3
      %p277 = pnand %p275, %p276
      %p278 = pneg %p277
      // Predicated region
      $region9: #{tpu_custom_call.1} parent=5 // pred_check
        _
      $region10: #{tpu_custom_call.1} parent=5 // pred_check_branch
        %280 = sbr.rel (%p277) target = $region12
      $region11: #{tpu_custom_call.1} parent=5 // pred_region
        %s281 = ssub.s32 %s21, 1
        // Predicated region
        $region13: #{tpu_custom_call.1} parent=11 // pred_check
          %p282 = pneg %p94
        $region14: #{tpu_custom_call.1} parent=11 // pred_check_branch
          %284 = sbr.rel (%p282) target = $region16
        $region15: #{tpu_custom_call.1} parent=11 // pred_region
          _
        $region16: #{tpu_custom_call.1} parent=11 // pred_fallthru
          _
        // Predicated region
        $region17: #{tpu_custom_call.1} parent=11 // pred_check
          %p285 = pneg %p115
        $region18: #{tpu_custom_call.1} parent=11 // pred_check_branch
          %287 = sbr.rel (%p285) target = $region20
        $region19: #{tpu_custom_call.1} parent=11 // pred_region
          _
        $region20: #{tpu_custom_call.1} parent=11 // pred_fallthru
          _
        // Predicated region
        $region21: #{tpu_custom_call.1} parent=11 // pred_check
          %p288 = pneg %p136
        $region22: #{tpu_custom_call.1} parent=11 // pred_check_branch
          %290 = sbr.rel (%p288) target = $region24
        $region23: #{tpu_custom_call.1} parent=11 // pred_region
          %s292 = ssub.s32 12288, 12288
          %293 = vsyncadd [#allocation3], %s292
          %s294 = sshll.u32 [#allocation2], 4
          %s295 = int_to_ptr.vmem [resolvable:$true] %s294
          %300 = dma.hbm_to_vmem [thread:$0]  %s4, 12288, %s295, [#allocation3], 192, 192, 12
        $region24: #{tpu_custom_call.1} parent=11 // pred_fallthru
          _
        // Predicated region
        $region25: #{tpu_custom_call.1} parent=11 // pred_check
          %p301 = pneg %p157
        $region26: #{tpu_custom_call.1} parent=11 // pred_check_branch
          %303 = sbr.rel (%p301) target = $region28
        $region27: #{tpu_custom_call.1} parent=11 // pred_region
          _
        $region28: #{tpu_custom_call.1} parent=11 // pred_fallthru
          _
        // Predicated region
        $region29: #{tpu_custom_call.1} parent=11 // pred_check
          %p304 = pneg %p178
        $region30: #{tpu_custom_call.1} parent=11 // pred_check_branch
          %306 = sbr.rel (%p304) target = $region32
        $region31: #{tpu_custom_call.1} parent=11 // pred_region
          %s308 = ssub.s32 4096, 4096
          %309 = vsyncadd [#allocation6], %s308
          %s310 = sshll.u32 [#allocation5], 4
          %s311 = int_to_ptr.vmem [resolvable:$true] %s310
          %316 = dma.hbm_to_vmem [thread:$0]  %s6, 4096, %s311, [#allocation6], 64, 64, 4
        $region32: #{tpu_custom_call.1} parent=11 // pred_fallthru
          _
        // Predicated region
        $region33: #{tpu_custom_call.1} parent=11 // pred_check
          %p317 = pneg %p199
        $region34: #{tpu_custom_call.1} parent=11 // pred_check_branch
          %319 = sbr.rel (%p317) target = $region36
        $region35: #{tpu_custom_call.1} parent=11 // pred_region
          _
        $region36: #{tpu_custom_call.1} parent=11 // pred_fallthru
          _
        // Predicated region
        $region37: #{tpu_custom_call.1} parent=11 // pred_check
          %p320 = pneg %p220
        $region38: #{tpu_custom_call.1} parent=11 // pred_check_branch
          %322 = sbr.rel (%p320) target = $region40
        $region39: #{tpu_custom_call.1} parent=11 // pred_region
          %s324 = ssub.s32 1024, 1024
          %325 = vsyncadd [#allocation6], %s324
          %s326 = sshll.u32 [#allocation7], 4
          %s327 = int_to_ptr.vmem [resolvable:$true] %s326
          %332 = dma.hbm_to_vmem [thread:$0]  %s8, 1024, %s327, [#allocation6], 64, 64, 4
        $region40: #{tpu_custom_call.1} parent=11 // pred_fallthru
          _
        // Predicated region
        $region41: #{tpu_custom_call.1} parent=11 // pred_check
          %p333 = pneg %p241
        $region42: #{tpu_custom_call.1} parent=11 // pred_check_branch
          %335 = sbr.rel (%p333) target = $region44
        $region43: #{tpu_custom_call.1} parent=11 // pred_region
          _
        $region44: #{tpu_custom_call.1} parent=11 // pred_fallthru
          _
      $region12: #{tpu_custom_call.1} parent=5 // pred_fallthru
        _
      %p336 = scmp.lt.s32.totalorder %s21, 2
      // Predicated region
      $region45: #{tpu_custom_call.1} parent=5 // pred_check
        %p337 = pneg %p336
      $region46: #{tpu_custom_call.1} parent=5 // pred_check_branch
        %339 = sbr.rel (%p337) target = $region48
      $region47: #{tpu_custom_call.1} parent=5 // pred_region
        // Predicated region
        $region49: #{tpu_custom_call.1} parent=47 // pred_check
          %p340 = pneg %p41
        $region50: #{tpu_custom_call.1} parent=47 // pred_check_branch
          %342 = sbr.rel (%p340) target = $region52
        $region51: #{tpu_custom_call.1} parent=47 // pred_region
          %p343 = scmp.lt.s32.totalorder %s21, 1
          %s344 = scalar_select %p343, %s21, 1
          %s345 = smul.addr %s344, 8
          %s346 = smul.addr %s345, 4
          %s347 = scalar_lea.vmem %s0, %s346
        $region52: #{tpu_custom_call.1} parent=47 // pred_fallthru
          _
        // Predicated region
        $region53: #{tpu_custom_call.1} parent=47 // pred_check
          %p348 = pneg %p67
        $region54: #{tpu_custom_call.1} parent=47 // pred_check_branch
          %350 = sbr.rel (%p348) target = $region56
        $region55: #{tpu_custom_call.1} parent=47 // pred_region
          %p351 = scmp.lt.s32.totalorder %s21, 1
          %s352 = scalar_select %p351, %s21, 1
          %s353 = smul.addr %s352, 8
          %s354 = smul.addr %s353, 8
          %s355 = scalar_lea.vmem %s1, %s354
        $region56: #{tpu_custom_call.1} parent=47 // pred_fallthru
          _
      $region48: #{tpu_custom_call.1} parent=5 // pred_fallthru
        _
      %p356 = scmp.le.s32.totalorder 1, %s21
      %p357 = scmp.lt.s32.totalorder %s21, 3
      %p358 = pnand %p356, %p357
      %p359 = pneg %p358
      // Predicated region
      $region57: #{tpu_custom_call.1} parent=5 // pred_check
        _
      $region58: #{tpu_custom_call.1} parent=5 // pred_check_branch
        %361 = sbr.rel (%p358) target = $region60
      $region59: #{tpu_custom_call.1} parent=5 // pred_region
        %s362 = ssub.s32 %s21, 1
        // Predicated region
        $region61: #{tpu_custom_call.1} parent=59 // pred_check
          %p363 = pneg %p136
        $region62: #{tpu_custom_call.1} parent=59 // pred_check_branch
          %365 = sbr.rel (%p363) target = $region64
        $region63: #{tpu_custom_call.1} parent=59 // pred_region
          %366 = dma.done [#allocation3], 12288
        $region64: #{tpu_custom_call.1} parent=59 // pred_fallthru
          _
        // Predicated region
        $region65: #{tpu_custom_call.1} parent=59 // pred_check
          %p367 = pneg %p178
        $region66: #{tpu_custom_call.1} parent=59 // pred_check_branch
          %369 = sbr.rel (%p367) target = $region68
        $region67: #{tpu_custom_call.1} parent=59 // pred_region
          %370 = dma.done [#allocation6], 4096
        $region68: #{tpu_custom_call.1} parent=59 // pred_fallthru
          _
        // Predicated region
        $region69: #{tpu_custom_call.1} parent=59 // pred_check
          %p371 = pneg %p220
        $region70: #{tpu_custom_call.1} parent=59 // pred_check_branch
          %373 = sbr.rel (%p371) target = $region72
        $region71: #{tpu_custom_call.1} parent=59 // pred_region
          %374 = dma.done [#allocation6], 1024
        $region72: #{tpu_custom_call.1} parent=59 // pred_fallthru
          _
        %p375 = scmp.lt.s32.totalorder %s26, 1
        %s376 = scalar_select %p375, %s26, 1
        %s377 = smul.addr %s376, 8
        %s378 = smul.addr %s377, 4
        %s379 = scalar_lea.vmem %s0, %s378
        %p380 = pneg %p47
        %p381 = pneg %p44
        %p382 = scmp.lt.s32.totalorder %s26, 1
        %s383 = scalar_select %p382, %s26, 1
        %s384 = smul.addr %s383, 8
        %s385 = smul.addr %s384, 8
        %s386 = scalar_lea.vmem %s1, %s385
        %p387 = pneg %p73
        %p388 = pneg %p70
        %p389 = pneg %p94
        %p390 = pneg %p91
        %p391 = pneg %p115
        %p392 = pneg %p112
        %p393 = pneg %p136
        %p394 = pneg %p133
        %p395 = pneg %p157
        %p396 = pneg %p154
        %p397 = pneg %p178
        %p398 = pneg %p175
        %p399 = pneg %p199
        %p400 = pneg %p196
        %p401 = pneg %p220
        %p402 = pneg %p217
        %p403 = pneg %p241
        %p404 = pneg %p238
        %p405 = pneg %p267
        %p406 = pneg %p264
        %s407 = sand.u32 %s254, 1
        %s408 = scalar_lea.sflag [#allocation4], %s407
        %s409 = sand.u32 %s254, 1
        %s410 = smul.addr %s409, 64
        %s411 = scalar_lea.vmem [#allocation8], %s410
        %p412 = scmp.lt.s32.totalorder %s26, 1
        %s413 = scalar_select %p412, %s26, 1
        %s414 = smul.addr %s413, 8
        %s415 = smul.addr %s414, 4
        %s416 = scalar_lea.vmem %s0, %s415
        %p417 = scmp.lt.s32.totalorder %s26, 1
        %s418 = scalar_select %p417, %s26, 1
        %s419 = smul.addr %s418, 8
        %s420 = smul.addr %s419, 8
        %s421 = scalar_lea.vmem %s1, %s420
        %v423 = vld [vmem:[%s416] sm:$0xf]
        %v424 = vld [vmem:[%s416 + $0x4] sm:$0xf]
        %v425 = vld [vmem:[%s416 + $0x8] sm:$0xf]
        %v426 = vld [vmem:[%s416 + $0xc] sm:$0xf]
        %v427 = vld [vmem:[%s416 + $0x10] sm:$0xf]
        %v428 = vld [vmem:[%s416 + $0x14] sm:$0xf]
        %v429 = vld [vmem:[%s416 + $0x18] sm:$0xf]
        %v430 = vld [vmem:[%s416 + $0x1c] sm:$0xf]
        %v431 = vld [vmem:[%s421] sm:$0xff]
        %v432 = vld [vmem:[%s421 + $0x8] sm:$0xff]
        %v433 = vld [vmem:[%s421 + $0x10] sm:$0xff]
        %v434 = vld [vmem:[%s421 + $0x18] sm:$0xff]
        %v435 = vld [vmem:[%s421 + $0x20] sm:$0xff]
        %v436 = vld [vmem:[%s421 + $0x28] sm:$0xff]
        %v437 = vld [vmem:[%s421 + $0x30] sm:$0xff]
        %v438 = vld [vmem:[%s421 + $0x38] sm:$0xff]
        %440 = vset.pattern.permute.xlu0 0
        %441 = vperm.xlu0 %440, %v431
        %v442 = vpop.permute.xlu0 %441
        %445 = vset.pattern.permute.xlu0 0
        %446 = vperm.xlu0 %445, %v432
        %v447 = vpop.permute.xlu0 %446
        %450 = vset.pattern.permute.xlu0 0
        %451 = vperm.xlu0 %450, %v433
        %v452 = vpop.permute.xlu0 %451
        %455 = vset.pattern.permute.xlu0 0
        %456 = vperm.xlu0 %455, %v434
        %v457 = vpop.permute.xlu0 %456
        %460 = vset.pattern.permute.xlu0 0
        %461 = vperm.xlu0 %460, %v435
        %v462 = vpop.permute.xlu0 %461
        %465 = vset.pattern.permute.xlu0 0
        %466 = vperm.xlu0 %465, %v436
        %v467 = vpop.permute.xlu0 %466
        %470 = vset.pattern.permute.xlu0 0
        %471 = vperm.xlu0 %470, %v437
        %v472 = vpop.permute.xlu0 %471
        %475 = vset.pattern.permute.xlu0 0
        %476 = vperm.xlu0 %475, %v438
        %v477 = vpop.permute.xlu0 %476
        %v479 = vlaneseq
        %v480 = vshrl.u32 %v479, 7
        %v481 = vadd.s32 %v480, 8
        %v482 = vadd.s32 %v480, 16
        %v483 = vadd.s32 %v480, 24
        %v484 = vadd.s32 %v480, 32
        %v485 = vadd.s32 %v480, 40
        %v486 = vadd.s32 %v480, 48
        %v487 = vadd.s32 %v480, 56
        %v488 = vld [vmem:[%s2] sm:$0xf]
        %v489 = vld [vmem:[%s2 + $0x4] sm:$0xf]
        %v490 = vld [vmem:[%s2 + $0x8] sm:$0xf]
        %v491 = vld [vmem:[%s2 + $0xc] sm:$0xf]
        %v492 = vld [vmem:[%s2 + $0x10] sm:$0xf]
        %v493 = vld [vmem:[%s2 + $0x14] sm:$0xf]
        %v494 = vld [vmem:[%s2 + $0x18] sm:$0xf]
        %v495 = vld [vmem:[%s2 + $0x1c] sm:$0xf]
        %v496 = vld [vmem:[%s2 + $0x20] sm:$0xf]
        %v497 = vld [vmem:[%s2 + $0x24] sm:$0xf]
        %v498 = vld [vmem:[%s2 + $0x28] sm:$0xf]
        %v499 = vld [vmem:[%s2 + $0x2c] sm:$0xf]
        %v500 = vld [vmem:[%s2 + $0x30] sm:$0xf]
        %v501 = vld [vmem:[%s2 + $0x34] sm:$0xf]
        %v502 = vld [vmem:[%s2 + $0x38] sm:$0xf]
        %v503 = vld [vmem:[%s2 + $0x3c] sm:$0xf]
        %v504 = vld [vmem:[%s3] sm:$0x1]
        %v506 = vlaneseq
        %v507 = vshrl.u32 %v506, 7
        %v508 = vsub.s32 0, %v507
        %v509 = vrot.slane %v504, %v508
        %v519 = vunpack.c.l.b16 %v423
        %v520 = vunpack.c.l.b16 %v424
        %v521 = vunpack.c.l.b16 %v425
        %v522 = vunpack.c.l.b16 %v426
        %v523 = vunpack.c.l.b16 %v427
        %v524 = vunpack.c.l.b16 %v428
        %v525 = vunpack.c.l.b16 %v429
        %v526 = vunpack.c.l.b16 %v430
        %v527 = vpack.c.b16 %v520, %v519
        %v528 = vpack.c.b16 %v522, %v521
        %v529 = vpack.c.b16 %v524, %v523
        %v530 = vpack.c.b16 %v526, %v525
        %v551 = vunpack.c.l.b16 %v488
        %v552 = vunpack.c.l.b16 %v489
        %v553 = vunpack.c.l.b16 %v490
        %v554 = vunpack.c.l.b16 %v491
        %v555 = vunpack.c.l.b16 %v492
        %v556 = vunpack.c.l.b16 %v493
        %v557 = vunpack.c.l.b16 %v494
        %v558 = vunpack.c.l.b16 %v495
        %v559 = vunpack.c.l.b16 %v496
        %v560 = vunpack.c.l.b16 %v497
        %v561 = vunpack.c.l.b16 %v498
        %v562 = vunpack.c.l.b16 %v499
        %v563 = vunpack.c.l.b16 %v500
        %v564 = vunpack.c.l.b16 %v501
        %v565 = vunpack.c.l.b16 %v502
        %v566 = vunpack.c.l.b16 %v503
        %v567 = vpack.c.b16 %v552, %v551
        %v568 = vpack.c.b16 %v554, %v553
        %v569 = vpack.c.b16 %v556, %v555
        %v570 = vpack.c.b16 %v558, %v557
        %v571 = vpack.c.b16 %v560, %v559
        %v572 = vpack.c.b16 %v562, %v561
        %v573 = vpack.c.b16 %v564, %v563
        %v574 = vpack.c.b16 %v566, %v565
        %583 = vmatprep.subr.bf16.mxu0 0
        %584 = vmatpush1.bf16.msra.mxu0 %v567
        %585 = vmatprep.subr.bf16.mxu0 0
        %586 = vmatpush1.bf16.msra.mxu0 %v568
        %587 = vmatprep.subr.bf16.mxu0 0
        %588 = vmatpush1.bf16.msra.mxu0 %v569
        %589 = vmatprep.subr.bf16.mxu0 0
        %590 = vmatpush1.bf16.msra.mxu0 %v570
        %591 = vmatprep.subr.bf16.mxu0 0
        %592 = vmatpush1.bf16.msra.mxu0 %v571
        %593 = vmatprep.subr.bf16.mxu0 0
        %594 = vmatpush1.bf16.msra.mxu0 %v572
        %595 = vmatprep.subr.bf16.mxu0 0
        %596 = vmatpush1.bf16.msra.mxu0 %v573
        %597 = vmatprep.subr.bf16.mxu0 0
        %598 = vmatpush1.bf16.msra.mxu0 %v574
        %599 = vmatprep.subr.bf16.mxu0 0
        %600 = vmatpush1.bf16.msra.mxu0 0
        %601 = vmatprep.subr.bf16.mxu0 0
        %602 = vmatpush1.bf16.msra.mxu0 0
        %603 = vmatprep.subr.bf16.mxu0 0
        %604 = vmatpush1.bf16.msra.mxu0 0
        %605 = vmatprep.subr.bf16.mxu0 0
        %606 = vmatpush1.bf16.msra.mxu0 0
        %607 = vmatprep.subr.bf16.mxu0 0
        %608 = vmatpush1.bf16.msra.mxu0 0
        %609 = vmatprep.subr.bf16.mxu0 0
        %610 = vmatpush1.bf16.msra.mxu0 0
        %611 = vmatprep.subr.bf16.mxu0 0
        %612 = vmatpush1.bf16.msra.mxu0 0
        %613 = vmatprep.subr.bf16.mxu0 0
        %614 = vmatpush1.bf16.msra.mxu0 0
        %615 = vmatprep.mubr.bf16.mxu0 0
        %616 = vmatmul.mubr.bf16.gmra.mrb[0].mxu0 %v527
        %v617 = vpop.f32.mrb[0].mxu0
        %v618 = vadd.f32 %v509, %v617
        %v619 = vpop.f32.mrb[0].mxu0
        %v620 = vpop.f32.mrb[0].mxu0
        %v621 = vadd.f32 %v509, %v620
        %v622 = vpop.f32.mrb[0].mxu0
        %623 = vmatprep.mubr.bf16.mxu0 0
        %624 = vmatmul.mubr.bf16.gmra.mrb[0].mxu0 %v528
        %v625 = vpop.f32.mrb[0].mxu0
        %v626 = vadd.f32 %v509, %v625
        %v627 = vpop.f32.mrb[0].mxu0
        %v628 = vpop.f32.mrb[0].mxu0
        %v629 = vadd.f32 %v509, %v628
        %v630 = vpop.f32.mrb[0].mxu0
        %631 = vmatprep.mubr.bf16.mxu0 0
        %632 = vmatmul.mubr.bf16.gmra.mrb[0].mxu0 %v529
        %v633 = vpop.f32.mrb[0].mxu0
        %v634 = vadd.f32 %v509, %v633
        %v635 = vpop.f32.mrb[0].mxu0
        %v636 = vpop.f32.mrb[0].mxu0
        %v637 = vadd.f32 %v509, %v636
        %v638 = vpop.f32.mrb[0].mxu0
        %639 = vmatprep.mubr.bf16.mxu0 0
        %640 = vmatmul.mubr.bf16.gmra.mrb[0].mxu0 %v530
        %v641 = vpop.f32.mrb[0].mxu0
        %v642 = vadd.f32 %v509, %v641
        %v643 = vpop.f32.mrb[0].mxu0
        %v644 = vpop.f32.mrb[0].mxu0
        %v645 = vadd.f32 %v509, %v644
        %v646 = vpop.f32.mrb[0].mxu0
        %647 = vdwg.mxu0
        %v648 = vpack.c.bf16 %v621, %v618
        %v649 = vpack.c.bf16 %v629, %v626
        %v650 = vpack.c.bf16 %v637, %v634
        %v651 = vpack.c.bf16 %v645, %v642
        %v652 = vld [vmem:[#allocation2] sm:$0xff]
        %v653 = vld [vmem:[#allocation2 + $0x8] sm:$0xf]
        %v654 = vld [vmem:[#allocation2 + $0xc] sm:$0xff]
        %v655 = vld [vmem:[#allocation2 + $0x14] sm:$0xf]
        %v656 = vld [vmem:[#allocation2 + $0x18] sm:$0xff]
        %v657 = vld [vmem:[#allocation2 + $0x20] sm:$0xf]
        %v658 = vld [vmem:[#allocation2 + $0x24] sm:$0xff]
        %v659 = vld [vmem:[#allocation2 + $0x2c] sm:$0xf]
        %v660 = vld [vmem:[#allocation2 + $0x30] sm:$0xff]
        %v661 = vld [vmem:[#allocation2 + $0x38] sm:$0xf]
        %v662 = vld [vmem:[#allocation2 + $0x3c] sm:$0xff]
        %v663 = vld [vmem:[#allocation2 + $0x44] sm:$0xf]
        %v664 = vld [vmem:[#allocation2 + $0x48] sm:$0xff]
        %v665 = vld [vmem:[#allocation2 + $0x50] sm:$0xf]
        %v666 = vld [vmem:[#allocation2 + $0x54] sm:$0xff]
        %v667 = vld [vmem:[#allocation2 + $0x5c] sm:$0xf]
        %v668 = vld [vmem:[#allocation2 + $0x60] sm:$0xff]
        %v669 = vld [vmem:[#allocation2 + $0x68] sm:$0xf]
        %v670 = vld [vmem:[#allocation2 + $0x6c] sm:$0xff]
        %v671 = vld [vmem:[#allocation2 + $0x74] sm:$0xf]
        %v672 = vld [vmem:[#allocation2 + $0x78] sm:$0xff]
        %v673 = vld [vmem:[#allocation2 + $0x80] sm:$0xf]
        %v674 = vld [vmem:[#allocation2 + $0x84] sm:$0xff]
        %v675 = vld [vmem:[#allocation2 + $0x8c] sm:$0xf]
        %v676 = vld [vmem:[#allocation2 + $0x90] sm:$0xff]
        %v677 = vld [vmem:[#allocation2 + $0x98] sm:$0xf]
        %v678 = vld [vmem:[#allocation2 + $0x9c] sm:$0xff]
        %v679 = vld [vmem:[#allocation2 + $0xa4] sm:$0xf]
        %v680 = vld [vmem:[#allocation2 + $0xa8] sm:$0xff]
        %v681 = vld [vmem:[#allocation2 + $0xb0] sm:$0xf]
        %v682 = vld [vmem:[#allocation2 + $0xb4] sm:$0xff]
        %v683 = vld [vmem:[#allocation2 + $0xbc] sm:$0xf]
        %v716 = vunpack.c.l.b16 %v652
        %v717 = vunpack.c.h.b16 %v652
        %v718 = vunpack.c.l.b16 %v653
        %v719 = vunpack.c.l.b16 %v654
        %v720 = vunpack.c.h.b16 %v654
        %v721 = vunpack.c.l.b16 %v655
        %v722 = vunpack.c.l.b16 %v656
        %v723 = vunpack.c.h.b16 %v656
        %v724 = vunpack.c.l.b16 %v657
        %v725 = vunpack.c.l.b16 %v658
        %v726 = vunpack.c.h.b16 %v658
        %v727 = vunpack.c.l.b16 %v659
        %v728 = vunpack.c.l.b16 %v660
        %v729 = vunpack.c.h.b16 %v660
        %v730 = vunpack.c.l.b16 %v661
        %v731 = vunpack.c.l.b16 %v662
        %v732 = vunpack.c.h.b16 %v662
        %v733 = vunpack.c.l.b16 %v663
        %v734 = vunpack.c.l.b16 %v664
        %v735 = vunpack.c.h.b16 %v664
        %v736 = vunpack.c.l.b16 %v665
        %v737 = vunpack.c.l.b16 %v666
        %v738 = vunpack.c.h.b16 %v666
        %v739 = vunpack.c.l.b16 %v667
        %v740 = vunpack.c.l.b16 %v668
        %v741 = vunpack.c.h.b16 %v668
        %v742 = vunpack.c.l.b16 %v669
        %v743 = vunpack.c.l.b16 %v670
        %v744 = vunpack.c.h.b16 %v670
        %v745 = vunpack.c.l.b16 %v671
        %v746 = vunpack.c.l.b16 %v672
        %v747 = vunpack.c.h.b16 %v672
        %v748 = vunpack.c.l.b16 %v673
        %v749 = vunpack.c.l.b16 %v674
        %v750 = vunpack.c.h.b16 %v674
        %v751 = vunpack.c.l.b16 %v675
        %v752 = vunpack.c.l.b16 %v676
        %v753 = vunpack.c.h.b16 %v676
        %v754 = vunpack.c.l.b16 %v677
        %v755 = vunpack.c.l.b16 %v678
        %v756 = vunpack.c.h.b16 %v678
        %v757 = vunpack.c.l.b16 %v679
        %v758 = vunpack.c.l.b16 %v680
        %v759 = vunpack.c.h.b16 %v680
        %v760 = vunpack.c.l.b16 %v681
        %v761 = vunpack.c.l.b16 %v682
        %v762 = vunpack.c.h.b16 %v682
        %v763 = vunpack.c.l.b16 %v683
        %v764 = vpack.c.b16 %v719, %v716
        %v765 = vpack.c.b16 %v720, %v717
        %v766 = vpack.c.b16 %v721, %v718
        %v767 = vpack.c.b16 %v725, %v722
        %v768 = vpack.c.b16 %v726, %v723
        %v769 = vpack.c.b16 %v727, %v724
        %v770 = vpack.c.b16 %v731, %v728
        %v771 = vpack.c.b16 %v732, %v729
        %v772 = vpack.c.b16 %v733, %v730
        %v773 = vpack.c.b16 %v737, %v734
        %v774 = vpack.c.b16 %v738, %v735
        %v775 = vpack.c.b16 %v739, %v736
        %v776 = vpack.c.b16 %v743, %v740
        %v777 = vpack.c.b16 %v744, %v741
        %v778 = vpack.c.b16 %v745, %v742
        %v779 = vpack.c.b16 %v749, %v746
        %v780 = vpack.c.b16 %v750, %v747
        %v781 = vpack.c.b16 %v751, %v748
        %v782 = vpack.c.b16 %v755, %v752
        %v783 = vpack.c.b16 %v756, %v753
        %v784 = vpack.c.b16 %v757, %v754
        %v785 = vpack.c.b16 %v761, %v758
        %v786 = vpack.c.b16 %v762, %v759
        %v787 = vpack.c.b16 %v763, %v760
        %812 = vmatprep.subr.bf16.mxu0 %v765
        %813 = vmatpush1.bf16.msra.mxu0 %v764
        %814 = vmatprep.subr.bf16.mxu0 %v768
        %815 = vmatpush1.bf16.msra.mxu0 %v767
        %816 = vmatprep.subr.bf16.mxu0 %v771
        %817 = vmatpush1.bf16.msra.mxu0 %v770
        %818 = vmatprep.subr.bf16.mxu0 %v774
        %819 = vmatpush1.bf16.msra.mxu0 %v773
        %820 = vmatprep.subr.bf16.mxu0 %v777
        %821 = vmatpush1.bf16.msra.mxu0 %v776
        %822 = vmatprep.subr.bf16.mxu0 %v780
        %823 = vmatpush1.bf16.msra.mxu0 %v779
        %824 = vmatprep.subr.bf16.mxu0 %v783
        %825 = vmatpush1.bf16.msra.mxu0 %v782
        %826 = vmatprep.subr.bf16.mxu0 %v786
        %827 = vmatpush1.bf16.msra.mxu0 %v785
        %828 = vmatprep.subr.bf16.mxu0 0
        %829 = vmatpush1.bf16.msra.mxu0 0
        %830 = vmatprep.subr.bf16.mxu0 0
        %831 = vmatpush1.bf16.msra.mxu0 0
        %832 = vmatprep.subr.bf16.mxu0 0
        %833 = vmatpush1.bf16.msra.mxu0 0
        %834 = vmatprep.subr.bf16.mxu0 0
        %835 = vmatpush1.bf16.msra.mxu0 0
        %836 = vmatprep.subr.bf16.mxu0 0
        %837 = vmatpush1.bf16.msra.mxu0 0
        %838 = vmatprep.subr.bf16.mxu0 0
        %839 = vmatpush1.bf16.msra.mxu0 0
        %840 = vmatprep.subr.bf16.mxu0 0
        %841 = vmatpush1.bf16.msra.mxu0 0
        %842 = vmatprep.subr.bf16.mxu0 0
        %843 = vmatpush1.bf16.msra.mxu0 0
        %844 = vmatprep.mubr.bf16.mxu0 0
        %845 = vmatmul.mubr.bf16.gmra.mrb[0].mxu0 %v648
        %v846 = vpop.f32.mrb[0].mxu0
        %v847 = vadd.f32 0.0, %v846
        %v848 = vpop.f32.mrb[0].mxu0
        %v849 = vadd.f32 0.0, %v848
        %v850 = vpop.f32.mrb[0].mxu0
        %v851 = vadd.f32 0.0, %v850
        %v852 = vpop.f32.mrb[0].mxu0
        %v853 = vadd.f32 0.0, %v852
        %854 = vmatprep.mubr.bf16.mxu0 0
        %855 = vmatmul.mubr.bf16.gmra.mrb[0].mxu0 %v649
        %v856 = vpop.f32.mrb[0].mxu0
        %v857 = vadd.f32 0.0, %v856
        %v858 = vpop.f32.mrb[0].mxu0
        %v859 = vadd.f32 0.0, %v858
        %v860 = vpop.f32.mrb[0].mxu0
        %v861 = vadd.f32 0.0, %v860
        %v862 = vpop.f32.mrb[0].mxu0
        %v863 = vadd.f32 0.0, %v862
        %864 = vmatprep.mubr.bf16.mxu0 0
        %865 = vmatmul.mubr.bf16.gmra.mrb[0].mxu0 %v650
        %v866 = vpop.f32.mrb[0].mxu0
        %v867 = vadd.f32 0.0, %v866
        %v868 = vpop.f32.mrb[0].mxu0
        %v869 = vadd.f32 0.0, %v868
        %v870 = vpop.f32.mrb[0].mxu0
        %v871 = vadd.f32 0.0, %v870
        %v872 = vpop.f32.mrb[0].mxu0
        %v873 = vadd.f32 0.0, %v872
        %874 = vmatprep.mubr.bf16.mxu0 0
        %875 = vmatmul.mubr.bf16.gmra.mrb[0].mxu0 %v651
        %v876 = vpop.f32.mrb[0].mxu0
        %v877 = vadd.f32 0.0, %v876
        %v878 = vpop.f32.mrb[0].mxu0
        %v879 = vadd.f32 0.0, %v878
        %v880 = vpop.f32.mrb[0].mxu0
        %v881 = vadd.f32 0.0, %v880
        %v882 = vpop.f32.mrb[0].mxu0
        %v883 = vadd.f32 0.0, %v882
        %884 = vdwg.mxu0
        %885 = vmatprep.subr.bf16.mxu0 0
        %886 = vmatpush1.bf16.msra.mxu0 %v766
        %887 = vmatprep.subr.bf16.mxu0 0
        %888 = vmatpush1.bf16.msra.mxu0 %v769
        %889 = vmatprep.subr.bf16.mxu0 0
        %890 = vmatpush1.bf16.msra.mxu0 %v772
        %891 = vmatprep.subr.bf16.mxu0 0
        %892 = vmatpush1.bf16.msra.mxu0 %v775
        %893 = vmatprep.subr.bf16.mxu0 0
        %894 = vmatpush1.bf16.msra.mxu0 %v778
        %895 = vmatprep.subr.bf16.mxu0 0
        %896 = vmatpush1.bf16.msra.mxu0 %v781
        %897 = vmatprep.subr.bf16.mxu0 0
        %898 = vmatpush1.bf16.msra.mxu0 %v784
        %899 = vmatprep.subr.bf16.mxu0 0
        %900 = vmatpush1.bf16.msra.mxu0 %v787
        %901 = vmatprep.subr.bf16.mxu0 0
        %902 = vmatpush1.bf16.msra.mxu0 0
        %903 = vmatprep.subr.bf16.mxu0 0
        %904 = vmatpush1.bf16.msra.mxu0 0
        %905 = vmatprep.subr.bf16.mxu0 0
        %906 = vmatpush1.bf16.msra.mxu0 0
        %907 = vmatprep.subr.bf16.mxu0 0
        %908 = vmatpush1.bf16.msra.mxu0 0
        %909 = vmatprep.subr.bf16.mxu0 0
        %910 = vmatpush1.bf16.msra.mxu0 0
        %911 = vmatprep.subr.bf16.mxu0 0
        %912 = vmatpush1.bf16.msra.mxu0 0
        %913 = vmatprep.subr.bf16.mxu0 0
        %914 = vmatpush1.bf16.msra.mxu0 0
        %915 = vmatprep.subr.bf16.mxu0 0
        %916 = vmatpush1.bf16.msra.mxu0 0
        %917 = vmatprep.mubr.bf16.mxu0 0
        %918 = vmatmul.mubr.bf16.gmra.mrb[0].mxu0 %v648
        %v919 = vpop.f32.mrb[0].mxu0
        %v920 = vadd.f32 0.0, %v919
        %v921 = vpop.f32.mrb[0].mxu0
        %v922 = vpop.f32.mrb[0].mxu0
        %v923 = vadd.f32 0.0, %v922
        %v924 = vpop.f32.mrb[0].mxu0
        %925 = vmatprep.mubr.bf16.mxu0 0
        %926 = vmatmul.mubr.bf16.gmra.mrb[0].mxu0 %v649
        %v927 = vpop.f32.mrb[0].mxu0
        %v928 = vadd.f32 0.0, %v927
        %v929 = vpop.f32.mrb[0].mxu0
        %v930 = vpop.f32.mrb[0].mxu0
        %v931 = vadd.f32 0.0, %v930
        %v932 = vpop.f32.mrb[0].mxu0
        %933 = vmatprep.mubr.bf16.mxu0 0
        %934 = vmatmul.mubr.bf16.gmra.mrb[0].mxu0 %v650
        %v935 = vpop.f32.mrb[0].mxu0
        %v936 = vadd.f32 0.0, %v935
        %v937 = vpop.f32.mrb[0].mxu0
        %v938 = vpop.f32.mrb[0].mxu0
        %v939 = vadd.f32 0.0, %v938
        %v940 = vpop.f32.mrb[0].mxu0
        %941 = vmatprep.mubr.bf16.mxu0 0
        %942 = vmatmul.mubr.bf16.gmra.mrb[0].mxu0 %v651
        %v943 = vpop.f32.mrb[0].mxu0
        %v944 = vadd.f32 0.0, %v943
        %v945 = vpop.f32.mrb[0].mxu0
        %v946 = vpop.f32.mrb[0].mxu0
        %v947 = vadd.f32 0.0, %v946
        %v948 = vpop.f32.mrb[0].mxu0
        %949 = vdwg.mxu0
        %vm950 = vcmp.ge.s32.totalorder %v480, 16
        %vm951 = vcmp.ge.s32.totalorder %v481, 16
        %vm952 = vcmp.ge.s32.totalorder %v482, 16
        %vm953 = vcmp.ge.s32.totalorder %v483, 16
        %vm954 = vcmp.ge.s32.totalorder %v484, 16
        %vm955 = vcmp.ge.s32.totalorder %v485, 16
        %vm956 = vcmp.ge.s32.totalorder %v486, 16
        %vm957 = vcmp.ge.s32.totalorder %v487, 16
        %v958 = vsel %vm950, %v877, 0.0
        %v959 = vsel %vm951, %v881, 0.0
        %v960 = vsel %vm952, %v847, 0.0
        %v961 = vsel %vm953, %v851, 0.0
        %v962 = vsel %vm954, %v857, 0.0
        %v963 = vsel %vm955, %v861, 0.0
        %v964 = vsel %vm956, %v867, 0.0
        %v965 = vsel %vm957, %v871, 0.0
        %vm966 = vcmp.ge.s32.totalorder %v480, 8
        %vm967 = vcmp.ge.s32.totalorder %v481, 8
        %vm968 = vcmp.ge.s32.totalorder %v482, 8
        %vm969 = vcmp.ge.s32.totalorder %v483, 8
        %vm970 = vcmp.ge.s32.totalorder %v484, 8
        %vm971 = vcmp.ge.s32.totalorder %v485, 8
        %vm972 = vcmp.ge.s32.totalorder %v486, 8
        %vm973 = vcmp.ge.s32.totalorder %v487, 8
        %v974 = vsel %vm966, %v883, 0.0
        %v975 = vsel %vm967, %v849, 0.0
        %v976 = vsel %vm968, %v853, 0.0
        %v977 = vsel %vm969, %v859, 0.0
        %v978 = vsel %vm970, %v863, 0.0
        %v979 = vsel %vm971, %v869, 0.0
        %v980 = vsel %vm972, %v873, 0.0
        %v981 = vsel %vm973, %v879, 0.0
        %v982 = vadd.f32 %v958, %v974
        %v983 = vadd.f32 %v959, %v975
        %v984 = vadd.f32 %v960, %v976
        %v985 = vadd.f32 %v961, %v977
        %v986 = vadd.f32 %v962, %v978
        %v987 = vadd.f32 %v963, %v979
        %v988 = vadd.f32 %v964, %v980
        %v989 = vadd.f32 %v965, %v981
        %v990 = vadd.f32 %v982, %v920
        %v991 = vadd.f32 %v983, %v923
        %v992 = vadd.f32 %v984, %v928
        %v993 = vadd.f32 %v985, %v931
        %v994 = vadd.f32 %v986, %v936
        %v995 = vadd.f32 %v987, %v939
        %v996 = vadd.f32 %v988, %v944
        %v997 = vadd.f32 %v989, %v947
        %v998 = vld [vmem:[%s5] sm:$0x1]
        %v1000 = vlaneseq
        %v1001 = vshrl.u32 %v1000, 7
        %v1002 = vsub.s32 0, %v1001
        %v1003 = vrot.slane %v998, %v1002
        %v1005 = vadd.f32 %v990, %v1003
        %v1006 = vadd.f32 %v991, %v1003
        %v1007 = vadd.f32 %v992, %v1003
        %v1008 = vadd.f32 %v993, %v1003
        %v1009 = vadd.f32 %v994, %v1003
        %v1010 = vadd.f32 %v995, %v1003
        %v1011 = vadd.f32 %v996, %v1003
        %v1012 = vadd.f32 %v997, %v1003
        %v1013 = vmax.f32 %v1005, 0.0
        %v1014 = vmax.f32 %v1006, 0.0
        %v1015 = vmax.f32 %v1007, 0.0
        %v1016 = vmax.f32 %v1008, 0.0
        %v1017 = vmax.f32 %v1009, 0.0
        %v1018 = vmax.f32 %v1010, 0.0
        %v1019 = vmax.f32 %v1011, 0.0
        %v1020 = vmax.f32 %v1012, 0.0
        %v1021 = vpack.c.bf16 %v1014, %v1013
        %v1022 = vpack.c.bf16 %v1016, %v1015
        %v1023 = vpack.c.bf16 %v1018, %v1017
        %v1024 = vpack.c.bf16 %v1020, %v1019
        %v1025 = vld [vmem:[#allocation5] sm:$0xf]
        %v1026 = vld [vmem:[#allocation5 + $0x4] sm:$0xf]
        %v1027 = vld [vmem:[#allocation5 + $0x8] sm:$0xf]
        %v1028 = vld [vmem:[#allocation5 + $0xc] sm:$0xf]
        %v1029 = vld [vmem:[#allocation5 + $0x10] sm:$0xf]
        %v1030 = vld [vmem:[#allocation5 + $0x14] sm:$0xf]
        %v1031 = vld [vmem:[#allocation5 + $0x18] sm:$0xf]
        %v1032 = vld [vmem:[#allocation5 + $0x1c] sm:$0xf]
        %v1033 = vld [vmem:[#allocation5 + $0x20] sm:$0xf]
        %v1034 = vld [vmem:[#allocation5 + $0x24] sm:$0xf]
        %v1035 = vld [vmem:[#allocation5 + $0x28] sm:$0xf]
        %v1036 = vld [vmem:[#allocation5 + $0x2c] sm:$0xf]
        %v1037 = vld [vmem:[#allocation5 + $0x30] sm:$0xf]
        %v1038 = vld [vmem:[#allocation5 + $0x34] sm:$0xf]
        %v1039 = vld [vmem:[#allocation5 + $0x38] sm:$0xf]
        %v1040 = vld [vmem:[#allocation5 + $0x3c] sm:$0xf]
        %v1041 = vld [vmem:[%s7] sm:$0x1]
        %v1043 = vlaneseq
        %v1044 = vshrl.u32 %v1043, 7
        %v1045 = vsub.s32 0, %v1044
        %v1046 = vrot.slane %v1041, %v1045
        %v1064 = vunpack.c.l.b16 %v1025
        %v1065 = vunpack.c.l.b16 %v1026
        %v1066 = vunpack.c.l.b16 %v1027
        %v1067 = vunpack.c.l.b16 %v1028
        %v1068 = vunpack.c.l.b16 %v1029
        %v1069 = vunpack.c.l.b16 %v1030
        %v1070 = vunpack.c.l.b16 %v1031
        %v1071 = vunpack.c.l.b16 %v1032
        %v1072 = vunpack.c.l.b16 %v1033
        %v1073 = vunpack.c.l.b16 %v1034
        %v1074 = vunpack.c.l.b16 %v1035
        %v1075 = vunpack.c.l.b16 %v1036
        %v1076 = vunpack.c.l.b16 %v1037
        %v1077 = vunpack.c.l.b16 %v1038
        %v1078 = vunpack.c.l.b16 %v1039
        %v1079 = vunpack.c.l.b16 %v1040
        %v1080 = vpack.c.b16 %v1065, %v1064
        %v1081 = vpack.c.b16 %v1067, %v1066
        %v1082 = vpack.c.b16 %v1069, %v1068
        %v1083 = vpack.c.b16 %v1071, %v1070
        %v1084 = vpack.c.b16 %v1073, %v1072
        %v1085 = vpack.c.b16 %v1075, %v1074
        %v1086 = vpack.c.b16 %v1077, %v1076
        %v1087 = vpack.c.b16 %v1079, %v1078
        %1096 = vmatprep.subr.bf16.mxu0 0
        %1097 = vmatpush1.bf16.msra.mxu0 %v1080
        %1098 = vmatprep.subr.bf16.mxu0 0
        %1099 = vmatpush1.bf16.msra.mxu0 %v1081
        %1100 = vmatprep.subr.bf16.mxu0 0
        %1101 = vmatpush1.bf16.msra.mxu0 %v1082
        %1102 = vmatprep.subr.bf16.mxu0 0
        %1103 = vmatpush1.bf16.msra.mxu0 %v1083
        %1104 = vmatprep.subr.bf16.mxu0 0
        %1105 = vmatpush1.bf16.msra.mxu0 %v1084
        %1106 = vmatprep.subr.bf16.mxu0 0
        %1107 = vmatpush1.bf16.msra.mxu0 %v1085
        %1108 = vmatprep.subr.bf16.mxu0 0
        %1109 = vmatpush1.bf16.msra.mxu0 %v1086
        %1110 = vmatprep.subr.bf16.mxu0 0
        %1111 = vmatpush1.bf16.msra.mxu0 %v1087
        %1112 = vmatprep.subr.bf16.mxu0 0
        %1113 = vmatpush1.bf16.msra.mxu0 0
        %1114 = vmatprep.subr.bf16.mxu0 0
        %1115 = vmatpush1.bf16.msra.mxu0 0
        %1116 = vmatprep.subr.bf16.mxu0 0
        %1117 = vmatpush1.bf16.msra.mxu0 0
        %1118 = vmatprep.subr.bf16.mxu0 0
        %1119 = vmatpush1.bf16.msra.mxu0 0
        %1120 = vmatprep.subr.bf16.mxu0 0
        %1121 = vmatpush1.bf16.msra.mxu0 0
        %1122 = vmatprep.subr.bf16.mxu0 0
        %1123 = vmatpush1.bf16.msra.mxu0 0
        %1124 = vmatprep.subr.bf16.mxu0 0
        %1125 = vmatpush1.bf16.msra.mxu0 0
        %1126 = vmatprep.subr.bf16.mxu0 0
        %1127 = vmatpush1.bf16.msra.mxu0 0
        %1128 = vmatprep.mubr.bf16.mxu0 0
        %1129 = vmatmul.mubr.bf16.gmra.mrb[0].mxu0 %v1021
        %v1130 = vpop.f32.mrb[0].mxu0
        %v1131 = vadd.f32 %v1046, %v1130
        %v1132 = vpop.f32.mrb[0].mxu0
        %v1133 = vpop.f32.mrb[0].mxu0
        %v1134 = vadd.f32 %v1046, %v1133
        %v1135 = vpop.f32.mrb[0].mxu0
        %1136 = vmatprep.mubr.bf16.mxu0 0
        %1137 = vmatmul.mubr.bf16.gmra.mrb[0].mxu0 %v1022
        %v1138 = vpop.f32.mrb[0].mxu0
        %v1139 = vadd.f32 %v1046, %v1138
        %v1140 = vpop.f32.mrb[0].mxu0
        %v1141 = vpop.f32.mrb[0].mxu0
        %v1142 = vadd.f32 %v1046, %v1141
        %v1143 = vpop.f32.mrb[0].mxu0
        %1144 = vmatprep.mubr.bf16.mxu0 0
        %1145 = vmatmul.mubr.bf16.gmra.mrb[0].mxu0 %v1023
        %v1146 = vpop.f32.mrb[0].mxu0
        %v1147 = vadd.f32 %v1046, %v1146
        %v1148 = vpop.f32.mrb[0].mxu0
        %v1149 = vpop.f32.mrb[0].mxu0
        %v1150 = vadd.f32 %v1046, %v1149
        %v1151 = vpop.f32.mrb[0].mxu0
        %1152 = vmatprep.mubr.bf16.mxu0 0
        %1153 = vmatmul.mubr.bf16.gmra.mrb[0].mxu0 %v1024
        %v1154 = vpop.f32.mrb[0].mxu0
        %v1155 = vadd.f32 %v1046, %v1154
        %v1156 = vpop.f32.mrb[0].mxu0
        %v1157 = vpop.f32.mrb[0].mxu0
        %v1158 = vadd.f32 %v1046, %v1157
        %v1159 = vpop.f32.mrb[0].mxu0
        %1160 = vdwg.mxu0
        %v1161 = vadd.f32 %v618, %v1131
        %v1162 = vadd.f32 %v621, %v1134
        %v1163 = vadd.f32 %v626, %v1139
        %v1164 = vadd.f32 %v629, %v1142
        %v1165 = vadd.f32 %v634, %v1147
        %v1166 = vadd.f32 %v637, %v1150
        %v1167 = vadd.f32 %v642, %v1155
        %v1168 = vadd.f32 %v645, %v1158
        %v1169 = vmul.f32 %v1161, %v442
        %v1170 = vmul.f32 %v1162, %v447
        %v1171 = vmul.f32 %v1163, %v452
        %v1172 = vmul.f32 %v1164, %v457
        %v1173 = vmul.f32 %v1165, %v462
        %v1174 = vmul.f32 %v1166, %v467
        %v1175 = vmul.f32 %v1167, %v472
        %v1176 = vmul.f32 %v1168, %v477
        %v1177 = vpack.c.bf16 %v1170, %v1169
        %v1178 = vpack.c.bf16 %v1172, %v1171
        %v1179 = vpack.c.bf16 %v1174, %v1173
        %v1180 = vpack.c.bf16 %v1176, %v1175
        %s1181 = scalar_lea.vmem [#allocation2], 192
        %v1182 = vld [vmem:[%s1181] sm:$0xff]
        %v1183 = vld [vmem:[%s1181 + $0x8] sm:$0xf]
        %v1184 = vld [vmem:[%s1181 + $0xc] sm:$0xff]
        %v1185 = vld [vmem:[%s1181 + $0x14] sm:$0xf]
        %v1186 = vld [vmem:[%s1181 + $0x18] sm:$0xff]
        %v1187 = vld [vmem:[%s1181 + $0x20] sm:$0xf]
        %v1188 = vld [vmem:[%s1181 + $0x24] sm:$0xff]
        %v1189 = vld [vmem:[%s1181 + $0x2c] sm:$0xf]
        %v1190 = vld [vmem:[%s1181 + $0x30] sm:$0xff]
        %v1191 = vld [vmem:[%s1181 + $0x38] sm:$0xf]
        %v1192 = vld [vmem:[%s1181 + $0x3c] sm:$0xff]
        %v1193 = vld [vmem:[%s1181 + $0x44] sm:$0xf]
        %v1194 = vld [vmem:[%s1181 + $0x48] sm:$0xff]
        %v1195 = vld [vmem:[%s1181 + $0x50] sm:$0xf]
        %v1196 = vld [vmem:[%s1181 + $0x54] sm:$0xff]
        %v1197 = vld [vmem:[%s1181 + $0x5c] sm:$0xf]
        %v1198 = vld [vmem:[%s1181 + $0x60] sm:$0xff]
        %v1199 = vld [vmem:[%s1181 + $0x68] sm:$0xf]
        %v1200 = vld [vmem:[%s1181 + $0x6c] sm:$0xff]
        %v1201 = vld [vmem:[%s1181 + $0x74] sm:$0xf]
        %v1202 = vld [vmem:[%s1181 + $0x78] sm:$0xff]
        %v1203 = vld [vmem:[%s1181 + $0x80] sm:$0xf]
        %v1204 = vld [vmem:[%s1181 + $0x84] sm:$0xff]
        %v1205 = vld [vmem:[%s1181 + $0x8c] sm:$0xf]
        %v1206 = vld [vmem:[%s1181 + $0x90] sm:$0xff]
        %v1207 = vld [vmem:[%s1181 + $0x98] sm:$0xf]
        %v1208 = vld [vmem:[%s1181 + $0x9c] sm:$0xff]
        %v1209 = vld [vmem:[%s1181 + $0xa4] sm:$0xf]
        %v1210 = vld [vmem:[%s1181 + $0xa8] sm:$0xff]
        %v1211 = vld [vmem:[%s1181 + $0xb0] sm:$0xf]
        %v1212 = vld [vmem:[%s1181 + $0xb4] sm:$0xff]
        %v1213 = vld [vmem:[%s1181 + $0xbc] sm:$0xf]
        %v1246 = vunpack.c.l.b16 %v1182
        %v1247 = vunpack.c.h.b16 %v1182
        %v1248 = vunpack.c.l.b16 %v1183
        %v1249 = vunpack.c.l.b16 %v1184
        %v1250 = vunpack.c.h.b16 %v1184
        %v1251 = vunpack.c.l.b16 %v1185
        %v1252 = vunpack.c.l.b16 %v1186
        %v1253 = vunpack.c.h.b16 %v1186
        %v1254 = vunpack.c.l.b16 %v1187
        %v1255 = vunpack.c.l.b16 %v1188
        %v1256 = vunpack.c.h.b16 %v1188
        %v1257 = vunpack.c.l.b16 %v1189
        %v1258 = vunpack.c.l.b16 %v1190
        %v1259 = vunpack.c.h.b16 %v1190
        %v1260 = vunpack.c.l.b16 %v1191
        %v1261 = vunpack.c.l.b16 %v1192
        %v1262 = vunpack.c.h.b16 %v1192
        %v1263 = vunpack.c.l.b16 %v1193
        %v1264 = vunpack.c.l.b16 %v1194
        %v1265 = vunpack.c.h.b16 %v1194
        %v1266 = vunpack.c.l.b16 %v1195
        %v1267 = vunpack.c.l.b16 %v1196
        %v1268 = vunpack.c.h.b16 %v1196
        %v1269 = vunpack.c.l.b16 %v1197
        %v1270 = vunpack.c.l.b16 %v1198
        %v1271 = vunpack.c.h.b16 %v1198
        %v1272 = vunpack.c.l.b16 %v1199
        %v1273 = vunpack.c.l.b16 %v1200
        %v1274 = vunpack.c.h.b16 %v1200
        %v1275 = vunpack.c.l.b16 %v1201
        %v1276 = vunpack.c.l.b16 %v1202
        %v1277 = vunpack.c.h.b16 %v1202
        %v1278 = vunpack.c.l.b16 %v1203
        %v1279 = vunpack.c.l.b16 %v1204
        %v1280 = vunpack.c.h.b16 %v1204
        %v1281 = vunpack.c.l.b16 %v1205
        %v1282 = vunpack.c.l.b16 %v1206
        %v1283 = vunpack.c.h.b16 %v1206
        %v1284 = vunpack.c.l.b16 %v1207
        %v1285 = vunpack.c.l.b16 %v1208
        %v1286 = vunpack.c.h.b16 %v1208
        %v1287 = vunpack.c.l.b16 %v1209
        %v1288 = vunpack.c.l.b16 %v1210
        %v1289 = vunpack.c.h.b16 %v1210
        %v1290 = vunpack.c.l.b16 %v1211
        %v1291 = vunpack.c.l.b16 %v1212
        %v1292 = vunpack.c.h.b16 %v1212
        %v1293 = vunpack.c.l.b16 %v1213
        %v1294 = vpack.c.b16 %v1249, %v1246
        %v1295 = vpack.c.b16 %v1250, %v1247
        %v1296 = vpack.c.b16 %v1251, %v1248
        %v1297 = vpack.c.b16 %v1255, %v1252
        %v1298 = vpack.c.b16 %v1256, %v1253
        %v1299 = vpack.c.b16 %v1257, %v1254
        %v1300 = vpack.c.b16 %v1261, %v1258
        %v1301 = vpack.c.b16 %v1262, %v1259
        %v1302 = vpack.c.b16 %v1263, %v1260
        %v1303 = vpack.c.b16 %v1267, %v1264
        %v1304 = vpack.c.b16 %v1268, %v1265
        %v1305 = vpack.c.b16 %v1269, %v1266
        %v1306 = vpack.c.b16 %v1273, %v1270
        %v1307 = vpack.c.b16 %v1274, %v1271
        %v1308 = vpack.c.b16 %v1275, %v1272
        %v1309 = vpack.c.b16 %v1279, %v1276
        %v1310 = vpack.c.b16 %v1280, %v1277
        %v1311 = vpack.c.b16 %v1281, %v1278
        %v1312 = vpack.c.b16 %v1285, %v1282
        %v1313 = vpack.c.b16 %v1286, %v1283
        %v1314 = vpack.c.b16 %v1287, %v1284
        %v1315 = vpack.c.b16 %v1291, %v1288
        %v1316 = vpack.c.b16 %v1292, %v1289
        %v1317 = vpack.c.b16 %v1293, %v1290
        %1342 = vmatprep.subr.bf16.mxu0 %v1295
        %1343 = vmatpush1.bf16.msra.mxu0 %v1294
        %1344 = vmatprep.subr.bf16.mxu0 %v1298
        %1345 = vmatpush1.bf16.msra.mxu0 %v1297
        %1346 = vmatprep.subr.bf16.mxu0 %v1301
        %1347 = vmatpush1.bf16.msra.mxu0 %v1300
        %1348 = vmatprep.subr.bf16.mxu0 %v1304
        %1349 = vmatpush1.bf16.msra.mxu0 %v1303
        %1350 = vmatprep.subr.bf16.mxu0 %v1307
        %1351 = vmatpush1.bf16.msra.mxu0 %v1306
        %1352 = vmatprep.subr.bf16.mxu0 %v1310
        %1353 = vmatpush1.bf16.msra.mxu0 %v1309
        %1354 = vmatprep.subr.bf16.mxu0 %v1313
        %1355 = vmatpush1.bf16.msra.mxu0 %v1312
        %1356 = vmatprep.subr.bf16.mxu0 %v1316
        %1357 = vmatpush1.bf16.msra.mxu0 %v1315
        %1358 = vmatprep.subr.bf16.mxu0 0
        %1359 = vmatpush1.bf16.msra.mxu0 0
        %1360 = vmatprep.subr.bf16.mxu0 0
        %1361 = vmatpush1.bf16.msra.mxu0 0
        %1362 = vmatprep.subr.bf16.mxu0 0
        %1363 = vmatpush1.bf16.msra.mxu0 0
        %1364 = vmatprep.subr.bf16.mxu0 0
        %1365 = vmatpush1.bf16.msra.mxu0 0
        %1366 = vmatprep.subr.bf16.mxu0 0
        %1367 = vmatpush1.bf16.msra.mxu0 0
        %1368 = vmatprep.subr.bf16.mxu0 0
        %1369 = vmatpush1.bf16.msra.mxu0 0
        %1370 = vmatprep.subr.bf16.mxu0 0
        %1371 = vmatpush1.bf16.msra.mxu0 0
        %1372 = vmatprep.subr.bf16.mxu0 0
        %1373 = vmatpush1.bf16.msra.mxu0 0
        %1374 = vmatprep.mubr.bf16.mxu0 0
        %1375 = vmatmul.mubr.bf16.gmra.mrb[0].mxu0 %v1177
        %v1376 = vpop.f32.mrb[0].mxu0
        %v1377 = vadd.f32 0.0, %v1376
        %v1378 = vpop.f32.mrb[0].mxu0
        %v1379 = vadd.f32 0.0, %v1378
        %v1380 = vpop.f32.mrb[0].mxu0
        %v1381 = vadd.f32 0.0, %v1380
        %v1382 = vpop.f32.mrb[0].mxu0
        %v1383 = vadd.f32 0.0, %v1382
        %1384 = vmatprep.mubr.bf16.mxu0 0
        %1385 = vmatmul.mubr.bf16.gmra.mrb[0].mxu0 %v1178
        %v1386 = vpop.f32.mrb[0].mxu0
        %v1387 = vadd.f32 0.0, %v1386
        %v1388 = vpop.f32.mrb[0].mxu0
        %v1389 = vadd.f32 0.0, %v1388
        %v1390 = vpop.f32.mrb[0].mxu0
        %v1391 = vadd.f32 0.0, %v1390
        %v1392 = vpop.f32.mrb[0].mxu0
        %v1393 = vadd.f32 0.0, %v1392
        %1394 = vmatprep.mubr.bf16.mxu0 0
        %1395 = vmatmul.mubr.bf16.gmra.mrb[0].mxu0 %v1179
        %v1396 = vpop.f32.mrb[0].mxu0
        %v1397 = vadd.f32 0.0, %v1396
        %v1398 = vpop.f32.mrb[0].mxu0
        %v1399 = vadd.f32 0.0, %v1398
        %v1400 = vpop.f32.mrb[0].mxu0
        %v1401 = vadd.f32 0.0, %v1400
        %v1402 = vpop.f32.mrb[0].mxu0
        %v1403 = vadd.f32 0.0, %v1402
        %1404 = vmatprep.mubr.bf16.mxu0 0
        %1405 = vmatmul.mubr.bf16.gmra.mrb[0].mxu0 %v1180
        %v1406 = vpop.f32.mrb[0].mxu0
        %v1407 = vadd.f32 0.0, %v1406
        %v1408 = vpop.f32.mrb[0].mxu0
        %v1409 = vadd.f32 0.0, %v1408
        %v1410 = vpop.f32.mrb[0].mxu0
        %v1411 = vadd.f32 0.0, %v1410
        %v1412 = vpop.f32.mrb[0].mxu0
        %v1413 = vadd.f32 0.0, %v1412
        %1414 = vdwg.mxu0
        %1415 = vmatprep.subr.bf16.mxu0 0
        %1416 = vmatpush1.bf16.msra.mxu0 %v1296
        %1417 = vmatprep.subr.bf16.mxu0 0
        %1418 = vmatpush1.bf16.msra.mxu0 %v1299
        %1419 = vmatprep.subr.bf16.mxu0 0
        %1420 = vmatpush1.bf16.msra.mxu0 %v1302
        %1421 = vmatprep.subr.bf16.mxu0 0
        %1422 = vmatpush1.bf16.msra.mxu0 %v1305
        %1423 = vmatprep.subr.bf16.mxu0 0
        %1424 = vmatpush1.bf16.msra.mxu0 %v1308
        %1425 = vmatprep.subr.bf16.mxu0 0
        %1426 = vmatpush1.bf16.msra.mxu0 %v1311
        %1427 = vmatprep.subr.bf16.mxu0 0
        %1428 = vmatpush1.bf16.msra.mxu0 %v1314
        %1429 = vmatprep.subr.bf16.mxu0 0
        %1430 = vmatpush1.bf16.msra.mxu0 %v1317
        %1431 = vmatprep.subr.bf16.mxu0 0
        %1432 = vmatpush1.bf16.msra.mxu0 0
        %1433 = vmatprep.subr.bf16.mxu0 0
        %1434 = vmatpush1.bf16.msra.mxu0 0
        %1435 = vmatprep.subr.bf16.mxu0 0
        %1436 = vmatpush1.bf16.msra.mxu0 0
        %1437 = vmatprep.subr.bf16.mxu0 0
        %1438 = vmatpush1.bf16.msra.mxu0 0
        %1439 = vmatprep.subr.bf16.mxu0 0
        %1440 = vmatpush1.bf16.msra.mxu0 0
        %1441 = vmatprep.subr.bf16.mxu0 0
        %1442 = vmatpush1.bf16.msra.mxu0 0
        %1443 = vmatprep.subr.bf16.mxu0 0
        %1444 = vmatpush1.bf16.msra.mxu0 0
        %1445 = vmatprep.subr.bf16.mxu0 0
        %1446 = vmatpush1.bf16.msra.mxu0 0
        %1447 = vmatprep.mubr.bf16.mxu0 0
        %1448 = vmatmul.mubr.bf16.gmra.mrb[0].mxu0 %v1177
        %v1449 = vpop.f32.mrb[0].mxu0
        %v1450 = vadd.f32 0.0, %v1449
        %v1451 = vpop.f32.mrb[0].mxu0
        %v1452 = vpop.f32.mrb[0].mxu0
        %v1453 = vadd.f32 0.0, %v1452
        %v1454 = vpop.f32.mrb[0].mxu0
        %1455 = vmatprep.mubr.bf16.mxu0 0
        %1456 = vmatmul.mubr.bf16.gmra.mrb[0].mxu0 %v1178
        %v1457 = vpop.f32.mrb[0].mxu0
        %v1458 = vadd.f32 0.0, %v1457
        %v1459 = vpop.f32.mrb[0].mxu0
        %v1460 = vpop.f32.mrb[0].mxu0
        %v1461 = vadd.f32 0.0, %v1460
        %v1462 = vpop.f32.mrb[0].mxu0
        %1463 = vmatprep.mubr.bf16.mxu0 0
        %1464 = vmatmul.mubr.bf16.gmra.mrb[0].mxu0 %v1179
        %v1465 = vpop.f32.mrb[0].mxu0
        %v1466 = vadd.f32 0.0, %v1465
        %v1467 = vpop.f32.mrb[0].mxu0
        %v1468 = vpop.f32.mrb[0].mxu0
        %v1469 = vadd.f32 0.0, %v1468
        %v1470 = vpop.f32.mrb[0].mxu0
        %1471 = vmatprep.mubr.bf16.mxu0 0
        %1472 = vmatmul.mubr.bf16.gmra.mrb[0].mxu0 %v1180
        %v1473 = vpop.f32.mrb[0].mxu0
        %v1474 = vadd.f32 0.0, %v1473
        %v1475 = vpop.f32.mrb[0].mxu0
        %v1476 = vpop.f32.mrb[0].mxu0
        %v1477 = vadd.f32 0.0, %v1476
        %v1478 = vpop.f32.mrb[0].mxu0
        %1479 = vdwg.mxu0
        %v1480 = vsel %vm966, %v1411, 0.0
        %v1481 = vsel %vm967, %v1377, 0.0
        %v1482 = vsel %vm968, %v1381, 0.0
        %v1483 = vsel %vm969, %v1387, 0.0
        %v1484 = vsel %vm970, %v1391, 0.0
        %v1485 = vsel %vm971, %v1397, 0.0
        %v1486 = vsel %vm972, %v1401, 0.0
        %v1487 = vsel %vm973, %v1407, 0.0
        %v1488 = vrot.slane %v1379, 4
        %v1489 = vrot.slane %v1383, 4
        %v1490 = vrot.slane %v1389, 4
        %v1491 = vrot.slane %v1393, 4
        %v1492 = vrot.slane %v1399, 4
        %v1493 = vrot.slane %v1403, 4
        %v1494 = vrot.slane %v1409, 4
        %v1495 = vrot.slane %v1413, 4
        %vm1496 = vcmp.lt.s32.totalorder %v480, 4
        %v1497 = vsel %vm1496, %v1494, %v1495
        %v1498 = vsel %vm1496, %v1493, %v1494
        %v1499 = vsel %vm1496, %v1492, %v1493
        %v1500 = vsel %vm1496, %v1491, %v1492
        %v1501 = vsel %vm1496, %v1490, %v1491
        %v1502 = vsel %vm1496, %v1489, %v1490
        %v1503 = vsel %vm1496, %v1488, %v1489
        %v1504 = vsel %vm1496, %v1495, %v1488
        %vm1505 = vcmp.ge.s32.totalorder %v480, 4
        %vm1506 = vcmp.ge.s32.totalorder %v481, 4
        %vm1507 = vcmp.ge.s32.totalorder %v482, 4
        %vm1508 = vcmp.ge.s32.totalorder %v483, 4
        %vm1509 = vcmp.ge.s32.totalorder %v484, 4
        %vm1510 = vcmp.ge.s32.totalorder %v485, 4
        %vm1511 = vcmp.ge.s32.totalorder %v486, 4
        %vm1512 = vcmp.ge.s32.totalorder %v487, 4
        %v1513 = vsel %vm1505, %v1504, 0.0
        %v1514 = vsel %vm1506, %v1503, 0.0
        %v1515 = vsel %vm1507, %v1502, 0.0
        %v1516 = vsel %vm1508, %v1501, 0.0
        %v1517 = vsel %vm1509, %v1500, 0.0
        %v1518 = vsel %vm1510, %v1499, 0.0
        %v1519 = vsel %vm1511, %v1498, 0.0
        %v1520 = vsel %vm1512, %v1497, 0.0
        %v1521 = vadd.f32 %v1480, %v1513
        %v1522 = vadd.f32 %v1481, %v1514
        %v1523 = vadd.f32 %v1482, %v1515
        %v1524 = vadd.f32 %v1483, %v1516
        %v1525 = vadd.f32 %v1484, %v1517
        %v1526 = vadd.f32 %v1485, %v1518
        %v1527 = vadd.f32 %v1486, %v1519
        %v1528 = vadd.f32 %v1487, %v1520
        %v1529 = vadd.f32 %v1521, %v1450
        %v1530 = vadd.f32 %v1522, %v1453
        %v1531 = vadd.f32 %v1523, %v1458
        %v1532 = vadd.f32 %v1524, %v1461
        %v1533 = vadd.f32 %v1525, %v1466
        %v1534 = vadd.f32 %v1526, %v1469
        %v1535 = vadd.f32 %v1527, %v1474
        %v1536 = vadd.f32 %v1528, %v1477
        %s1537 = scalar_lea.vmem %s5, 1
        %v1538 = vld [vmem:[%s1537] sm:$0x1]
        %v1540 = vlaneseq
        %v1541 = vshrl.u32 %v1540, 7
        %v1542 = vsub.s32 0, %v1541
        %v1543 = vrot.slane %v1538, %v1542
        %v1545 = vadd.f32 %v1529, %v1543
        %v1546 = vadd.f32 %v1530, %v1543
        %v1547 = vadd.f32 %v1531, %v1543
        %v1548 = vadd.f32 %v1532, %v1543
        %v1549 = vadd.f32 %v1533, %v1543
        %v1550 = vadd.f32 %v1534, %v1543
        %v1551 = vadd.f32 %v1535, %v1543
        %v1552 = vadd.f32 %v1536, %v1543
        %v1553 = vmax.f32 %v1545, 0.0
        %v1554 = vmax.f32 %v1546, 0.0
        %v1555 = vmax.f32 %v1547, 0.0
        %v1556 = vmax.f32 %v1548, 0.0
        %v1557 = vmax.f32 %v1549, 0.0
        %v1558 = vmax.f32 %v1550, 0.0
        %v1559 = vmax.f32 %v1551, 0.0
        %v1560 = vmax.f32 %v1552, 0.0
        %v1561 = vpack.c.bf16 %v1554, %v1553
        %v1562 = vpack.c.bf16 %v1556, %v1555
        %v1563 = vpack.c.bf16 %v1558, %v1557
        %v1564 = vpack.c.bf16 %v1560, %v1559
        %s1565 = scalar_lea.vmem [#allocation5], 64
        %v1566 = vld [vmem:[%s1565] sm:$0xf]
        %v1567 = vld [vmem:[%s1565 + $0x4] sm:$0xf]
        %v1568 = vld [vmem:[%s1565 + $0x8] sm:$0xf]
        %v1569 = vld [vmem:[%s1565 + $0xc] sm:$0xf]
        %v1570 = vld [vmem:[%s1565 + $0x10] sm:$0xf]
        %v1571 = vld [vmem:[%s1565 + $0x14] sm:$0xf]
        %v1572 = vld [vmem:[%s1565 + $0x18] sm:$0xf]
        %v1573 = vld [vmem:[%s1565 + $0x1c] sm:$0xf]
        %v1574 = vld [vmem:[%s1565 + $0x20] sm:$0xf]
        %v1575 = vld [vmem:[%s1565 + $0x24] sm:$0xf]
        %v1576 = vld [vmem:[%s1565 + $0x28] sm:$0xf]
        %v1577 = vld [vmem:[%s1565 + $0x2c] sm:$0xf]
        %v1578 = vld [vmem:[%s1565 + $0x30] sm:$0xf]
        %v1579 = vld [vmem:[%s1565 + $0x34] sm:$0xf]
        %v1580 = vld [vmem:[%s1565 + $0x38] sm:$0xf]
        %v1581 = vld [vmem:[%s1565 + $0x3c] sm:$0xf]
        %s1582 = scalar_lea.vmem %s7, 1
        %v1583 = vld [vmem:[%s1582] sm:$0x1]
        %v1585 = vlaneseq
        %v1586 = vshrl.u32 %v1585, 7
        %v1587 = vsub.s32 0, %v1586
        %v1588 = vrot.slane %v1583, %v1587
        %v1606 = vunpack.c.l.b16 %v1566
        %v1607 = vunpack.c.l.b16 %v1567
        %v1608 = vunpack.c.l.b16 %v1568
        %v1609 = vunpack.c.l.b16 %v1569
        %v1610 = vunpack.c.l.b16 %v1570
        %v1611 = vunpack.c.l.b16 %v1571
        %v1612 = vunpack.c.l.b16 %v1572
        %v1613 = vunpack.c.l.b16 %v1573
        %v1614 = vunpack.c.l.b16 %v1574
        %v1615 = vunpack.c.l.b16 %v1575
        %v1616 = vunpack.c.l.b16 %v1576
        %v1617 = vunpack.c.l.b16 %v1577
        %v1618 = vunpack.c.l.b16 %v1578
        %v1619 = vunpack.c.l.b16 %v1579
        %v1620 = vunpack.c.l.b16 %v1580
        %v1621 = vunpack.c.l.b16 %v1581
        %v1622 = vpack.c.b16 %v1607, %v1606
        %v1623 = vpack.c.b16 %v1609, %v1608
        %v1624 = vpack.c.b16 %v1611, %v1610
        %v1625 = vpack.c.b16 %v1613, %v1612
        %v1626 = vpack.c.b16 %v1615, %v1614
        %v1627 = vpack.c.b16 %v1617, %v1616
        %v1628 = vpack.c.b16 %v1619, %v1618
        %v1629 = vpack.c.b16 %v1621, %v1620
        %1638 = vmatprep.subr.bf16.mxu0 0
        %1639 = vmatpush1.bf16.msra.mxu0 %v1622
        %1640 = vmatprep.subr.bf16.mxu0 0
        %1641 = vmatpush1.bf16.msra.mxu0 %v1623
        %1642 = vmatprep.subr.bf16.mxu0 0
        %1643 = vmatpush1.bf16.msra.mxu0 %v1624
        %1644 = vmatprep.subr.bf16.mxu0 0
        %1645 = vmatpush1.bf16.msra.mxu0 %v1625
        %1646 = vmatprep.subr.bf16.mxu0 0
        %1647 = vmatpush1.bf16.msra.mxu0 %v1626
        %1648 = vmatprep.subr.bf16.mxu0 0
        %1649 = vmatpush1.bf16.msra.mxu0 %v1627
        %1650 = vmatprep.subr.bf16.mxu0 0
        %1651 = vmatpush1.bf16.msra.mxu0 %v1628
        %1652 = vmatprep.subr.bf16.mxu0 0
        %1653 = vmatpush1.bf16.msra.mxu0 %v1629
        %1654 = vmatprep.subr.bf16.mxu0 0
        %1655 = vmatpush1.bf16.msra.mxu0 0
        %1656 = vmatprep.subr.bf16.mxu0 0
        %1657 = vmatpush1.bf16.msra.mxu0 0
        %1658 = vmatprep.subr.bf16.mxu0 0
        %1659 = vmatpush1.bf16.msra.mxu0 0
        %1660 = vmatprep.subr.bf16.mxu0 0
        %1661 = vmatpush1.bf16.msra.mxu0 0
        %1662 = vmatprep.subr.bf16.mxu0 0
        %1663 = vmatpush1.bf16.msra.mxu0 0
        %1664 = vmatprep.subr.bf16.mxu0 0
        %1665 = vmatpush1.bf16.msra.mxu0 0
        %1666 = vmatprep.subr.bf16.mxu0 0
        %1667 = vmatpush1.bf16.msra.mxu0 0
        %1668 = vmatprep.subr.bf16.mxu0 0
        %1669 = vmatpush1.bf16.msra.mxu0 0
        %1670 = vmatprep.mubr.bf16.mxu0 0
        %1671 = vmatmul.mubr.bf16.gmra.mrb[0].mxu0 %v1561
        %v1672 = vpop.f32.mrb[0].mxu0
        %v1673 = vadd.f32 %v1588, %v1672
        %v1674 = vpop.f32.mrb[0].mxu0
        %v1675 = vpop.f32.mrb[0].mxu0
        %v1676 = vadd.f32 %v1588, %v1675
        %v1677 = vpop.f32.mrb[0].mxu0
        %1678 = vmatprep.mubr.bf16.mxu0 0
        %1679 = vmatmul.mubr.bf16.gmra.mrb[0].mxu0 %v1562
        %v1680 = vpop.f32.mrb[0].mxu0
        %v1681 = vadd.f32 %v1588, %v1680
        %v1682 = vpop.f32.mrb[0].mxu0
        %v1683 = vpop.f32.mrb[0].mxu0
        %v1684 = vadd.f32 %v1588, %v1683
        %v1685 = vpop.f32.mrb[0].mxu0
        %1686 = vmatprep.mubr.bf16.mxu0 0
        %1687 = vmatmul.mubr.bf16.gmra.mrb[0].mxu0 %v1563
        %v1688 = vpop.f32.mrb[0].mxu0
        %v1689 = vadd.f32 %v1588, %v1688
        %v1690 = vpop.f32.mrb[0].mxu0
        %v1691 = vpop.f32.mrb[0].mxu0
        %v1692 = vadd.f32 %v1588, %v1691
        %v1693 = vpop.f32.mrb[0].mxu0
        %1694 = vmatprep.mubr.bf16.mxu0 0
        %1695 = vmatmul.mubr.bf16.gmra.mrb[0].mxu0 %v1564
        %v1696 = vpop.f32.mrb[0].mxu0
        %v1697 = vadd.f32 %v1588, %v1696
        %v1698 = vpop.f32.mrb[0].mxu0
        %v1699 = vpop.f32.mrb[0].mxu0
        %v1700 = vadd.f32 %v1588, %v1699
        %v1701 = vpop.f32.mrb[0].mxu0
        %1702 = vdwg.mxu0
        %v1703 = vadd.f32 %v1169, %v1673
        %v1704 = vadd.f32 %v1170, %v1676
        %v1705 = vadd.f32 %v1171, %v1681
        %v1706 = vadd.f32 %v1172, %v1684
        %v1707 = vadd.f32 %v1173, %v1689
        %v1708 = vadd.f32 %v1174, %v1692
        %v1709 = vadd.f32 %v1175, %v1697
        %v1710 = vadd.f32 %v1176, %v1700
        %v1711 = vmul.f32 %v1703, %v442
        %v1712 = vmul.f32 %v1704, %v447
        %v1713 = vmul.f32 %v1705, %v452
        %v1714 = vmul.f32 %v1706, %v457
        %v1715 = vmul.f32 %v1707, %v462
        %v1716 = vmul.f32 %v1708, %v467
        %v1717 = vmul.f32 %v1709, %v472
        %v1718 = vmul.f32 %v1710, %v477
        %v1719 = vpack.c.bf16 %v1712, %v1711
        %v1720 = vpack.c.bf16 %v1714, %v1713
        %v1721 = vpack.c.bf16 %v1716, %v1715
        %v1722 = vpack.c.bf16 %v1718, %v1717
        %s1723 = scalar_lea.vmem [#allocation2], 384
        %v1724 = vld [vmem:[%s1723] sm:$0xff]
        %v1725 = vld [vmem:[%s1723 + $0x8] sm:$0xf]
        %v1726 = vld [vmem:[%s1723 + $0xc] sm:$0xff]
        %v1727 = vld [vmem:[%s1723 + $0x14] sm:$0xf]
        %v1728 = vld [vmem:[%s1723 + $0x18] sm:$0xff]
        %v1729 = vld [vmem:[%s1723 + $0x20] sm:$0xf]
        %v1730 = vld [vmem:[%s1723 + $0x24] sm:$0xff]
        %v1731 = vld [vmem:[%s1723 + $0x2c] sm:$0xf]
        %v1732 = vld [vmem:[%s1723 + $0x30] sm:$0xff]
        %v1733 = vld [vmem:[%s1723 + $0x38] sm:$0xf]
        %v1734 = vld [vmem:[%s1723 + $0x3c] sm:$0xff]
        %v1735 = vld [vmem:[%s1723 + $0x44] sm:$0xf]
        %v1736 = vld [vmem:[%s1723 + $0x48] sm:$0xff]
        %v1737 = vld [vmem:[%s1723 + $0x50] sm:$0xf]
        %v1738 = vld [vmem:[%s1723 + $0x54] sm:$0xff]
        %v1739 = vld [vmem:[%s1723 + $0x5c] sm:$0xf]
        %v1740 = vld [vmem:[%s1723 + $0x60] sm:$0xff]
        %v1741 = vld [vmem:[%s1723 + $0x68] sm:$0xf]
        %v1742 = vld [vmem:[%s1723 + $0x6c] sm:$0xff]
        %v1743 = vld [vmem:[%s1723 + $0x74] sm:$0xf]
        %v1744 = vld [vmem:[%s1723 + $0x78] sm:$0xff]
        %v1745 = vld [vmem:[%s1723 + $0x80] sm:$0xf]
        %v1746 = vld [vmem:[%s1723 + $0x84] sm:$0xff]
        %v1747 = vld [vmem:[%s1723 + $0x8c] sm:$0xf]
        %v1748 = vld [vmem:[%s1723 + $0x90] sm:$0xff]
        %v1749 = vld [vmem:[%s1723 + $0x98] sm:$0xf]
        %v1750 = vld [vmem:[%s1723 + $0x9c] sm:$0xff]
        %v1751 = vld [vmem:[%s1723 + $0xa4] sm:$0xf]
        %v1752 = vld [vmem:[%s1723 + $0xa8] sm:$0xff]
        %v1753 = vld [vmem:[%s1723 + $0xb0] sm:$0xf]
        %v1754 = vld [vmem:[%s1723 + $0xb4] sm:$0xff]
        %v1755 = vld [vmem:[%s1723 + $0xbc] sm:$0xf]
        %v1788 = vunpack.c.l.b16 %v1724
        %v1789 = vunpack.c.h.b16 %v1724
        %v1790 = vunpack.c.l.b16 %v1725
        %v1791 = vunpack.c.l.b16 %v1726
        %v1792 = vunpack.c.h.b16 %v1726
        %v1793 = vunpack.c.l.b16 %v1727
        %v1794 = vunpack.c.l.b16 %v1728
        %v1795 = vunpack.c.h.b16 %v1728
        %v1796 = vunpack.c.l.b16 %v1729
        %v1797 = vunpack.c.l.b16 %v1730
        %v1798 = vunpack.c.h.b16 %v1730
        %v1799 = vunpack.c.l.b16 %v1731
        %v1800 = vunpack.c.l.b16 %v1732
        %v1801 = vunpack.c.h.b16 %v1732
        %v1802 = vunpack.c.l.b16 %v1733
        %v1803 = vunpack.c.l.b16 %v1734
        %v1804 = vunpack.c.h.b16 %v1734
        %v1805 = vunpack.c.l.b16 %v1735
        %v1806 = vunpack.c.l.b16 %v1736
        %v1807 = vunpack.c.h.b16 %v1736
        %v1808 = vunpack.c.l.b16 %v1737
        %v1809 = vunpack.c.l.b16 %v1738
        %v1810 = vunpack.c.h.b16 %v1738
        %v1811 = vunpack.c.l.b16 %v1739
        %v1812 = vunpack.c.l.b16 %v1740
        %v1813 = vunpack.c.h.b16 %v1740
        %v1814 = vunpack.c.l.b16 %v1741
        %v1815 = vunpack.c.l.b16 %v1742
        %v1816 = vunpack.c.h.b16 %v1742
        %v1817 = vunpack.c.l.b16 %v1743
        %v1818 = vunpack.c.l.b16 %v1744
        %v1819 = vunpack.c.h.b16 %v1744
        %v1820 = vunpack.c.l.b16 %v1745
        %v1821 = vunpack.c.l.b16 %v1746
        %v1822 = vunpack.c.h.b16 %v1746
        %v1823 = vunpack.c.l.b16 %v1747
        %v1824 = vunpack.c.l.b16 %v1748
        %v1825 = vunpack.c.h.b16 %v1748
        %v1826 = vunpack.c.l.b16 %v1749
        %v1827 = vunpack.c.l.b16 %v1750
        %v1828 = vunpack.c.h.b16 %v1750
        %v1829 = vunpack.c.l.b16 %v1751
        %v1830 = vunpack.c.l.b16 %v1752
        %v1831 = vunpack.c.h.b16 %v1752
        %v1832 = vunpack.c.l.b16 %v1753
        %v1833 = vunpack.c.l.b16 %v1754
        %v1834 = vunpack.c.h.b16 %v1754
        %v1835 = vunpack.c.l.b16 %v1755
        %v1836 = vpack.c.b16 %v1791, %v1788
        %v1837 = vpack.c.b16 %v1792, %v1789
        %v1838 = vpack.c.b16 %v1793, %v1790
        %v1839 = vpack.c.b16 %v1797, %v1794
        %v1840 = vpack.c.b16 %v1798, %v1795
        %v1841 = vpack.c.b16 %v1799, %v1796
        %v1842 = vpack.c.b16 %v1803, %v1800
        %v1843 = vpack.c.b16 %v1804, %v1801
        %v1844 = vpack.c.b16 %v1805, %v1802
        %v1845 = vpack.c.b16 %v1809, %v1806
        %v1846 = vpack.c.b16 %v1810, %v1807
        %v1847 = vpack.c.b16 %v1811, %v1808
        %v1848 = vpack.c.b16 %v1815, %v1812
        %v1849 = vpack.c.b16 %v1816, %v1813
        %v1850 = vpack.c.b16 %v1817, %v1814
        %v1851 = vpack.c.b16 %v1821, %v1818
        %v1852 = vpack.c.b16 %v1822, %v1819
        %v1853 = vpack.c.b16 %v1823, %v1820
        %v1854 = vpack.c.b16 %v1827, %v1824
        %v1855 = vpack.c.b16 %v1828, %v1825
        %v1856 = vpack.c.b16 %v1829, %v1826
        %v1857 = vpack.c.b16 %v1833, %v1830
        %v1858 = vpack.c.b16 %v1834, %v1831
        %v1859 = vpack.c.b16 %v1835, %v1832
        %1884 = vmatprep.subr.bf16.mxu0 %v1837
        %1885 = vmatpush1.bf16.msra.mxu0 %v1836
        %1886 = vmatprep.subr.bf16.mxu0 %v1840
        %1887 = vmatpush1.bf16.msra.mxu0 %v1839
        %1888 = vmatprep.subr.bf16.mxu0 %v1843
        %1889 = vmatpush1.bf16.msra.mxu0 %v1842
        %1890 = vmatprep.subr.bf16.mxu0 %v1846
        %1891 = vmatpush1.bf16.msra.mxu0 %v1845
        %1892 = vmatprep.subr.bf16.mxu0 %v1849
        %1893 = vmatpush1.bf16.msra.mxu0 %v1848
        %1894 = vmatprep.subr.bf16.mxu0 %v1852
        %1895 = vmatpush1.bf16.msra.mxu0 %v1851
        %1896 = vmatprep.subr.bf16.mxu0 %v1855
        %1897 = vmatpush1.bf16.msra.mxu0 %v1854
        %1898 = vmatprep.subr.bf16.mxu0 %v1858
        %1899 = vmatpush1.bf16.msra.mxu0 %v1857
        %1900 = vmatprep.subr.bf16.mxu0 0
        %1901 = vmatpush1.bf16.msra.mxu0 0
        %1902 = vmatprep.subr.bf16.mxu0 0
        %1903 = vmatpush1.bf16.msra.mxu0 0
        %1904 = vmatprep.subr.bf16.mxu0 0
        %1905 = vmatpush1.bf16.msra.mxu0 0
        %1906 = vmatprep.subr.bf16.mxu0 0
        %1907 = vmatpush1.bf16.msra.mxu0 0
        %1908 = vmatprep.subr.bf16.mxu0 0
        %1909 = vmatpush1.bf16.msra.mxu0 0
        %1910 = vmatprep.subr.bf16.mxu0 0
        %1911 = vmatpush1.bf16.msra.mxu0 0
        %1912 = vmatprep.subr.bf16.mxu0 0
        %1913 = vmatpush1.bf16.msra.mxu0 0
        %1914 = vmatprep.subr.bf16.mxu0 0
        %1915 = vmatpush1.bf16.msra.mxu0 0
        %1916 = vmatprep.mubr.bf16.mxu0 0
        %1917 = vmatmul.mubr.bf16.gmra.mrb[0].mxu0 %v1719
        %v1918 = vpop.f32.mrb[0].mxu0
        %v1919 = vadd.f32 0.0, %v1918
        %v1920 = vpop.f32.mrb[0].mxu0
        %v1921 = vadd.f32 0.0, %v1920
        %v1922 = vpop.f32.mrb[0].mxu0
        %v1923 = vadd.f32 0.0, %v1922
        %v1924 = vpop.f32.mrb[0].mxu0
        %v1925 = vadd.f32 0.0, %v1924
        %1926 = vmatprep.mubr.bf16.mxu0 0
        %1927 = vmatmul.mubr.bf16.gmra.mrb[0].mxu0 %v1720
        %v1928 = vpop.f32.mrb[0].mxu0
        %v1929 = vadd.f32 0.0, %v1928
        %v1930 = vpop.f32.mrb[0].mxu0
        %v1931 = vadd.f32 0.0, %v1930
        %v1932 = vpop.f32.mrb[0].mxu0
        %v1933 = vadd.f32 0.0, %v1932
        %v1934 = vpop.f32.mrb[0].mxu0
        %v1935 = vadd.f32 0.0, %v1934
        %1936 = vmatprep.mubr.bf16.mxu0 0
        %1937 = vmatmul.mubr.bf16.gmra.mrb[0].mxu0 %v1721
        %v1938 = vpop.f32.mrb[0].mxu0
        %v1939 = vadd.f32 0.0, %v1938
        %v1940 = vpop.f32.mrb[0].mxu0
        %v1941 = vadd.f32 0.0, %v1940
        %v1942 = vpop.f32.mrb[0].mxu0
        %v1943 = vadd.f32 0.0, %v1942
        %v1944 = vpop.f32.mrb[0].mxu0
        %v1945 = vadd.f32 0.0, %v1944
        %1946 = vmatprep.mubr.bf16.mxu0 0
        %1947 = vmatmul.mubr.bf16.gmra.mrb[0].mxu0 %v1722
        %v1948 = vpop.f32.mrb[0].mxu0
        %v1949 = vadd.f32 0.0, %v1948
        %v1950 = vpop.f32.mrb[0].mxu0
        %v1951 = vadd.f32 0.0, %v1950
        %v1952 = vpop.f32.mrb[0].mxu0
        %v1953 = vadd.f32 0.0, %v1952
        %v1954 = vpop.f32.mrb[0].mxu0
        %v1955 = vadd.f32 0.0, %v1954
        %1956 = vdwg.mxu0
        %1957 = vmatprep.subr.bf16.mxu0 0
        %1958 = vmatpush1.bf16.msra.mxu0 %v1838
        %1959 = vmatprep.subr.bf16.mxu0 0
        %1960 = vmatpush1.bf16.msra.mxu0 %v1841
        %1961 = vmatprep.subr.bf16.mxu0 0
        %1962 = vmatpush1.bf16.msra.mxu0 %v1844
        %1963 = vmatprep.subr.bf16.mxu0 0
        %1964 = vmatpush1.bf16.msra.mxu0 %v1847
        %1965 = vmatprep.subr.bf16.mxu0 0
        %1966 = vmatpush1.bf16.msra.mxu0 %v1850
        %1967 = vmatprep.subr.bf16.mxu0 0
        %1968 = vmatpush1.bf16.msra.mxu0 %v1853
        %1969 = vmatprep.subr.bf16.mxu0 0
        %1970 = vmatpush1.bf16.msra.mxu0 %v1856
        %1971 = vmatprep.subr.bf16.mxu0 0
        %1972 = vmatpush1.bf16.msra.mxu0 %v1859
        %1973 = vmatprep.subr.bf16.mxu0 0
        %1974 = vmatpush1.bf16.msra.mxu0 0
        %1975 = vmatprep.subr.bf16.mxu0 0
        %1976 = vmatpush1.bf16.msra.mxu0 0
        %1977 = vmatprep.subr.bf16.mxu0 0
        %1978 = vmatpush1.bf16.msra.mxu0 0
        %1979 = vmatprep.subr.bf16.mxu0 0
        %1980 = vmatpush1.bf16.msra.mxu0 0
        %1981 = vmatprep.subr.bf16.mxu0 0
        %1982 = vmatpush1.bf16.msra.mxu0 0
        %1983 = vmatprep.subr.bf16.mxu0 0
        %1984 = vmatpush1.bf16.msra.mxu0 0
        %1985 = vmatprep.subr.bf16.mxu0 0
        %1986 = vmatpush1.bf16.msra.mxu0 0
        %1987 = vmatprep.subr.bf16.mxu0 0
        %1988 = vmatpush1.bf16.msra.mxu0 0
        %1989 = vmatprep.mubr.bf16.mxu0 0
        %1990 = vmatmul.mubr.bf16.gmra.mrb[0].mxu0 %v1719
        %v1991 = vpop.f32.mrb[0].mxu0
        %v1992 = vadd.f32 0.0, %v1991
        %v1993 = vpop.f32.mrb[0].mxu0
        %v1994 = vpop.f32.mrb[0].mxu0
        %v1995 = vadd.f32 0.0, %v1994
        %v1996 = vpop.f32.mrb[0].mxu0
        %1997 = vmatprep.mubr.bf16.mxu0 0
        %1998 = vmatmul.mubr.bf16.gmra.mrb[0].mxu0 %v1720
        %v1999 = vpop.f32.mrb[0].mxu0
        %v2000 = vadd.f32 0.0, %v1999
        %v2001 = vpop.f32.mrb[0].mxu0
        %v2002 = vpop.f32.mrb[0].mxu0
        %v2003 = vadd.f32 0.0, %v2002
        %v2004 = vpop.f32.mrb[0].mxu0
        %2005 = vmatprep.mubr.bf16.mxu0 0
        %2006 = vmatmul.mubr.bf16.gmra.mrb[0].mxu0 %v1721
        %v2007 = vpop.f32.mrb[0].mxu0
        %v2008 = vadd.f32 0.0, %v2007
        %v2009 = vpop.f32.mrb[0].mxu0
        %v2010 = vpop.f32.mrb[0].mxu0
        %v2011 = vadd.f32 0.0, %v2010
        %v2012 = vpop.f32.mrb[0].mxu0
        %2013 = vmatprep.mubr.bf16.mxu0 0
        %2014 = vmatmul.mubr.bf16.gmra.mrb[0].mxu0 %v1722
        %v2015 = vpop.f32.mrb[0].mxu0
        %v2016 = vadd.f32 0.0, %v2015
        %v2017 = vpop.f32.mrb[0].mxu0
        %v2018 = vpop.f32.mrb[0].mxu0
        %v2019 = vadd.f32 0.0, %v2018
        %v2020 = vpop.f32.mrb[0].mxu0
        %2021 = vdwg.mxu0
        %v2022 = vrot.slane %v1919, 4
        %v2023 = vrot.slane %v1923, 4
        %v2024 = vrot.slane %v1929, 4
        %v2025 = vrot.slane %v1933, 4
        %v2026 = vrot.slane %v1939, 4
        %v2027 = vrot.slane %v1943, 4
        %v2028 = vrot.slane %v1949, 4
        %v2029 = vrot.slane %v1953, 4
        %v2030 = vsel %vm1496, %v2028, %v2029
        %v2031 = vsel %vm1496, %v2027, %v2028
        %v2032 = vsel %vm1496, %v2026, %v2027
        %v2033 = vsel %vm1496, %v2025, %v2026
        %v2034 = vsel %vm1496, %v2024, %v2025
        %v2035 = vsel %vm1496, %v2023, %v2024
        %v2036 = vsel %vm1496, %v2022, %v2023
        %v2037 = vsel %vm1496, %v2029, %v2022
        %v2038 = vsel %vm1505, %v2037, 0.0
        %v2039 = vsel %vm1506, %v2036, 0.0
        %v2040 = vsel %vm1507, %v2035, 0.0
        %v2041 = vsel %vm1508, %v2034, 0.0
        %v2042 = vsel %vm1509, %v2033, 0.0
        %v2043 = vsel %vm1510, %v2032, 0.0
        %v2044 = vsel %vm1511, %v2031, 0.0
        %v2045 = vsel %vm1512, %v2030, 0.0
        %v2046 = vrot.slane %v1921, 6
        %v2047 = vrot.slane %v1925, 6
        %v2048 = vrot.slane %v1931, 6
        %v2049 = vrot.slane %v1935, 6
        %v2050 = vrot.slane %v1941, 6
        %v2051 = vrot.slane %v1945, 6
        %v2052 = vrot.slane %v1951, 6
        %v2053 = vrot.slane %v1955, 6
        %vm2054 = vcmp.lt.s32.totalorder %v480, 2
        %v2055 = vsel %vm2054, %v2052, %v2053
        %v2056 = vsel %vm2054, %v2051, %v2052
        %v2057 = vsel %vm2054, %v2050, %v2051
        %v2058 = vsel %vm2054, %v2049, %v2050
        %v2059 = vsel %vm2054, %v2048, %v2049
        %v2060 = vsel %vm2054, %v2047, %v2048
        %v2061 = vsel %vm2054, %v2046, %v2047
        %v2062 = vsel %vm2054, %v2053, %v2046
        %vm2063 = vcmp.ge.s32.totalorder %v480, 2
        %vm2064 = vcmp.ge.s32.totalorder %v481, 2
        %vm2065 = vcmp.ge.s32.totalorder %v482, 2
        %vm2066 = vcmp.ge.s32.totalorder %v483, 2
        %vm2067 = vcmp.ge.s32.totalorder %v484, 2
        %vm2068 = vcmp.ge.s32.totalorder %v485, 2
        %vm2069 = vcmp.ge.s32.totalorder %v486, 2
        %vm2070 = vcmp.ge.s32.totalorder %v487, 2
        %v2071 = vsel %vm2063, %v2062, 0.0
        %v2072 = vsel %vm2064, %v2061, 0.0
        %v2073 = vsel %vm2065, %v2060, 0.0
        %v2074 = vsel %vm2066, %v2059, 0.0
        %v2075 = vsel %vm2067, %v2058, 0.0
        %v2076 = vsel %vm2068, %v2057, 0.0
        %v2077 = vsel %vm2069, %v2056, 0.0
        %v2078 = vsel %vm2070, %v2055, 0.0
        %v2079 = vadd.f32 %v2038, %v2071
        %v2080 = vadd.f32 %v2039, %v2072
        %v2081 = vadd.f32 %v2040, %v2073
        %v2082 = vadd.f32 %v2041, %v2074
        %v2083 = vadd.f32 %v2042, %v2075
        %v2084 = vadd.f32 %v2043, %v2076
        %v2085 = vadd.f32 %v2044, %v2077
        %v2086 = vadd.f32 %v2045, %v2078
        %v2087 = vadd.f32 %v2079, %v1992
        %v2088 = vadd.f32 %v2080, %v1995
        %v2089 = vadd.f32 %v2081, %v2000
        %v2090 = vadd.f32 %v2082, %v2003
        %v2091 = vadd.f32 %v2083, %v2008
        %v2092 = vadd.f32 %v2084, %v2011
        %v2093 = vadd.f32 %v2085, %v2016
        %v2094 = vadd.f32 %v2086, %v2019
        %s2095 = scalar_lea.vmem %s5, 2
        %v2096 = vld [vmem:[%s2095] sm:$0x1]
        %v2098 = vlaneseq
        %v2099 = vshrl.u32 %v2098, 7
        %v2100 = vsub.s32 0, %v2099
        %v2101 = vrot.slane %v2096, %v2100
        %v2103 = vadd.f32 %v2087, %v2101
        %v2104 = vadd.f32 %v2088, %v2101
        %v2105 = vadd.f32 %v2089, %v2101
        %v2106 = vadd.f32 %v2090, %v2101
        %v2107 = vadd.f32 %v2091, %v2101
        %v2108 = vadd.f32 %v2092, %v2101
        %v2109 = vadd.f32 %v2093, %v2101
        %v2110 = vadd.f32 %v2094, %v2101
        %v2111 = vmax.f32 %v2103, 0.0
        %v2112 = vmax.f32 %v2104, 0.0
        %v2113 = vmax.f32 %v2105, 0.0
        %v2114 = vmax.f32 %v2106, 0.0
        %v2115 = vmax.f32 %v2107, 0.0
        %v2116 = vmax.f32 %v2108, 0.0
        %v2117 = vmax.f32 %v2109, 0.0
        %v2118 = vmax.f32 %v2110, 0.0
        %v2119 = vpack.c.bf16 %v2112, %v2111
        %v2120 = vpack.c.bf16 %v2114, %v2113
        %v2121 = vpack.c.bf16 %v2116, %v2115
        %v2122 = vpack.c.bf16 %v2118, %v2117
        %s2123 = scalar_lea.vmem [#allocation5], 128
        %v2124 = vld [vmem:[%s2123] sm:$0xf]
        %v2125 = vld [vmem:[%s2123 + $0x4] sm:$0xf]
        %v2126 = vld [vmem:[%s2123 + $0x8] sm:$0xf]
        %v2127 = vld [vmem:[%s2123 + $0xc] sm:$0xf]
        %v2128 = vld [vmem:[%s2123 + $0x10] sm:$0xf]
        %v2129 = vld [vmem:[%s2123 + $0x14] sm:$0xf]
        %v2130 = vld [vmem:[%s2123 + $0x18] sm:$0xf]
        %v2131 = vld [vmem:[%s2123 + $0x1c] sm:$0xf]
        %v2132 = vld [vmem:[%s2123 + $0x20] sm:$0xf]
        %v2133 = vld [vmem:[%s2123 + $0x24] sm:$0xf]
        %v2134 = vld [vmem:[%s2123 + $0x28] sm:$0xf]
        %v2135 = vld [vmem:[%s2123 + $0x2c] sm:$0xf]
        %v2136 = vld [vmem:[%s2123 + $0x30] sm:$0xf]
        %v2137 = vld [vmem:[%s2123 + $0x34] sm:$0xf]
        %v2138 = vld [vmem:[%s2123 + $0x38] sm:$0xf]
        %v2139 = vld [vmem:[%s2123 + $0x3c] sm:$0xf]
        %s2140 = scalar_lea.vmem %s7, 2
        %v2141 = vld [vmem:[%s2140] sm:$0x1]
        %v2143 = vlaneseq
        %v2144 = vshrl.u32 %v2143, 7
        %v2145 = vsub.s32 0, %v2144
        %v2146 = vrot.slane %v2141, %v2145
        %v2164 = vunpack.c.l.b16 %v2124
        %v2165 = vunpack.c.l.b16 %v2125
        %v2166 = vunpack.c.l.b16 %v2126
        %v2167 = vunpack.c.l.b16 %v2127
        %v2168 = vunpack.c.l.b16 %v2128
        %v2169 = vunpack.c.l.b16 %v2129
        %v2170 = vunpack.c.l.b16 %v2130
        %v2171 = vunpack.c.l.b16 %v2131
        %v2172 = vunpack.c.l.b16 %v2132
        %v2173 = vunpack.c.l.b16 %v2133
        %v2174 = vunpack.c.l.b16 %v2134
        %v2175 = vunpack.c.l.b16 %v2135
        %v2176 = vunpack.c.l.b16 %v2136
        %v2177 = vunpack.c.l.b16 %v2137
        %v2178 = vunpack.c.l.b16 %v2138
        %v2179 = vunpack.c.l.b16 %v2139
        %v2180 = vpack.c.b16 %v2165, %v2164
        %v2181 = vpack.c.b16 %v2167, %v2166
        %v2182 = vpack.c.b16 %v2169, %v2168
        %v2183 = vpack.c.b16 %v2171, %v2170
        %v2184 = vpack.c.b16 %v2173, %v2172
        %v2185 = vpack.c.b16 %v2175, %v2174
        %v2186 = vpack.c.b16 %v2177, %v2176
        %v2187 = vpack.c.b16 %v2179, %v2178
        %2196 = vmatprep.subr.bf16.mxu0 0
        %2197 = vmatpush1.bf16.msra.mxu0 %v2180
        %2198 = vmatprep.subr.bf16.mxu0 0
        %2199 = vmatpush1.bf16.msra.mxu0 %v2181
        %2200 = vmatprep.subr.bf16.mxu0 0
        %2201 = vmatpush1.bf16.msra.mxu0 %v2182
        %2202 = vmatprep.subr.bf16.mxu0 0
        %2203 = vmatpush1.bf16.msra.mxu0 %v2183
        %2204 = vmatprep.subr.bf16.mxu0 0
        %2205 = vmatpush1.bf16.msra.mxu0 %v2184
        %2206 = vmatprep.subr.bf16.mxu0 0
        %2207 = vmatpush1.bf16.msra.mxu0 %v2185
        %2208 = vmatprep.subr.bf16.mxu0 0
        %2209 = vmatpush1.bf16.msra.mxu0 %v2186
        %2210 = vmatprep.subr.bf16.mxu0 0
        %2211 = vmatpush1.bf16.msra.mxu0 %v2187
        %2212 = vmatprep.subr.bf16.mxu0 0
        %2213 = vmatpush1.bf16.msra.mxu0 0
        %2214 = vmatprep.subr.bf16.mxu0 0
        %2215 = vmatpush1.bf16.msra.mxu0 0
        %2216 = vmatprep.subr.bf16.mxu0 0
        %2217 = vmatpush1.bf16.msra.mxu0 0
        %2218 = vmatprep.subr.bf16.mxu0 0
        %2219 = vmatpush1.bf16.msra.mxu0 0
        %2220 = vmatprep.subr.bf16.mxu0 0
        %2221 = vmatpush1.bf16.msra.mxu0 0
        %2222 = vmatprep.subr.bf16.mxu0 0
        %2223 = vmatpush1.bf16.msra.mxu0 0
        %2224 = vmatprep.subr.bf16.mxu0 0
        %2225 = vmatpush1.bf16.msra.mxu0 0
        %2226 = vmatprep.subr.bf16.mxu0 0
        %2227 = vmatpush1.bf16.msra.mxu0 0
        %2228 = vmatprep.mubr.bf16.mxu0 0
        %2229 = vmatmul.mubr.bf16.gmra.mrb[0].mxu0 %v2119
        %v2230 = vpop.f32.mrb[0].mxu0
        %v2231 = vadd.f32 %v2146, %v2230
        %v2232 = vpop.f32.mrb[0].mxu0
        %v2233 = vpop.f32.mrb[0].mxu0
        %v2234 = vadd.f32 %v2146, %v2233
        %v2235 = vpop.f32.mrb[0].mxu0
        %2236 = vmatprep.mubr.bf16.mxu0 0
        %2237 = vmatmul.mubr.bf16.gmra.mrb[0].mxu0 %v2120
        %v2238 = vpop.f32.mrb[0].mxu0
        %v2239 = vadd.f32 %v2146, %v2238
        %v2240 = vpop.f32.mrb[0].mxu0
        %v2241 = vpop.f32.mrb[0].mxu0
        %v2242 = vadd.f32 %v2146, %v2241
        %v2243 = vpop.f32.mrb[0].mxu0
        %2244 = vmatprep.mubr.bf16.mxu0 0
        %2245 = vmatmul.mubr.bf16.gmra.mrb[0].mxu0 %v2121
        %v2246 = vpop.f32.mrb[0].mxu0
        %v2247 = vadd.f32 %v2146, %v2246
        %v2248 = vpop.f32.mrb[0].mxu0
        %v2249 = vpop.f32.mrb[0].mxu0
        %v2250 = vadd.f32 %v2146, %v2249
        %v2251 = vpop.f32.mrb[0].mxu0
        %2252 = vmatprep.mubr.bf16.mxu0 0
        %2253 = vmatmul.mubr.bf16.gmra.mrb[0].mxu0 %v2122
        %v2254 = vpop.f32.mrb[0].mxu0
        %v2255 = vadd.f32 %v2146, %v2254
        %v2256 = vpop.f32.mrb[0].mxu0
        %v2257 = vpop.f32.mrb[0].mxu0
        %v2258 = vadd.f32 %v2146, %v2257
        %v2259 = vpop.f32.mrb[0].mxu0
        %2260 = vdwg.mxu0
        %v2261 = vadd.f32 %v1711, %v2231
        %v2262 = vadd.f32 %v1712, %v2234
        %v2263 = vadd.f32 %v1713, %v2239
        %v2264 = vadd.f32 %v1714, %v2242
        %v2265 = vadd.f32 %v1715, %v2247
        %v2266 = vadd.f32 %v1716, %v2250
        %v2267 = vadd.f32 %v1717, %v2255
        %v2268 = vadd.f32 %v1718, %v2258
        %v2269 = vmul.f32 %v2261, %v442
        %v2270 = vmul.f32 %v2262, %v447
        %v2271 = vmul.f32 %v2263, %v452
        %v2272 = vmul.f32 %v2264, %v457
        %v2273 = vmul.f32 %v2265, %v462
        %v2274 = vmul.f32 %v2266, %v467
        %v2275 = vmul.f32 %v2267, %v472
        %v2276 = vmul.f32 %v2268, %v477
        %v2277 = vpack.c.bf16 %v2270, %v2269
        %v2278 = vpack.c.bf16 %v2272, %v2271
        %v2279 = vpack.c.bf16 %v2274, %v2273
        %v2280 = vpack.c.bf16 %v2276, %v2275
        %s2281 = scalar_lea.vmem [#allocation2], 576
        %v2282 = vld [vmem:[%s2281] sm:$0xff]
        %v2283 = vld [vmem:[%s2281 + $0x8] sm:$0xf]
        %v2284 = vld [vmem:[%s2281 + $0xc] sm:$0xff]
        %v2285 = vld [vmem:[%s2281 + $0x14] sm:$0xf]
        %v2286 = vld [vmem:[%s2281 + $0x18] sm:$0xff]
        %v2287 = vld [vmem:[%s2281 + $0x20] sm:$0xf]
        %v2288 = vld [vmem:[%s2281 + $0x24] sm:$0xff]
        %v2289 = vld [vmem:[%s2281 + $0x2c] sm:$0xf]
        %v2290 = vld [vmem:[%s2281 + $0x30] sm:$0xff]
        %v2291 = vld [vmem:[%s2281 + $0x38] sm:$0xf]
        %v2292 = vld [vmem:[%s2281 + $0x3c] sm:$0xff]
        %v2293 = vld [vmem:[%s2281 + $0x44] sm:$0xf]
        %v2294 = vld [vmem:[%s2281 + $0x48] sm:$0xff]
        %v2295 = vld [vmem:[%s2281 + $0x50] sm:$0xf]
        %v2296 = vld [vmem:[%s2281 + $0x54] sm:$0xff]
        %v2297 = vld [vmem:[%s2281 + $0x5c] sm:$0xf]
        %v2298 = vld [vmem:[%s2281 + $0x60] sm:$0xff]
        %v2299 = vld [vmem:[%s2281 + $0x68] sm:$0xf]
        %v2300 = vld [vmem:[%s2281 + $0x6c] sm:$0xff]
        %v2301 = vld [vmem:[%s2281 + $0x74] sm:$0xf]
        %v2302 = vld [vmem:[%s2281 + $0x78] sm:$0xff]
        %v2303 = vld [vmem:[%s2281 + $0x80] sm:$0xf]
        %v2304 = vld [vmem:[%s2281 + $0x84] sm:$0xff]
        %v2305 = vld [vmem:[%s2281 + $0x8c] sm:$0xf]
        %v2306 = vld [vmem:[%s2281 + $0x90] sm:$0xff]
        %v2307 = vld [vmem:[%s2281 + $0x98] sm:$0xf]
        %v2308 = vld [vmem:[%s2281 + $0x9c] sm:$0xff]
        %v2309 = vld [vmem:[%s2281 + $0xa4] sm:$0xf]
        %v2310 = vld [vmem:[%s2281 + $0xa8] sm:$0xff]
        %v2311 = vld [vmem:[%s2281 + $0xb0] sm:$0xf]
        %v2312 = vld [vmem:[%s2281 + $0xb4] sm:$0xff]
        %v2313 = vld [vmem:[%s2281 + $0xbc] sm:$0xf]
        %v2346 = vunpack.c.l.b16 %v2282
        %v2347 = vunpack.c.h.b16 %v2282
        %v2348 = vunpack.c.l.b16 %v2283
        %v2349 = vunpack.c.l.b16 %v2284
        %v2350 = vunpack.c.h.b16 %v2284
        %v2351 = vunpack.c.l.b16 %v2285
        %v2352 = vunpack.c.l.b16 %v2286
        %v2353 = vunpack.c.h.b16 %v2286
        %v2354 = vunpack.c.l.b16 %v2287
        %v2355 = vunpack.c.l.b16 %v2288
        %v2356 = vunpack.c.h.b16 %v2288
        %v2357 = vunpack.c.l.b16 %v2289
        %v2358 = vunpack.c.l.b16 %v2290
        %v2359 = vunpack.c.h.b16 %v2290
        %v2360 = vunpack.c.l.b16 %v2291
        %v2361 = vunpack.c.l.b16 %v2292
        %v2362 = vunpack.c.h.b16 %v2292
        %v2363 = vunpack.c.l.b16 %v2293
        %v2364 = vunpack.c.l.b16 %v2294
        %v2365 = vunpack.c.h.b16 %v2294
        %v2366 = vunpack.c.l.b16 %v2295
        %v2367 = vunpack.c.l.b16 %v2296
        %v2368 = vunpack.c.h.b16 %v2296
        %v2369 = vunpack.c.l.b16 %v2297
        %v2370 = vunpack.c.l.b16 %v2298
        %v2371 = vunpack.c.h.b16 %v2298
        %v2372 = vunpack.c.l.b16 %v2299
        %v2373 = vunpack.c.l.b16 %v2300
        %v2374 = vunpack.c.h.b16 %v2300
        %v2375 = vunpack.c.l.b16 %v2301
        %v2376 = vunpack.c.l.b16 %v2302
        %v2377 = vunpack.c.h.b16 %v2302
        %v2378 = vunpack.c.l.b16 %v2303
        %v2379 = vunpack.c.l.b16 %v2304
        %v2380 = vunpack.c.h.b16 %v2304
        %v2381 = vunpack.c.l.b16 %v2305
        %v2382 = vunpack.c.l.b16 %v2306
        %v2383 = vunpack.c.h.b16 %v2306
        %v2384 = vunpack.c.l.b16 %v2307
        %v2385 = vunpack.c.l.b16 %v2308
        %v2386 = vunpack.c.h.b16 %v2308
        %v2387 = vunpack.c.l.b16 %v2309
        %v2388 = vunpack.c.l.b16 %v2310
        %v2389 = vunpack.c.h.b16 %v2310
        %v2390 = vunpack.c.l.b16 %v2311
        %v2391 = vunpack.c.l.b16 %v2312
        %v2392 = vunpack.c.h.b16 %v2312
        %v2393 = vunpack.c.l.b16 %v2313
        %v2394 = vpack.c.b16 %v2349, %v2346
        %v2395 = vpack.c.b16 %v2350, %v2347
        %v2396 = vpack.c.b16 %v2351, %v2348
        %v2397 = vpack.c.b16 %v2355, %v2352
        %v2398 = vpack.c.b16 %v2356, %v2353
        %v2399 = vpack.c.b16 %v2357, %v2354
        %v2400 = vpack.c.b16 %v2361, %v2358
        %v2401 = vpack.c.b16 %v2362, %v2359
        %v2402 = vpack.c.b16 %v2363, %v2360
        %v2403 = vpack.c.b16 %v2367, %v2364
        %v2404 = vpack.c.b16 %v2368, %v2365
        %v2405 = vpack.c.b16 %v2369, %v2366
        %v2406 = vpack.c.b16 %v2373, %v2370
        %v2407 = vpack.c.b16 %v2374, %v2371
        %v2408 = vpack.c.b16 %v2375, %v2372
        %v2409 = vpack.c.b16 %v2379, %v2376
        %v2410 = vpack.c.b16 %v2380, %v2377
        %v2411 = vpack.c.b16 %v2381, %v2378
        %v2412 = vpack.c.b16 %v2385, %v2382
        %v2413 = vpack.c.b16 %v2386, %v2383
        %v2414 = vpack.c.b16 %v2387, %v2384
        %v2415 = vpack.c.b16 %v2391, %v2388
        %v2416 = vpack.c.b16 %v2392, %v2389
        %v2417 = vpack.c.b16 %v2393, %v2390
        %2442 = vmatprep.subr.bf16.mxu0 %v2395
        %2443 = vmatpush1.bf16.msra.mxu0 %v2394
        %2444 = vmatprep.subr.bf16.mxu0 %v2398
        %2445 = vmatpush1.bf16.msra.mxu0 %v2397
        %2446 = vmatprep.subr.bf16.mxu0 %v2401
        %2447 = vmatpush1.bf16.msra.mxu0 %v2400
        %2448 = vmatprep.subr.bf16.mxu0 %v2404
        %2449 = vmatpush1.bf16.msra.mxu0 %v2403
        %2450 = vmatprep.subr.bf16.mxu0 %v2407
        %2451 = vmatpush1.bf16.msra.mxu0 %v2406
        %2452 = vmatprep.subr.bf16.mxu0 %v2410
        %2453 = vmatpush1.bf16.msra.mxu0 %v2409
        %2454 = vmatprep.subr.bf16.mxu0 %v2413
        %2455 = vmatpush1.bf16.msra.mxu0 %v2412
        %2456 = vmatprep.subr.bf16.mxu0 %v2416
        %2457 = vmatpush1.bf16.msra.mxu0 %v2415
        %2458 = vmatprep.subr.bf16.mxu0 0
        %2459 = vmatpush1.bf16.msra.mxu0 0
        %2460 = vmatprep.subr.bf16.mxu0 0
        %2461 = vmatpush1.bf16.msra.mxu0 0
        %2462 = vmatprep.subr.bf16.mxu0 0
        %2463 = vmatpush1.bf16.msra.mxu0 0
        %2464 = vmatprep.subr.bf16.mxu0 0
        %2465 = vmatpush1.bf16.msra.mxu0 0
        %2466 = vmatprep.subr.bf16.mxu0 0
        %2467 = vmatpush1.bf16.msra.mxu0 0
        %2468 = vmatprep.subr.bf16.mxu0 0
        %2469 = vmatpush1.bf16.msra.mxu0 0
        %2470 = vmatprep.subr.bf16.mxu0 0
        %2471 = vmatpush1.bf16.msra.mxu0 0
        %2472 = vmatprep.subr.bf16.mxu0 0
        %2473 = vmatpush1.bf16.msra.mxu0 0
        %2474 = vmatprep.mubr.bf16.mxu0 0
        %2475 = vmatmul.mubr.bf16.gmra.mrb[0].mxu0 %v2277
        %v2476 = vpop.f32.mrb[0].mxu0
        %v2477 = vadd.f32 0.0, %v2476
        %v2478 = vpop.f32.mrb[0].mxu0
        %v2479 = vadd.f32 0.0, %v2478
        %v2480 = vpop.f32.mrb[0].mxu0
        %v2481 = vadd.f32 0.0, %v2480
        %v2482 = vpop.f32.mrb[0].mxu0
        %v2483 = vadd.f32 0.0, %v2482
        %2484 = vmatprep.mubr.bf16.mxu0 0
        %2485 = vmatmul.mubr.bf16.gmra.mrb[0].mxu0 %v2278
        %v2486 = vpop.f32.mrb[0].mxu0
        %v2487 = vadd.f32 0.0, %v2486
        %v2488 = vpop.f32.mrb[0].mxu0
        %v2489 = vadd.f32 0.0, %v2488
        %v2490 = vpop.f32.mrb[0].mxu0
        %v2491 = vadd.f32 0.0, %v2490
        %v2492 = vpop.f32.mrb[0].mxu0
        %v2493 = vadd.f32 0.0, %v2492
        %2494 = vmatprep.mubr.bf16.mxu0 0
        %2495 = vmatmul.mubr.bf16.gmra.mrb[0].mxu0 %v2279
        %v2496 = vpop.f32.mrb[0].mxu0
        %v2497 = vadd.f32 0.0, %v2496
        %v2498 = vpop.f32.mrb[0].mxu0
        %v2499 = vadd.f32 0.0, %v2498
        %v2500 = vpop.f32.mrb[0].mxu0
        %v2501 = vadd.f32 0.0, %v2500
        %v2502 = vpop.f32.mrb[0].mxu0
        %v2503 = vadd.f32 0.0, %v2502
        %2504 = vmatprep.mubr.bf16.mxu0 0
        %2505 = vmatmul.mubr.bf16.gmra.mrb[0].mxu0 %v2280
        %v2506 = vpop.f32.mrb[0].mxu0
        %v2507 = vadd.f32 0.0, %v2506
        %v2508 = vpop.f32.mrb[0].mxu0
        %v2509 = vadd.f32 0.0, %v2508
        %v2510 = vpop.f32.mrb[0].mxu0
        %v2511 = vadd.f32 0.0, %v2510
        %v2512 = vpop.f32.mrb[0].mxu0
        %v2513 = vadd.f32 0.0, %v2512
        %2514 = vdwg.mxu0
        %2515 = vmatprep.subr.bf16.mxu0 0
        %2516 = vmatpush1.bf16.msra.mxu0 %v2396
        %2517 = vmatprep.subr.bf16.mxu0 0
        %2518 = vmatpush1.bf16.msra.mxu0 %v2399
        %2519 = vmatprep.subr.bf16.mxu0 0
        %2520 = vmatpush1.bf16.msra.mxu0 %v2402
        %2521 = vmatprep.subr.bf16.mxu0 0
        %2522 = vmatpush1.bf16.msra.mxu0 %v2405
        %2523 = vmatprep.subr.bf16.mxu0 0
        %2524 = vmatpush1.bf16.msra.mxu0 %v2408
        %2525 = vmatprep.subr.bf16.mxu0 0
        %2526 = vmatpush1.bf16.msra.mxu0 %v2411
        %2527 = vmatprep.subr.bf16.mxu0 0
        %2528 = vmatpush1.bf16.msra.mxu0 %v2414
        %2529 = vmatprep.subr.bf16.mxu0 0
        %2530 = vmatpush1.bf16.msra.mxu0 %v2417
        %2531 = vmatprep.subr.bf16.mxu0 0
        %2532 = vmatpush1.bf16.msra.mxu0 0
        %2533 = vmatprep.subr.bf16.mxu0 0
        %2534 = vmatpush1.bf16.msra.mxu0 0
        %2535 = vmatprep.subr.bf16.mxu0 0
        %2536 = vmatpush1.bf16.msra.mxu0 0
        %2537 = vmatprep.subr.bf16.mxu0 0
        %2538 = vmatpush1.bf16.msra.mxu0 0
        %2539 = vmatprep.subr.bf16.mxu0 0
        %2540 = vmatpush1.bf16.msra.mxu0 0
        %2541 = vmatprep.subr.bf16.mxu0 0
        %2542 = vmatpush1.bf16.msra.mxu0 0
        %2543 = vmatprep.subr.bf16.mxu0 0
        %2544 = vmatpush1.bf16.msra.mxu0 0
        %2545 = vmatprep.subr.bf16.mxu0 0
        %2546 = vmatpush1.bf16.msra.mxu0 0
        %2547 = vmatprep.mubr.bf16.mxu0 0
        %2548 = vmatmul.mubr.bf16.gmra.mrb[0].mxu0 %v2277
        %v2549 = vpop.f32.mrb[0].mxu0
        %v2550 = vadd.f32 0.0, %v2549
        %v2551 = vpop.f32.mrb[0].mxu0
        %v2552 = vpop.f32.mrb[0].mxu0
        %v2553 = vadd.f32 0.0, %v2552
        %v2554 = vpop.f32.mrb[0].mxu0
        %2555 = vmatprep.mubr.bf16.mxu0 0
        %2556 = vmatmul.mubr.bf16.gmra.mrb[0].mxu0 %v2278
        %v2557 = vpop.f32.mrb[0].mxu0
        %v2558 = vadd.f32 0.0, %v2557
        %v2559 = vpop.f32.mrb[0].mxu0
        %v2560 = vpop.f32.mrb[0].mxu0
        %v2561 = vadd.f32 0.0, %v2560
        %v2562 = vpop.f32.mrb[0].mxu0
        %2563 = vmatprep.mubr.bf16.mxu0 0
        %2564 = vmatmul.mubr.bf16.gmra.mrb[0].mxu0 %v2279
        %v2565 = vpop.f32.mrb[0].mxu0
        %v2566 = vadd.f32 0.0, %v2565
        %v2567 = vpop.f32.mrb[0].mxu0
        %v2568 = vpop.f32.mrb[0].mxu0
        %v2569 = vadd.f32 0.0, %v2568
        %v2570 = vpop.f32.mrb[0].mxu0
        %2571 = vmatprep.mubr.bf16.mxu0 0
        %2572 = vmatmul.mubr.bf16.gmra.mrb[0].mxu0 %v2280
        %v2573 = vpop.f32.mrb[0].mxu0
        %v2574 = vadd.f32 0.0, %v2573
        %v2575 = vpop.f32.mrb[0].mxu0
        %v2576 = vpop.f32.mrb[0].mxu0
        %v2577 = vadd.f32 0.0, %v2576
        %v2578 = vpop.f32.mrb[0].mxu0
        %2579 = vdwg.mxu0
        %v2580 = vrot.slane %v2477, 6
        %v2581 = vrot.slane %v2481, 6
        %v2582 = vrot.slane %v2487, 6
        %v2583 = vrot.slane %v2491, 6
        %v2584 = vrot.slane %v2497, 6
        %v2585 = vrot.slane %v2501, 6
        %v2586 = vrot.slane %v2507, 6
        %v2587 = vrot.slane %v2511, 6
        %v2588 = vsel %vm2054, %v2586, %v2587
        %v2589 = vsel %vm2054, %v2585, %v2586
        %v2590 = vsel %vm2054, %v2584, %v2585
        %v2591 = vsel %vm2054, %v2583, %v2584
        %v2592 = vsel %vm2054, %v2582, %v2583
        %v2593 = vsel %vm2054, %v2581, %v2582
        %v2594 = vsel %vm2054, %v2580, %v2581
        %v2595 = vsel %vm2054, %v2587, %v2580
        %v2596 = vsel %vm2063, %v2595, 0.0
        %v2597 = vsel %vm2064, %v2594, 0.0
        %v2598 = vsel %vm2065, %v2593, 0.0
        %v2599 = vsel %vm2066, %v2592, 0.0
        %v2600 = vsel %vm2067, %v2591, 0.0
        %v2601 = vsel %vm2068, %v2590, 0.0
        %v2602 = vsel %vm2069, %v2589, 0.0
        %v2603 = vsel %vm2070, %v2588, 0.0
        %v2604 = vrot.slane %v2479, 7
        %v2605 = vrot.slane %v2483, 7
        %v2606 = vrot.slane %v2489, 7
        %v2607 = vrot.slane %v2493, 7
        %v2608 = vrot.slane %v2499, 7
        %v2609 = vrot.slane %v2503, 7
        %v2610 = vrot.slane %v2509, 7
        %v2611 = vrot.slane %v2513, 7
        %vm2612 = vcmp.lt.s32.totalorder %v480, 1
        %v2613 = vsel %vm2612, %v2610, %v2611
        %v2614 = vsel %vm2612, %v2609, %v2610
        %v2615 = vsel %vm2612, %v2608, %v2609
        %v2616 = vsel %vm2612, %v2607, %v2608
        %v2617 = vsel %vm2612, %v2606, %v2607
        %v2618 = vsel %vm2612, %v2605, %v2606
        %v2619 = vsel %vm2612, %v2604, %v2605
        %v2620 = vsel %vm2612, %v2611, %v2604
        %vm2621 = vcmp.ge.s32.totalorder %v480, 1
        %vm2622 = vcmp.ge.s32.totalorder %v481, 1
        %vm2623 = vcmp.ge.s32.totalorder %v482, 1
        %vm2624 = vcmp.ge.s32.totalorder %v483, 1
        %vm2625 = vcmp.ge.s32.totalorder %v484, 1
        %vm2626 = vcmp.ge.s32.totalorder %v485, 1
        %vm2627 = vcmp.ge.s32.totalorder %v486, 1
        %vm2628 = vcmp.ge.s32.totalorder %v487, 1
        %v2629 = vsel %vm2621, %v2620, 0.0
        %v2630 = vsel %vm2622, %v2619, 0.0
        %v2631 = vsel %vm2623, %v2618, 0.0
        %v2632 = vsel %vm2624, %v2617, 0.0
        %v2633 = vsel %vm2625, %v2616, 0.0
        %v2634 = vsel %vm2626, %v2615, 0.0
        %v2635 = vsel %vm2627, %v2614, 0.0
        %v2636 = vsel %vm2628, %v2613, 0.0
        %v2637 = vadd.f32 %v2596, %v2629
        %v2638 = vadd.f32 %v2597, %v2630
        %v2639 = vadd.f32 %v2598, %v2631
        %v2640 = vadd.f32 %v2599, %v2632
        %v2641 = vadd.f32 %v2600, %v2633
        %v2642 = vadd.f32 %v2601, %v2634
        %v2643 = vadd.f32 %v2602, %v2635
        %v2644 = vadd.f32 %v2603, %v2636
        %v2645 = vadd.f32 %v2637, %v2550
        %v2646 = vadd.f32 %v2638, %v2553
        %v2647 = vadd.f32 %v2639, %v2558
        %v2648 = vadd.f32 %v2640, %v2561
        %v2649 = vadd.f32 %v2641, %v2566
        %v2650 = vadd.f32 %v2642, %v2569
        %v2651 = vadd.f32 %v2643, %v2574
        %v2652 = vadd.f32 %v2644, %v2577
        %s2653 = scalar_lea.vmem %s5, 3
        %v2654 = vld [vmem:[%s2653] sm:$0x1]
        %v2656 = vlaneseq
        %v2657 = vshrl.u32 %v2656, 7
        %v2658 = vsub.s32 0, %v2657
        %v2659 = vrot.slane %v2654, %v2658
        %v2661 = vadd.f32 %v2645, %v2659
        %v2662 = vadd.f32 %v2646, %v2659
        %v2663 = vadd.f32 %v2647, %v2659
        %v2664 = vadd.f32 %v2648, %v2659
        %v2665 = vadd.f32 %v2649, %v2659
        %v2666 = vadd.f32 %v2650, %v2659
        %v2667 = vadd.f32 %v2651, %v2659
        %v2668 = vadd.f32 %v2652, %v2659
        %v2669 = vmax.f32 %v2661, 0.0
        %v2670 = vmax.f32 %v2662, 0.0
        %v2671 = vmax.f32 %v2663, 0.0
        %v2672 = vmax.f32 %v2664, 0.0
        %v2673 = vmax.f32 %v2665, 0.0
        %v2674 = vmax.f32 %v2666, 0.0
        %v2675 = vmax.f32 %v2667, 0.0
        %v2676 = vmax.f32 %v2668, 0.0
        %v2677 = vpack.c.bf16 %v2670, %v2669
        %v2678 = vpack.c.bf16 %v2672, %v2671
        %v2679 = vpack.c.bf16 %v2674, %v2673
        %v2680 = vpack.c.bf16 %v2676, %v2675
        %s2681 = scalar_lea.vmem [#allocation5], 192
        %v2682 = vld [vmem:[%s2681] sm:$0xf]
        %v2683 = vld [vmem:[%s2681 + $0x4] sm:$0xf]
        %v2684 = vld [vmem:[%s2681 + $0x8] sm:$0xf]
        %v2685 = vld [vmem:[%s2681 + $0xc] sm:$0xf]
        %v2686 = vld [vmem:[%s2681 + $0x10] sm:$0xf]
        %v2687 = vld [vmem:[%s2681 + $0x14] sm:$0xf]
        %v2688 = vld [vmem:[%s2681 + $0x18] sm:$0xf]
        %v2689 = vld [vmem:[%s2681 + $0x1c] sm:$0xf]
        %v2690 = vld [vmem:[%s2681 + $0x20] sm:$0xf]
        %v2691 = vld [vmem:[%s2681 + $0x24] sm:$0xf]
        %v2692 = vld [vmem:[%s2681 + $0x28] sm:$0xf]
        %v2693 = vld [vmem:[%s2681 + $0x2c] sm:$0xf]
        %v2694 = vld [vmem:[%s2681 + $0x30] sm:$0xf]
        %v2695 = vld [vmem:[%s2681 + $0x34] sm:$0xf]
        %v2696 = vld [vmem:[%s2681 + $0x38] sm:$0xf]
        %v2697 = vld [vmem:[%s2681 + $0x3c] sm:$0xf]
        %s2698 = scalar_lea.vmem %s7, 3
        %v2699 = vld [vmem:[%s2698] sm:$0x1]
        %v2701 = vlaneseq
        %v2702 = vshrl.u32 %v2701, 7
        %v2703 = vsub.s32 0, %v2702
        %v2704 = vrot.slane %v2699, %v2703
        %v2722 = vunpack.c.l.b16 %v2682
        %v2723 = vunpack.c.l.b16 %v2683
        %v2724 = vunpack.c.l.b16 %v2684
        %v2725 = vunpack.c.l.b16 %v2685
        %v2726 = vunpack.c.l.b16 %v2686
        %v2727 = vunpack.c.l.b16 %v2687
        %v2728 = vunpack.c.l.b16 %v2688
        %v2729 = vunpack.c.l.b16 %v2689
        %v2730 = vunpack.c.l.b16 %v2690
        %v2731 = vunpack.c.l.b16 %v2691
        %v2732 = vunpack.c.l.b16 %v2692
        %v2733 = vunpack.c.l.b16 %v2693
        %v2734 = vunpack.c.l.b16 %v2694
        %v2735 = vunpack.c.l.b16 %v2695
        %v2736 = vunpack.c.l.b16 %v2696
        %v2737 = vunpack.c.l.b16 %v2697
        %v2738 = vpack.c.b16 %v2723, %v2722
        %v2739 = vpack.c.b16 %v2725, %v2724
        %v2740 = vpack.c.b16 %v2727, %v2726
        %v2741 = vpack.c.b16 %v2729, %v2728
        %v2742 = vpack.c.b16 %v2731, %v2730
        %v2743 = vpack.c.b16 %v2733, %v2732
        %v2744 = vpack.c.b16 %v2735, %v2734
        %v2745 = vpack.c.b16 %v2737, %v2736
        %2754 = vmatprep.subr.bf16.mxu0 0
        %2755 = vmatpush1.bf16.msra.mxu0 %v2738
        %2756 = vmatprep.subr.bf16.mxu0 0
        %2757 = vmatpush1.bf16.msra.mxu0 %v2739
        %2758 = vmatprep.subr.bf16.mxu0 0
        %2759 = vmatpush1.bf16.msra.mxu0 %v2740
        %2760 = vmatprep.subr.bf16.mxu0 0
        %2761 = vmatpush1.bf16.msra.mxu0 %v2741
        %2762 = vmatprep.subr.bf16.mxu0 0
        %2763 = vmatpush1.bf16.msra.mxu0 %v2742
        %2764 = vmatprep.subr.bf16.mxu0 0
        %2765 = vmatpush1.bf16.msra.mxu0 %v2743
        %2766 = vmatprep.subr.bf16.mxu0 0
        %2767 = vmatpush1.bf16.msra.mxu0 %v2744
        %2768 = vmatprep.subr.bf16.mxu0 0
        %2769 = vmatpush1.bf16.msra.mxu0 %v2745
        %2770 = vmatprep.subr.bf16.mxu0 0
        %2771 = vmatpush1.bf16.msra.mxu0 0
        %2772 = vmatprep.subr.bf16.mxu0 0
        %2773 = vmatpush1.bf16.msra.mxu0 0
        %2774 = vmatprep.subr.bf16.mxu0 0
        %2775 = vmatpush1.bf16.msra.mxu0 0
        %2776 = vmatprep.subr.bf16.mxu0 0
        %2777 = vmatpush1.bf16.msra.mxu0 0
        %2778 = vmatprep.subr.bf16.mxu0 0
        %2779 = vmatpush1.bf16.msra.mxu0 0
        %2780 = vmatprep.subr.bf16.mxu0 0
        %2781 = vmatpush1.bf16.msra.mxu0 0
        %2782 = vmatprep.subr.bf16.mxu0 0
        %2783 = vmatpush1.bf16.msra.mxu0 0
        %2784 = vmatprep.subr.bf16.mxu0 0
        %2785 = vmatpush1.bf16.msra.mxu0 0
        %2786 = vmatprep.mubr.bf16.mxu0 0
        %2787 = vmatmul.mubr.bf16.gmra.mrb[0].mxu0 %v2677
        %v2788 = vpop.f32.mrb[0].mxu0
        %v2789 = vadd.f32 %v2704, %v2788
        %v2790 = vpop.f32.mrb[0].mxu0
        %v2791 = vpop.f32.mrb[0].mxu0
        %v2792 = vadd.f32 %v2704, %v2791
        %v2793 = vpop.f32.mrb[0].mxu0
        %2794 = vmatprep.mubr.bf16.mxu0 0
        %2795 = vmatmul.mubr.bf16.gmra.mrb[0].mxu0 %v2678
        %v2796 = vpop.f32.mrb[0].mxu0
        %v2797 = vadd.f32 %v2704, %v2796
        %v2798 = vpop.f32.mrb[0].mxu0
        %v2799 = vpop.f32.mrb[0].mxu0
        %v2800 = vadd.f32 %v2704, %v2799
        %v2801 = vpop.f32.mrb[0].mxu0
        %2802 = vmatprep.mubr.bf16.mxu0 0
        %2803 = vmatmul.mubr.bf16.gmra.mrb[0].mxu0 %v2679
        %v2804 = vpop.f32.mrb[0].mxu0
        %v2805 = vadd.f32 %v2704, %v2804
        %v2806 = vpop.f32.mrb[0].mxu0
        %v2807 = vpop.f32.mrb[0].mxu0
        %v2808 = vadd.f32 %v2704, %v2807
        %v2809 = vpop.f32.mrb[0].mxu0
        %2810 = vmatprep.mubr.bf16.mxu0 0
        %2811 = vmatmul.mubr.bf16.gmra.mrb[0].mxu0 %v2680
        %v2812 = vpop.f32.mrb[0].mxu0
        %v2813 = vadd.f32 %v2704, %v2812
        %v2814 = vpop.f32.mrb[0].mxu0
        %v2815 = vpop.f32.mrb[0].mxu0
        %v2816 = vadd.f32 %v2704, %v2815
        %v2817 = vpop.f32.mrb[0].mxu0
        %2818 = vdwg.mxu0
        %v2819 = vadd.f32 %v2269, %v2789
        %v2820 = vadd.f32 %v2270, %v2792
        %v2821 = vadd.f32 %v2271, %v2797
        %v2822 = vadd.f32 %v2272, %v2800
        %v2823 = vadd.f32 %v2273, %v2805
        %v2824 = vadd.f32 %v2274, %v2808
        %v2825 = vadd.f32 %v2275, %v2813
        %v2826 = vadd.f32 %v2276, %v2816
        %v2827 = vmul.f32 %v2819, %v442
        %v2828 = vmul.f32 %v2820, %v447
        %v2829 = vmul.f32 %v2821, %v452
        %v2830 = vmul.f32 %v2822, %v457
        %v2831 = vmul.f32 %v2823, %v462
        %v2832 = vmul.f32 %v2824, %v467
        %v2833 = vmul.f32 %v2825, %v472
        %v2834 = vmul.f32 %v2826, %v477
        %v2835 = vpack.c.bf16 %v2828, %v2827
        %v2836 = vpack.c.bf16 %v2830, %v2829
        %v2837 = vpack.c.bf16 %v2832, %v2831
        %v2838 = vpack.c.bf16 %v2834, %v2833
        %v2839 = vld [vmem:[#allocation7] sm:$0xf]
        %v2840 = vld [vmem:[#allocation7 + $0x4] sm:$0xf]
        %v2841 = vld [vmem:[#allocation7 + $0x8] sm:$0xf]
        %v2842 = vld [vmem:[#allocation7 + $0xc] sm:$0xf]
        %v2843 = vld [vmem:[#allocation7 + $0x10] sm:$0xf]
        %v2844 = vld [vmem:[#allocation7 + $0x14] sm:$0xf]
        %v2845 = vld [vmem:[#allocation7 + $0x18] sm:$0xf]
        %v2846 = vld [vmem:[#allocation7 + $0x1c] sm:$0xf]
        %v2847 = vld [vmem:[#allocation7 + $0x20] sm:$0xf]
        %v2848 = vld [vmem:[#allocation7 + $0x24] sm:$0xf]
        %v2849 = vld [vmem:[#allocation7 + $0x28] sm:$0xf]
        %v2850 = vld [vmem:[#allocation7 + $0x2c] sm:$0xf]
        %v2851 = vld [vmem:[#allocation7 + $0x30] sm:$0xf]
        %v2852 = vld [vmem:[#allocation7 + $0x34] sm:$0xf]
        %v2853 = vld [vmem:[#allocation7 + $0x38] sm:$0xf]
        %v2854 = vld [vmem:[#allocation7 + $0x3c] sm:$0xf]
        %v2855 = vld [vmem:[%s9] sm:$0x1]
        %v2857 = vlaneseq
        %v2858 = vshrl.u32 %v2857, 7
        %v2859 = vsub.s32 0, %v2858
        %v2860 = vrot.slane %v2855, %v2859
        %v2878 = vunpack.c.l.b16 %v2839
        %v2879 = vunpack.c.l.b16 %v2840
        %v2880 = vunpack.c.l.b16 %v2841
        %v2881 = vunpack.c.l.b16 %v2842
        %v2882 = vunpack.c.l.b16 %v2843
        %v2883 = vunpack.c.l.b16 %v2844
        %v2884 = vunpack.c.l.b16 %v2845
        %v2885 = vunpack.c.l.b16 %v2846
        %v2886 = vunpack.c.l.b16 %v2847
        %v2887 = vunpack.c.l.b16 %v2848
        %v2888 = vunpack.c.l.b16 %v2849
        %v2889 = vunpack.c.l.b16 %v2850
        %v2890 = vunpack.c.l.b16 %v2851
        %v2891 = vunpack.c.l.b16 %v2852
        %v2892 = vunpack.c.l.b16 %v2853
        %v2893 = vunpack.c.l.b16 %v2854
        %v2894 = vpack.c.b16 %v2879, %v2878
        %v2895 = vpack.c.b16 %v2881, %v2880
        %v2896 = vpack.c.b16 %v2883, %v2882
        %v2897 = vpack.c.b16 %v2885, %v2884
        %v2898 = vpack.c.b16 %v2887, %v2886
        %v2899 = vpack.c.b16 %v2889, %v2888
        %v2900 = vpack.c.b16 %v2891, %v2890
        %v2901 = vpack.c.b16 %v2893, %v2892
        %2910 = vmatprep.subr.bf16.mxu0 0
        %2911 = vmatpush1.bf16.msra.mxu0 %v2894
        %2912 = vmatprep.subr.bf16.mxu0 0
        %2913 = vmatpush1.bf16.msra.mxu0 %v2895
        %2914 = vmatprep.subr.bf16.mxu0 0
        %2915 = vmatpush1.bf16.msra.mxu0 %v2896
        %2916 = vmatprep.subr.bf16.mxu0 0
        %2917 = vmatpush1.bf16.msra.mxu0 %v2897
        %2918 = vmatprep.subr.bf16.mxu0 0
        %2919 = vmatpush1.bf16.msra.mxu0 %v2898
        %2920 = vmatprep.subr.bf16.mxu0 0
        %2921 = vmatpush1.bf16.msra.mxu0 %v2899
        %2922 = vmatprep.subr.bf16.mxu0 0
        %2923 = vmatpush1.bf16.msra.mxu0 %v2900
        %2924 = vmatprep.subr.bf16.mxu0 0
        %2925 = vmatpush1.bf16.msra.mxu0 %v2901
        %2926 = vmatprep.subr.bf16.mxu0 0
        %2927 = vmatpush1.bf16.msra.mxu0 0
        %2928 = vmatprep.subr.bf16.mxu0 0
        %2929 = vmatpush1.bf16.msra.mxu0 0
        %2930 = vmatprep.subr.bf16.mxu0 0
        %2931 = vmatpush1.bf16.msra.mxu0 0
        %2932 = vmatprep.subr.bf16.mxu0 0
        %2933 = vmatpush1.bf16.msra.mxu0 0
        %2934 = vmatprep.subr.bf16.mxu0 0
        %2935 = vmatpush1.bf16.msra.mxu0 0
        %2936 = vmatprep.subr.bf16.mxu0 0
        %2937 = vmatpush1.bf16.msra.mxu0 0
        %2938 = vmatprep.subr.bf16.mxu0 0
        %2939 = vmatpush1.bf16.msra.mxu0 0
        %2940 = vmatprep.subr.bf16.mxu0 0
        %2941 = vmatpush1.bf16.msra.mxu0 0
        %2942 = vmatprep.mubr.bf16.mxu0 0
        %2943 = vmatmul.mubr.bf16.gmra.mrb[0].mxu0 %v2835
        %v2944 = vpop.f32.mrb[0].mxu0
        %v2945 = vadd.f32 %v2860, %v2944
        %v2946 = vpop.f32.mrb[0].mxu0
        %v2947 = vpop.f32.mrb[0].mxu0
        %v2948 = vadd.f32 %v2860, %v2947
        %v2949 = vpop.f32.mrb[0].mxu0
        %2950 = vmatprep.mubr.bf16.mxu0 0
        %2951 = vmatmul.mubr.bf16.gmra.mrb[0].mxu0 %v2836
        %v2952 = vpop.f32.mrb[0].mxu0
        %v2953 = vadd.f32 %v2860, %v2952
        %v2954 = vpop.f32.mrb[0].mxu0
        %v2955 = vpop.f32.mrb[0].mxu0
        %v2956 = vadd.f32 %v2860, %v2955
        %v2957 = vpop.f32.mrb[0].mxu0
        %2958 = vmatprep.mubr.bf16.mxu0 0
        %2959 = vmatmul.mubr.bf16.gmra.mrb[0].mxu0 %v2837
        %v2960 = vpop.f32.mrb[0].mxu0
        %v2961 = vadd.f32 %v2860, %v2960
        %v2962 = vpop.f32.mrb[0].mxu0
        %v2963 = vpop.f32.mrb[0].mxu0
        %v2964 = vadd.f32 %v2860, %v2963
        %v2965 = vpop.f32.mrb[0].mxu0
        %2966 = vmatprep.mubr.bf16.mxu0 0
        %2967 = vmatmul.mubr.bf16.gmra.mrb[0].mxu0 %v2838
        %v2968 = vpop.f32.mrb[0].mxu0
        %v2969 = vadd.f32 %v2860, %v2968
        %v2970 = vpop.f32.mrb[0].mxu0
        %v2971 = vpop.f32.mrb[0].mxu0
        %v2972 = vadd.f32 %v2860, %v2971
        %v2973 = vpop.f32.mrb[0].mxu0
        %2974 = vdwg.mxu0
        %v2975 = vmul.f32 %v2945, %v442
        %v2976 = vmul.f32 %v2948, %v447
        %v2977 = vmul.f32 %v2953, %v452
        %v2978 = vmul.f32 %v2956, %v457
        %v2979 = vmul.f32 %v2961, %v462
        %v2980 = vmul.f32 %v2964, %v467
        %v2981 = vmul.f32 %v2969, %v472
        %v2982 = vmul.f32 %v2972, %v477
        %2983 = vst [vmem:[%s411] sm:$0xff] %v2975
        %2984 = vst [vmem:[%s411 + $0x8] sm:$0xff] %v2976
        %2985 = vst [vmem:[%s411 + $0x10] sm:$0xff] %v2977
        %2986 = vst [vmem:[%s411 + $0x18] sm:$0xff] %v2978
        %2987 = vst [vmem:[%s411 + $0x20] sm:$0xff] %v2979
        %2988 = vst [vmem:[%s411 + $0x28] sm:$0xff] %v2980
        %2989 = vst [vmem:[%s411 + $0x30] sm:$0xff] %v2981
        %2990 = vst [vmem:[%s411 + $0x38] sm:$0xff] %v2982
        %s2991 = sand.u32 %s254, 1
        %s2992 = scalar_lea.sflag [#allocation4], %s2991
        %s2993 = sand.u32 %s254, 1
        %s2994 = smul.addr %s2993, 64
        %s2995 = scalar_lea.vmem [#allocation8], %s2994
        // Predicated region
        $region73: #{tpu_custom_call.1} parent=59 // pred_check
          %p2996 = pneg %p264
        $region74: #{tpu_custom_call.1} parent=59 // pred_check_branch
          %2998 = sbr.rel (%p2996) target = $region76
        $region75: #{tpu_custom_call.1} parent=59 // pred_region
          %s3000 = ssub.s32 1024, 1024
          %3001 = vsyncadd %s2992, %s3000
          %s3002 = smul.addr %s26, 8
          %s3003 = smul.addr %s3002, 128
          %s3004 = scalar_lea.hbm %s10, %s3003
          %s3005 = sshll.u32 %s2995, 4
          %s3006 = int_to_ptr.vmem [resolvable:$true] %s3005
          %3011 = dma.vmem_to_hbm [thread:$0]  %s3006, 1024, %s3004, %s2992, 128, 128, 8
        $region76: #{tpu_custom_call.1} parent=59 // pred_fallthru
          _
      $region60: #{tpu_custom_call.1} parent=5 // pred_fallthru
        _
      %p3012 = scmp.le.s32.totalorder 2, %s21
      // Predicated region
      $region77: #{tpu_custom_call.1} parent=5 // pred_check
        %p3013 = pneg %p3012
      $region78: #{tpu_custom_call.1} parent=5 // pred_check_branch
        %3015 = sbr.rel (%p3013) target = $region80
      $region79: #{tpu_custom_call.1} parent=5 // pred_region
        %s3016 = ssub.s32 %s21, 2
        // Predicated region
        $region81: #{tpu_custom_call.1} parent=79 // pred_check
          %p3017 = pneg %p270
        $region82: #{tpu_custom_call.1} parent=79 // pred_check_branch
          %3019 = sbr.rel (%p3017) target = $region84
        $region83: #{tpu_custom_call.1} parent=79 // pred_region
          %s3020 = sand.u32 %s255, 1
          %s3021 = scalar_lea.sflag [#allocation4], %s3020
          %s3022 = sand.u32 %s255, 1
          %s3023 = smul.addr %s3022, 64
          %s3024 = scalar_lea.vmem [#allocation8], %s3023
          %3025 = dma.done %s3021, 1024
        $region84: #{tpu_custom_call.1} parent=79 // pred_fallthru
          _
      $region80: #{tpu_custom_call.1} parent=5 // pred_fallthru
        _
    $region6: #{tpu_custom_call.1} parent=1 // loop_footer
      %s25 = sadd.s32 1, %s21
    $region7: #{tpu_custom_call.1} parent=1 // loop_footer_branch
      %20 = sbr.rel target = $region3
    $region8: #{tpu_custom_call.1} parent=1 // loop_exit
      _
    %3026 = vsyncpa [#allocation3], 1
    %s3027 = scalar_lea.sflag [#allocation3], 1
    %3028 = vsyncpa %s3027, 1
    %3029 = vsyncpa [#allocation6], 1
    %3030 = vsyncpa [#allocation4], 1
    %s3031 = scalar_lea.sflag [#allocation4], 1
    %3032 = vsyncpa %s3031, 1

</llo_original>
